<compile_context>
chip_gen: v7x
topology: tpu7x:2x2x1
jax: 0.10.0
libtpu: 0.0.40
codegen_flags: <defaults>
</compile_context>

<pallas_src>
import functools

import jax
import jax.numpy as jnp
from jax.experimental import pallas as pl
from jax.experimental.pallas import tpu as pltpu

MASK_BIAS = 1e30  # finite "minus infinity" for masked attention scores


def vspec():
    return pl.BlockSpec(memory_space=pltpu.MemorySpace.VMEM)


# ----------------------------- in-kernel math helpers -------------------------------

def _bf16(x):
    return x.astype(jnp.bfloat16)


def _mm_t(a, b):
    # a: (M, K), b: (N, K) (torch nn.Linear layout) -> (M, N); bf16 MXU, f32 accumulate
    return jax.lax.dot_general(_bf16(a), _bf16(b), (((1,), (1,)), ((), ())),
                               preferred_element_type=jnp.float32)


def _mm(a, b):
    # a: (M, K), b: (K, N) -> (M, N); bf16 MXU, f32 accumulate
    return jax.lax.dot_general(_bf16(a), _bf16(b), (((1,), (0,)), ((), ())),
                               preferred_element_type=jnp.float32)


def _mm_f32(a, b):
    # exact f32 matmul (used only for the tiny one-hot embedding gather)
    return jax.lax.dot_general(a, b, (((1,), (0,)), ((), ())),
                               preferred_element_type=jnp.float32)


def _add_ln(x, y, g, b):
    # LayerNorm(x + y), eps = 1e-5 (torch default); f32 elementwise
    z = x + y
    mu = jnp.mean(z, axis=-1, keepdims=True)
    var = jnp.mean((z - mu) ** 2, axis=-1, keepdims=True)
    return (z - mu) * jax.lax.rsqrt(var + 1e-5) * g + b


# ----------------------------- the fused forward kernel -------------------------------

def _nmt_kernel(
        src_tok_ref, trg_tok_ref, lab_ref, pos_src_ref, pos_trg_ref,
        bias_enc_ref, bias_dself_ref, bias_cross_ref,
        hm_src_ref, hm_trg_ref, g_src_ref, g_trg_ref,
        enc_emb_ref, e_wqkv_ref, e_wo_ref, e_bo_ref, e_g1_ref, e_b1_ref,
        e_w1_ref, e_c1_ref, e_w2_ref, e_c2_ref, e_g2_ref, e_b2_ref,
        dec_emb_ref, wkv_all_ref,
        d_wqkv_ref, d_wo1_ref, d_bo1_ref, d_g1_ref, d_b1_ref,
        d_wq2_ref, d_wo2_ref, d_bo2_ref, d_g2_ref, d_b2_ref,
        d_w1_ref, d_c1_ref, d_w2_ref, d_c2_ref, d_g3_ref, d_b3_ref,
        fco_w_ref, fco_b_ref,
        loss_ref,
        *, n_head, n_layers, pad_idx):
    H = enc_emb_ref.shape[1]

    # constants loaded once, reused by every attention (no per-layer rebuild)
    hm_src = hm_src_ref[...]          # (n_head*B*Ls, H) head-block-diagonal expansion mask
    hm_trg = hm_trg_ref[...]          # (n_head*B*Lt, H)
    g_src = g_src_ref[...]            # (n_head*B*Ls, n_head*B*Ls) segment-sum ones
    g_trg = g_trg_ref[...]
    bias_enc = bias_enc_ref[...]      # additive masks (0 / -1e30), cross-batch folded in
    bias_dself = bias_dself_ref[...]
    bias_cross = bias_cross_ref[...]

    def attention(q, k, v, bias, hm, g, wo, bo):
        # q: (Rq, H); k, v: (Rk, H); bias: (Rq, n_head*Rk).  One wide scores matmul over
        # all batches & heads at once via head-block-diagonal K/V; block structure enforced
        # by `bias` (batch) and `hm` (head lanes).
        kbd = jnp.concatenate([k] * n_head, axis=0) * hm      # (n_head*Rk, H)
        vbd = jnp.concatenate([v] * n_head, axis=0) * hm
        s = _mm_t(q, kbd) + bias                               # (Rq, n_head*Rk) f32
        s = s - jnp.max(s, axis=-1, keepdims=True)             # per-row const: softmax-safe
        p = jnp.exp(s)                                         # masked entries -> exact 0
        denom = jnp.maximum(_mm(p, g), 1e-30)                  # per-(head,batch) segment sums
        p = p * pl.reciprocal(denom, approx=True)
        ctx = _mm(p, vbd)                                      # (Rq, H) heads merged in lanes
        return _mm_t(ctx, wo) + bo                             # single K=H output projection

    def embed(tok_ref, emb_ref, pos_ref):
        # one-hot MXU gather (vocab is tiny) + positional add, exact f32
        vocab = emb_ref.shape[0]
        n = tok_ref.shape[0]
        col = jax.lax.broadcasted_iota(jnp.int32, (n, vocab), 1)
        onehot = (col == tok_ref[...]).astype(jnp.float32)
        return _mm_f32(onehot, emb_ref[...]) + pos_ref[...]

    # ---------------- encoder ----------------
    enc = embed(src_tok_ref, enc_emb_ref, pos_src_ref)         # (B*Ls, H)
    for l in range(n_layers):
        qkv = _mm_t(enc, e_wqkv_ref[l])                        # fused QKV, (B*Ls, 3H)
        a = attention(qkv[:, 0:H], qkv[:, H:2 * H], qkv[:, 2 * H:3 * H],
                      bias_enc, hm_src, g_src, e_wo_ref[l], e_bo_ref[l])
        z1 = _add_ln(enc, a, e_g1_ref[l], e_b1_ref[l])
        hid = jnp.maximum(_mm_t(z1, e_w1_ref[l]) + e_c1_ref[l], 0.0)
        ff = _mm_t(hid, e_w2_ref[l]) + e_c2_ref[l]
        enc = _add_ln(z1, ff, e_g2_ref[l], e_b2_ref[l])

    # ---------------- decoder ----------------
    # cross-attention K/V for ALL decoder layers in one wide (N = n_layers*2H) matmul
    kv_all = _mm_t(enc, wkv_all_ref[...])                      # (B*Ls, n_layers*2H)
    dec = embed(trg_tok_ref, dec_emb_ref, pos_trg_ref)         # (B*Lt, H)
    for l in range(n_layers):
        # masked self-attention
        qkv = _mm_t(dec, d_wqkv_ref[l])
        a1 = attention(qkv[:, 0:H], qkv[:, H:2 * H], qkv[:, 2 * H:3 * H],
                       bias_dself, hm_trg, g_trg, d_wo1_ref[l], d_bo1_ref[l])
        z1 = _add_ln(dec, a1, d_g1_ref[l], d_b1_ref[l])
        # encoder-decoder cross attention
        q2 = _mm_t(z1, d_wq2_ref[l])
        k2 = kv_all[:, 2 * H * l: 2 * H * l + H]
        v2 = kv_all[:, 2 * H * l + H: 2 * H * (l + 1)]
        a2 = attention(q2, k2, v2, bias_cross, hm_src, g_src,
                       d_wo2_ref[l], d_bo2_ref[l])
        z2 = _add_ln(z1, a2, d_g2_ref[l], d_b2_ref[l])
        # positionwise FFN
        hid = jnp.maximum(_mm_t(z2, d_w1_ref[l]) + d_c1_ref[l], 0.0)
        ff = _mm_t(hid, d_w2_ref[l]) + d_c2_ref[l]
        dec = _add_ln(z2, ff, d_g3_ref[l], d_b3_ref[l])

    # ---------------- fc_out + masked mean cross-entropy ----------------
    logits = _mm_t(dec, fco_w_ref[...]) + fco_b_ref[...]       # (B*Lt, V) f32
    n_rows, vocab = logits.shape
    m = jnp.max(logits, axis=-1, keepdims=True)
    lse = jnp.log(jnp.sum(jnp.exp(logits - m), axis=-1, keepdims=True)) + m
    labels = lab_ref[...]                                      # (B*Lt, 1) int32
    col = jax.lax.broadcasted_iota(jnp.int32, (n_rows, vocab), 1)
    tgt = jnp.sum(jnp.where(col == labels, logits, 0.0), axis=-1, keepdims=True)
    valid = (labels != pad_idx).astype(jnp.float32)
    per = (lse - tgt) * valid
    loss_sum = jnp.sum(per, axis=0, keepdims=True)             # (1, 1)
    cnt = jnp.sum(valid, axis=0, keepdims=True)                # (1, 1)
    loss_ref[...] = loss_sum / jnp.maximum(cnt, 1.0)           # guard all-padding batch


# ----------------------------- host-side (XLA) prep -------------------------------

def _block_bias(keep, n_head):
    # keep: (B, Lq, Lk) with 1.0 = attend.  Returns (B*Lq, n_head*B*Lk) additive bias,
    # columns ordered (head, batch, key); cross-batch positions also masked.
    B, Lq, Lk = keep.shape
    eye = jnp.eye(B, dtype=keep.dtype)
    full = keep[:, :, None, None, :] * eye[:, None, None, :, None]   # (B, Lq, 1, B, Lk)
    full = jnp.broadcast_to(full, (B, Lq, n_head, B, Lk))
    return (full - 1.0).reshape(B * Lq, n_head * B * Lk) * MASK_BIAS


def _head_expand_mask(n_head, Rk, H):
    # (n_head*Rk, H): row (h*Rk + r) keeps only lanes of head h
    dh = H // n_head
    r = jnp.arange(n_head * Rk)[:, None] // Rk
    c = jnp.arange(H)[None, :] // dh
    return (r == c).astype(jnp.float32)


def _segment_ones(n_head, Rk, Lk):
    # (n_head*Rk, n_head*Rk) block-diagonal ones with block size Lk: softmax segment sums
    seg = jnp.arange(n_head * Rk) // Lk
    return (seg[:, None] == seg[None, :]).astype(jnp.float32)


def nmt_loss(packed, src_tok, trg_tok, *, pad_idx, n_head, n_layers):
    # TODO(synk): preparePaddedBatch is host-side string preprocessing; tokens arrive padded.
    # TODO(synk): dropout runs as identity (eval mode); training-mode RNG not reproduced.
    B, Ls = src_tok.shape
    trg_in = trg_tok[:, :-1]
    Lt = trg_in.shape[1]
    H = packed['enc_emb'].shape[1]

    labels = trg_tok[:, 1:].reshape(B * Lt, 1).astype(jnp.int32)
    src_tok2 = src_tok.reshape(B * Ls, 1).astype(jnp.int32)
    trg_tok2 = trg_in.reshape(B * Lt, 1).astype(jnp.int32)

    # masks -> additive biases with cross-batch block structure (precomputed outside kernel)
    src_keep = (src_tok != pad_idx).astype(jnp.float32)                     # (B, Ls)
    trg_keep = (trg_in != pad_idx).astype(jnp.float32)                      # (B, Lt)
    causal = jnp.tril(jnp.ones((Lt, Lt), jnp.float32))
    keep_enc = jnp.broadcast_to(src_keep[:, None, :], (B, Ls, Ls))
    keep_dself = trg_keep[:, None, :] * causal[None, :, :]
    keep_cross = jnp.broadcast_to(src_keep[:, None, :], (B, Lt, Ls))
    bias_enc = _block_bias(keep_enc, n_head)
    bias_dself = _block_bias(keep_dself, n_head)
    bias_cross = _block_bias(keep_cross, n_head)

    hm_src = _head_expand_mask(n_head, B * Ls, H)
    hm_trg = _head_expand_mask(n_head, B * Lt, H)
    g_src = _segment_ones(n_head, B * Ls, Ls)
    g_trg = _segment_ones(n_head, B * Lt, Lt)

    pos_src = jnp.tile(packed['enc_pos'][:Ls], (B, 1))
    pos_trg = jnp.tile(packed['dec_pos'][:Lt], (B, 1))

    inputs = (
        src_tok2, trg_tok2, labels, pos_src, pos_trg,
        bias_enc, bias_dself, bias_cross,
        hm_src, hm_trg, g_src, g_trg,
        packed['enc_emb'],
        packed['e_wqkv'], packed['e_wo'], packed['e_bo'],
        packed['e_g1'], packed['e_b1'],
        packed['e_w1'], packed['e_c1'], packed['e_w2'], packed['e_c2'],
        packed['e_g2'], packed['e_b2'],
        packed['dec_emb'], packed['wkv_all'],
        packed['d_wqkv'], packed['d_wo1'], packed['d_bo1'],
        packed['d_g1'], packed['d_b1'],
        packed['d_wq2'], packed['d_wo2'], packed['d_bo2'],
        packed['d_g2'], packed['d_b2'],
        packed['d_w1'], packed['d_c1'], packed['d_w2'], packed['d_c2'],
        packed['d_g3'], packed['d_b3'],
        packed['fco_w'], packed['fco_b'],
    )

    loss = pl.pallas_call(
        functools.partial(_nmt_kernel, n_head=n_head, n_layers=n_layers,
                          pad_idx=int(pad_idx)),
        out_shape=jax.ShapeDtypeStruct((1, 1), jnp.float32),
        in_specs=[vspec() for _ in inputs],
        out_specs=vspec(),
    )(*inputs)
    return loss[0, 0]


# ----------------------------- param init & packing -------------------------------

def _w(key, shape, scale=0.05):
    return scale * jax.random.normal(key, shape, jnp.float32)


def _ones(H):
    return jnp.ones((1, H), jnp.float32)


def _zeros(H):
    return jnp.zeros((1, H), jnp.float32)


def init_encoder_layer(key, H, PF):
    kq, kk, kv, ko, k1, k2 = jax.random.split(key, 6)
    return {'wq': _w(kq, (H, H)), 'wk': _w(kk, (H, H)), 'wv': _w(kv, (H, H)),
            'wo': _w(ko, (H, H)), 'bo': _zeros(H),
            'g1': _ones(H), 'b1': _zeros(H),
            'w1': _w(k1, (PF, H)), 'c1': _zeros(PF),
            'w2': _w(k2, (H, PF)), 'c2': _zeros(H),
            'g2': _ones(H), 'b2': _zeros(H)}


def init_decoder_layer(key, H, PF):
    kq1, kk1, kv1, ko1, kq2, kk2, kv2, ko2, k1, k2 = jax.random.split(key, 10)
    return {'wq1': _w(kq1, (H, H)), 'wk1': _w(kk1, (H, H)), 'wv1': _w(kv1, (H, H)),
            'wo1': _w(ko1, (H, H)), 'bo1': _zeros(H),
            'g1': _ones(H), 'b1': _zeros(H),
            'wq2': _w(kq2, (H, H)), 'wk2': _w(kk2, (H, H)), 'wv2': _w(kv2, (H, H)),
            'wo2': _w(ko2, (H, H)), 'bo2': _zeros(H),
            'g2': _ones(H), 'b2': _zeros(H),
            'w1': _w(k1, (PF, H)), 'c1': _zeros(PF),
            'w2': _w(k2, (H, PF)), 'c2': _zeros(H),
            'g3': _ones(H), 'b3': _zeros(H)}


def init_params(key, src_vocab, tgt_vocab, H, n_layers, PF, max_len=1000):
    keys = jax.random.split(key, 5 + 2 * n_layers)
    enc = {'word_emb': _w(keys[0], (src_vocab, H), 0.1),
           'pos_emb': _w(keys[1], (max_len, H), 0.1),
           'layers': [init_encoder_layer(keys[2 + i], H, PF) for i in range(n_layers)]}
    dec = {'word_emb': _w(keys[2 + n_layers], (tgt_vocab, H), 0.1),
           'pos_emb': _w(keys[3 + n_layers], (max_len, H), 0.1),
           'layers': [init_decoder_layer(keys[4 + n_layers + i], H, PF)
                      for i in range(n_layers)],
           'fc_out_w': _w(keys[4 + 2 * n_layers], (tgt_vocab, H)),
           'fc_out_b': jnp.zeros((1, tgt_vocab), jnp.float32)}
    return {'encoder': enc, 'decoder': dec}


def pack_params(params, n_head):
    # One-time host-side prep: stack per-layer weights, fuse QKV / cross-KV, pre-scale Q by
    # 1/sqrt(head_size), and pre-cast all matmul weights to bf16 (LN params/biases stay f32).
    enc, dec = params['encoder'], params['decoder']
    H = enc['word_emb'].shape[1]
    inv_scale = 1.0 / float(H // n_head) ** 0.5
    bf = lambda x: x.astype(jnp.bfloat16)
    stack = lambda layers, name: jnp.stack([lp[name] for lp in layers], axis=0)
    eL, dL = enc['layers'], dec['layers']

    return {
        'enc_emb': enc['word_emb'], 'enc_pos': enc['pos_emb'],
        'dec_emb': dec['word_emb'], 'dec_pos': dec['pos_emb'],
        # encoder layers
        'e_wqkv': bf(jnp.stack([jnp.concatenate(
            [lp['wq'] * inv_scale, lp['wk'], lp['wv']], axis=0) for lp in eL])),
        'e_wo': bf(stack(eL, 'wo')), 'e_bo': stack(eL, 'bo'),
        'e_g1': stack(eL, 'g1'), 'e_b1': stack(eL, 'b1'),
        'e_w1': bf(stack(eL, 'w1')), 'e_c1': stack(eL, 'c1'),
        'e_w2': bf(stack(eL, 'w2')), 'e_c2': stack(eL, 'c2'),
        'e_g2': stack(eL, 'g2'), 'e_b2': stack(eL, 'b2'),
        # decoder layers
        'd_wqkv': bf(jnp.stack([jnp.concatenate(
            [lp['wq1'] * inv_scale, lp['wk1'], lp['wv1']], axis=0) for lp in dL])),
        'd_wo1': bf(stack(dL, 'wo1')), 'd_bo1': stack(dL, 'bo1'),
        'd_g1': stack(dL, 'g1'), 'd_b1': stack(dL, 'b1'),
        'd_wq2': bf(stack(dL, 'wq2') * inv_scale),
        # cross-attention K/V weights for ALL decoder layers fused into one (n_layers*2H, H)
        'wkv_all': bf(jnp.concatenate(
            [jnp.concatenate([lp['wk2'], lp['wv2']], axis=0) for lp in dL], axis=0)),
        'd_wo2': bf(stack(dL, 'wo2')), 'd_bo2': stack(dL, 'bo2'),
        'd_g2': stack(dL, 'g2'), 'd_b2': stack(dL, 'b2'),
        'd_w1': bf(stack(dL, 'w1')), 'd_c1': stack(dL, 'c1'),
        'd_w2': bf(stack(dL, 'w2')), 'd_c2': stack(dL, 'c2'),
        'd_g3': stack(dL, 'g3'), 'd_b3': stack(dL, 'b3'),
        'fco_w': bf(dec['fc_out_w']), 'fco_b': dec['fc_out_b'],
    }


# ----------------------------- main -------------------------------

if __name__ == "__main__":
    # model hyperparams (d_model=32, n_head=4, Nx=2, pf = 2*d_model)
    D_MODEL, N_HEAD, NX = 32, 4, 2
    PF = 2 * D_MODEL
    SRC_VOCAB, TGT_VOCAB = 16, 16
    PAD, UNK, START, END = 0, 1, 2, 3
    B, LS, LT = 2, 8, 9

    key = jax.random.PRNGKey(0)
    kp, ks, kt = jax.random.split(key, 3)
    params = init_params(kp, SRC_VOCAB, TGT_VOCAB, D_MODEL, NX, PF)
    packed = pack_params(params, N_HEAD)

    src = jax.random.randint(ks, (B, LS), 4, SRC_VOCAB, dtype=jnp.int32)
    trg = jax.random.randint(kt, (B, LT), 4, TGT_VOCAB, dtype=jnp.int32)
    src = src.at[1, 6:].set(PAD)          # some source padding
    trg = trg.at[:, 0].set(START)         # start token
    trg = trg.at[:, -1].set(END)          # end token
    trg = trg.at[1, 7:].set(PAD)          # some target padding

    loss_fn = jax.jit(functools.partial(nmt_loss, pad_idx=PAD, n_head=N_HEAD,
                                        n_layers=NX))
    loss = jax.block_until_ready(loss_fn(packed, src, trg))
    assert jnp.isfinite(loss), f"non-finite loss: {loss}"
    print("KERNEL_OK")
</pallas_src>

<mosaic_0001>
module attributes {stable_mosaic.version = 11 : i64} {
  func.func @_nmt_kernel(%arg0: memref<16x1xi32, #tpu.memory_space<vmem>>, %arg1: memref<16x1xi32, #tpu.memory_space<vmem>>, %arg2: memref<16x1xi32, #tpu.memory_space<vmem>>, %arg3: memref<16x32xf32, #tpu.memory_space<vmem>>, %arg4: memref<16x32xf32, #tpu.memory_space<vmem>>, %arg5: memref<16x64xf32, #tpu.memory_space<vmem>>, %arg6: memref<16x64xf32, #tpu.memory_space<vmem>>, %arg7: memref<16x64xf32, #tpu.memory_space<vmem>>, %arg8: memref<64x32xf32, #tpu.memory_space<vmem>>, %arg9: memref<64x32xf32, #tpu.memory_space<vmem>>, %arg10: memref<64x64xf32, #tpu.memory_space<vmem>>, %arg11: memref<64x64xf32, #tpu.memory_space<vmem>>, %arg12: memref<16x32xf32, #tpu.memory_space<vmem>>, %arg13: memref<2x96x32xbf16, #tpu.memory_space<vmem>>, %arg14: memref<2x32x32xbf16, #tpu.memory_space<vmem>>, %arg15: memref<2x1x32xf32, #tpu.memory_space<vmem>>, %arg16: memref<2x1x32xf32, #tpu.memory_space<vmem>>, %arg17: memref<2x1x32xf32, #tpu.memory_space<vmem>>, %arg18: memref<2x64x32xbf16, #tpu.memory_space<vmem>>, %arg19: memref<2x1x64xf32, #tpu.memory_space<vmem>>, %arg20: memref<2x32x64xbf16, #tpu.memory_space<vmem>>, %arg21: memref<2x1x32xf32, #tpu.memory_space<vmem>>, %arg22: memref<2x1x32xf32, #tpu.memory_space<vmem>>, %arg23: memref<2x1x32xf32, #tpu.memory_space<vmem>>, %arg24: memref<16x32xf32, #tpu.memory_space<vmem>>, %arg25: memref<128x32xbf16, #tpu.memory_space<vmem>>, %arg26: memref<2x96x32xbf16, #tpu.memory_space<vmem>>, %arg27: memref<2x32x32xbf16, #tpu.memory_space<vmem>>, %arg28: memref<2x1x32xf32, #tpu.memory_space<vmem>>, %arg29: memref<2x1x32xf32, #tpu.memory_space<vmem>>, %arg30: memref<2x1x32xf32, #tpu.memory_space<vmem>>, %arg31: memref<2x32x32xbf16, #tpu.memory_space<vmem>>, %arg32: memref<2x32x32xbf16, #tpu.memory_space<vmem>>, %arg33: memref<2x1x32xf32, #tpu.memory_space<vmem>>, %arg34: memref<2x1x32xf32, #tpu.memory_space<vmem>>, %arg35: memref<2x1x32xf32, #tpu.memory_space<vmem>>, %arg36: memref<2x64x32xbf16, #tpu.memory_space<vmem>>, %arg37: memref<2x1x64xf32, #tpu.memory_space<vmem>>, %arg38: memref<2x32x64xbf16, #tpu.memory_space<vmem>>, %arg39: memref<2x1x32xf32, #tpu.memory_space<vmem>>, %arg40: memref<2x1x32xf32, #tpu.memory_space<vmem>>, %arg41: memref<2x1x32xf32, #tpu.memory_space<vmem>>, %arg42: memref<16x32xbf16, #tpu.memory_space<vmem>>, %arg43: memref<1x16xf32, #tpu.memory_space<vmem>>, %arg44: memref<1x1xf32, #tpu.memory_space<vmem>>) attributes {dimension_semantics = [], scalar_prefetch = 0 : i64, scratch_operands = 0 : i64, tpu.core_type = #tpu.core_type<tc>} {
    %c0 = arith.constant 0 : index
    %c0_0 = arith.constant 0 : index
    %0 = vector.load %arg8[%c0, %c0_0] : memref<64x32xf32, #tpu.memory_space<vmem>>, vector<64x32xf32>
    %c0_1 = arith.constant 0 : index
    %c0_2 = arith.constant 0 : index
    %1 = vector.load %arg9[%c0_1, %c0_2] : memref<64x32xf32, #tpu.memory_space<vmem>>, vector<64x32xf32>
    %c0_3 = arith.constant 0 : index
    %c0_4 = arith.constant 0 : index
    %2 = vector.load %arg10[%c0_3, %c0_4] : memref<64x64xf32, #tpu.memory_space<vmem>>, vector<64x64xf32>
    %c0_5 = arith.constant 0 : index
    %c0_6 = arith.constant 0 : index
    %3 = vector.load %arg11[%c0_5, %c0_6] : memref<64x64xf32, #tpu.memory_space<vmem>>, vector<64x64xf32>
    %c0_7 = arith.constant 0 : index
    %c0_8 = arith.constant 0 : index
    %4 = vector.load %arg5[%c0_7, %c0_8] : memref<16x64xf32, #tpu.memory_space<vmem>>, vector<16x64xf32>
    %c0_9 = arith.constant 0 : index
    %c0_10 = arith.constant 0 : index
    %5 = vector.load %arg6[%c0_9, %c0_10] : memref<16x64xf32, #tpu.memory_space<vmem>>, vector<16x64xf32>
    %c0_11 = arith.constant 0 : index
    %c0_12 = arith.constant 0 : index
    %6 = vector.load %arg7[%c0_11, %c0_12] : memref<16x64xf32, #tpu.memory_space<vmem>>, vector<16x64xf32>
    %7 = tpu.iota {dimensions = array<i32: 1>} : vector<16x16xi32>
    %c0_13 = arith.constant 0 : index
    %c0_14 = arith.constant 0 : index
    %8 = vector.load %arg0[%c0_13, %c0_14] : memref<16x1xi32, #tpu.memory_space<vmem>>, vector<16x1xi32>
    %9 = vector.broadcast %8 : vector<16x1xi32> to vector<16x16xi32>
    %10 = arith.cmpi eq, %7, %9 : vector<16x16xi32>
    %11 = arith.extui %10 : vector<16x16xi1> to vector<16x16xi32>
    %12 = arith.sitofp %11 : vector<16x16xi32> to vector<16x16xf32>
    %c0_15 = arith.constant 0 : index
    %c0_16 = arith.constant 0 : index
    %13 = vector.load %arg12[%c0_15, %c0_16] : memref<16x32xf32, #tpu.memory_space<vmem>>, vector<16x32xf32>
    %cst = arith.constant dense<0.000000e+00> : vector<16x32xf32>
    %14 = tpu.matmul %12, %13, %cst {dimension_numbers = #tpu.dot_dimension_numbers<[1], [0], [0], [1], [0, 0, 1, 1], [], []>} : vector<16x16xf32>, vector<16x32xf32>, vector<16x32xf32> -> vector<16x32xf32>
    %c0_17 = arith.constant 0 : index
    %c0_18 = arith.constant 0 : index
    %15 = vector.load %arg3[%c0_17, %c0_18] : memref<16x32xf32, #tpu.memory_space<vmem>>, vector<16x32xf32>
    %16 = arith.addf %14, %15 : vector<16x32xf32>
    %c0_19 = arith.constant 0 : index
    %c0_20 = arith.constant 0 : index
    %c0_21 = arith.constant 0 : index
    %17 = vector.load %arg13[%c0_19, %c0_20, %c0_21] : memref<2x96x32xbf16, #tpu.memory_space<vmem>>, vector<1x96x32xbf16>
    %18 = vector.shape_cast %17 : vector<1x96x32xbf16> to vector<96x32xbf16>
    %19 = arith.truncf %16 : vector<16x32xf32> to vector<16x32xbf16>
    %cst_22 = arith.constant dense<0.000000e+00> : vector<16x96xf32>
    %20 = tpu.matmul %19, %18, %cst_22 {dimension_numbers = #tpu.dot_dimension_numbers<[1], [1], [0], [0], [0, 0, 1, 0], [], []>} : vector<16x32xbf16>, vector<96x32xbf16>, vector<16x96xf32> -> vector<16x96xf32>
    %21 = vector.extract_strided_slice %20 {offsets = [0, 0], sizes = [16, 32], strides = [1, 1]} : vector<16x96xf32> to vector<16x32xf32>
    %22 = vector.extract_strided_slice %20 {offsets = [0, 32], sizes = [16, 32], strides = [1, 1]} : vector<16x96xf32> to vector<16x32xf32>
    %23 = vector.extract_strided_slice %20 {offsets = [0, 64], sizes = [16, 32], strides = [1, 1]} : vector<16x96xf32> to vector<16x32xf32>
    %c0_23 = arith.constant 0 : index
    %c0_24 = arith.constant 0 : index
    %c0_25 = arith.constant 0 : index
    %24 = vector.load %arg14[%c0_23, %c0_24, %c0_25] : memref<2x32x32xbf16, #tpu.memory_space<vmem>>, vector<1x32x32xbf16>
    %25 = vector.shape_cast %24 : vector<1x32x32xbf16> to vector<32x32xbf16>
    %c0_26 = arith.constant 0 : index
    %c0_27 = arith.constant 0 : index
    %c0_28 = arith.constant 0 : index
    %26 = vector.load %arg15[%c0_26, %c0_27, %c0_28] : memref<2x1x32xf32, #tpu.memory_space<vmem>>, vector<1x1x32xf32>
    %27 = vector.shape_cast %26 : vector<1x1x32xf32> to vector<1x32xf32>
    %28 = tpu.concatenate %22, %22, %22, %22 in 0 : vector<16x32xf32>, vector<16x32xf32>, vector<16x32xf32>, vector<16x32xf32> -> vector<64x32xf32>
    %29 = arith.mulf %28, %0 : vector<64x32xf32>
    %30 = tpu.concatenate %23, %23, %23, %23 in 0 : vector<16x32xf32>, vector<16x32xf32>, vector<16x32xf32>, vector<16x32xf32> -> vector<64x32xf32>
    %31 = arith.mulf %30, %0 : vector<64x32xf32>
    %32 = arith.truncf %21 : vector<16x32xf32> to vector<16x32xbf16>
    %33 = arith.truncf %29 : vector<64x32xf32> to vector<64x32xbf16>
    %cst_29 = arith.constant dense<0.000000e+00> : vector<16x64xf32>
    %34 = tpu.matmul %32, %33, %cst_29 {dimension_numbers = #tpu.dot_dimension_numbers<[1], [1], [0], [0], [0, 0, 1, 0], [], []>} : vector<16x32xbf16>, vector<64x32xbf16>, vector<16x64xf32> -> vector<16x64xf32>
    %35 = arith.addf %34, %4 : vector<16x64xf32>
    %cst_30 = arith.constant dense<0xFF800000> : vector<16xf32>
    %36 = vector.multi_reduction <maximumf>, %35, %cst_30 [1] : vector<16x64xf32> to vector<16xf32>
    %37 = vector.shape_cast %36 : vector<16xf32> to vector<16x1xf32>
    %38 = vector.broadcast %37 : vector<16x1xf32> to vector<16x64xf32>
    %39 = arith.subf %35, %38 : vector<16x64xf32>
    %40 = math.exp %39 : vector<16x64xf32>
    %41 = arith.truncf %40 : vector<16x64xf32> to vector<16x64xbf16>
    %42 = arith.truncf %2 : vector<64x64xf32> to vector<64x64xbf16>
    %cst_31 = arith.constant dense<0.000000e+00> : vector<16x64xf32>
    %43 = tpu.matmul %41, %42, %cst_31 {dimension_numbers = #tpu.dot_dimension_numbers<[1], [0], [0], [1], [0, 0, 1, 1], [], []>} : vector<16x64xbf16>, vector<64x64xbf16>, vector<16x64xf32> -> vector<16x64xf32>
    %cst_32 = arith.constant 1.000000e-30 : f32
    %44 = vector.broadcast %cst_32 : f32 to vector<16x64xf32>
    %45 = arith.maximumf %43, %44 : vector<16x64xf32>
    %46 = tpu.reciprocal %45 {approx = true} : vector<16x64xf32> -> vector<16x64xf32>
    %47 = arith.mulf %40, %46 : vector<16x64xf32>
    %48 = arith.truncf %47 : vector<16x64xf32> to vector<16x64xbf16>
    %49 = arith.truncf %31 : vector<64x32xf32> to vector<64x32xbf16>
    %cst_33 = arith.constant dense<0.000000e+00> : vector<16x32xf32>
    %50 = tpu.matmul %48, %49, %cst_33 {dimension_numbers = #tpu.dot_dimension_numbers<[1], [0], [0], [1], [0, 0, 1, 1], [], []>} : vector<16x64xbf16>, vector<64x32xbf16>, vector<16x32xf32> -> vector<16x32xf32>
    %51 = arith.truncf %50 : vector<16x32xf32> to vector<16x32xbf16>
    %cst_34 = arith.constant dense<0.000000e+00> : vector<16x32xf32>
    %52 = tpu.matmul %51, %25, %cst_34 {dimension_numbers = #tpu.dot_dimension_numbers<[1], [1], [0], [0], [0, 0, 1, 0], [], []>} : vector<16x32xbf16>, vector<32x32xbf16>, vector<16x32xf32> -> vector<16x32xf32>
    %53 = vector.broadcast %27 : vector<1x32xf32> to vector<16x32xf32>
    %54 = arith.addf %52, %53 : vector<16x32xf32>
    %c0_35 = arith.constant 0 : index
    %c0_36 = arith.constant 0 : index
    %c0_37 = arith.constant 0 : index
    %55 = vector.load %arg16[%c0_35, %c0_36, %c0_37] : memref<2x1x32xf32, #tpu.memory_space<vmem>>, vector<1x1x32xf32>
    %56 = vector.shape_cast %55 : vector<1x1x32xf32> to vector<1x32xf32>
    %c0_38 = arith.constant 0 : index
    %c0_39 = arith.constant 0 : index
    %c0_40 = arith.constant 0 : index
    %57 = vector.load %arg17[%c0_38, %c0_39, %c0_40] : memref<2x1x32xf32, #tpu.memory_space<vmem>>, vector<1x1x32xf32>
    %58 = vector.shape_cast %57 : vector<1x1x32xf32> to vector<1x32xf32>
    %59 = arith.addf %16, %54 : vector<16x32xf32>
    %cst_41 = arith.constant dense<0.000000e+00> : vector<16xf32>
    %60 = vector.multi_reduction <add>, %59, %cst_41 [1] : vector<16x32xf32> to vector<16xf32>
    %61 = vector.shape_cast %60 : vector<16xf32> to vector<16x1xf32>
    %cst_42 = arith.constant 3.200000e+01 : f32
    %62 = vector.broadcast %cst_42 : f32 to vector<16x1xf32>
    %63 = arith.divf %61, %62 : vector<16x1xf32>
    %64 = vector.broadcast %63 : vector<16x1xf32> to vector<16x32xf32>
    %65 = arith.subf %59, %64 : vector<16x32xf32>
    %66 = arith.mulf %65, %65 : vector<16x32xf32>
    %cst_43 = arith.constant dense<0.000000e+00> : vector<16xf32>
    %67 = vector.multi_reduction <add>, %66, %cst_43 [1] : vector<16x32xf32> to vector<16xf32>
    %68 = vector.shape_cast %67 : vector<16xf32> to vector<16x1xf32>
    %cst_44 = arith.constant 3.200000e+01 : f32
    %69 = vector.broadcast %cst_44 : f32 to vector<16x1xf32>
    %70 = arith.divf %68, %69 : vector<16x1xf32>
    %71 = vector.broadcast %63 : vector<16x1xf32> to vector<16x32xf32>
    %72 = arith.subf %59, %71 : vector<16x32xf32>
    %cst_45 = arith.constant 9.99999974E-6 : f32
    %73 = vector.broadcast %cst_45 : f32 to vector<16x1xf32>
    %74 = arith.addf %70, %73 : vector<16x1xf32>
    %75 = math.rsqrt %74 : vector<16x1xf32>
    %76 = vector.broadcast %75 : vector<16x1xf32> to vector<16x32xf32>
    %77 = arith.mulf %72, %76 : vector<16x32xf32>
    %78 = vector.broadcast %56 : vector<1x32xf32> to vector<16x32xf32>
    %79 = arith.mulf %77, %78 : vector<16x32xf32>
    %80 = vector.broadcast %58 : vector<1x32xf32> to vector<16x32xf32>
    %81 = arith.addf %79, %80 : vector<16x32xf32>
    %c0_46 = arith.constant 0 : index
    %c0_47 = arith.constant 0 : index
    %c0_48 = arith.constant 0 : index
    %82 = vector.load %arg18[%c0_46, %c0_47, %c0_48] : memref<2x64x32xbf16, #tpu.memory_space<vmem>>, vector<1x64x32xbf16>
    %83 = vector.shape_cast %82 : vector<1x64x32xbf16> to vector<64x32xbf16>
    %84 = arith.truncf %81 : vector<16x32xf32> to vector<16x32xbf16>
    %cst_49 = arith.constant dense<0.000000e+00> : vector<16x64xf32>
    %85 = tpu.matmul %84, %83, %cst_49 {dimension_numbers = #tpu.dot_dimension_numbers<[1], [1], [0], [0], [0, 0, 1, 0], [], []>} : vector<16x32xbf16>, vector<64x32xbf16>, vector<16x64xf32> -> vector<16x64xf32>
    %c0_50 = arith.constant 0 : index
    %c0_51 = arith.constant 0 : index
    %c0_52 = arith.constant 0 : index
    %86 = vector.load %arg19[%c0_50, %c0_51, %c0_52] : memref<2x1x64xf32, #tpu.memory_space<vmem>>, vector<1x1x64xf32>
    %87 = vector.shape_cast %86 : vector<1x1x64xf32> to vector<1x64xf32>
    %88 = vector.broadcast %87 : vector<1x64xf32> to vector<16x64xf32>
    %89 = arith.addf %85, %88 : vector<16x64xf32>
    %cst_53 = arith.constant 0.000000e+00 : f32
    %90 = vector.broadcast %cst_53 : f32 to vector<16x64xf32>
    %91 = arith.maximumf %89, %90 : vector<16x64xf32>
    %c0_54 = arith.constant 0 : index
    %c0_55 = arith.constant 0 : index
    %c0_56 = arith.constant 0 : index
    %92 = vector.load %arg20[%c0_54, %c0_55, %c0_56] : memref<2x32x64xbf16, #tpu.memory_space<vmem>>, vector<1x32x64xbf16>
    %93 = vector.shape_cast %92 : vector<1x32x64xbf16> to vector<32x64xbf16>
    %94 = arith.truncf %91 : vector<16x64xf32> to vector<16x64xbf16>
    %cst_57 = arith.constant dense<0.000000e+00> : vector<16x32xf32>
    %95 = tpu.matmul %94, %93, %cst_57 {dimension_numbers = #tpu.dot_dimension_numbers<[1], [1], [0], [0], [0, 0, 1, 0], [], []>} : vector<16x64xbf16>, vector<32x64xbf16>, vector<16x32xf32> -> vector<16x32xf32>
    %c0_58 = arith.constant 0 : index
    %c0_59 = arith.constant 0 : index
    %c0_60 = arith.constant 0 : index
    %96 = vector.load %arg21[%c0_58, %c0_59, %c0_60] : memref<2x1x32xf32, #tpu.memory_space<vmem>>, vector<1x1x32xf32>
    %97 = vector.shape_cast %96 : vector<1x1x32xf32> to vector<1x32xf32>
    %98 = vector.broadcast %97 : vector<1x32xf32> to vector<16x32xf32>
    %99 = arith.addf %95, %98 : vector<16x32xf32>
    %c0_61 = arith.constant 0 : index
    %c0_62 = arith.constant 0 : index
    %c0_63 = arith.constant 0 : index
    %100 = vector.load %arg22[%c0_61, %c0_62, %c0_63] : memref<2x1x32xf32, #tpu.memory_space<vmem>>, vector<1x1x32xf32>
    %101 = vector.shape_cast %100 : vector<1x1x32xf32> to vector<1x32xf32>
    %c0_64 = arith.constant 0 : index
    %c0_65 = arith.constant 0 : index
    %c0_66 = arith.constant 0 : index
    %102 = vector.load %arg23[%c0_64, %c0_65, %c0_66] : memref<2x1x32xf32, #tpu.memory_space<vmem>>, vector<1x1x32xf32>
    %103 = vector.shape_cast %102 : vector<1x1x32xf32> to vector<1x32xf32>
    %104 = arith.addf %81, %99 : vector<16x32xf32>
    %cst_67 = arith.constant dense<0.000000e+00> : vector<16xf32>
    %105 = vector.multi_reduction <add>, %104, %cst_67 [1] : vector<16x32xf32> to vector<16xf32>
    %106 = vector.shape_cast %105 : vector<16xf32> to vector<16x1xf32>
    %cst_68 = arith.constant 3.200000e+01 : f32
    %107 = vector.broadcast %cst_68 : f32 to vector<16x1xf32>
    %108 = arith.divf %106, %107 : vector<16x1xf32>
    %109 = vector.broadcast %108 : vector<16x1xf32> to vector<16x32xf32>
    %110 = arith.subf %104, %109 : vector<16x32xf32>
    %111 = arith.mulf %110, %110 : vector<16x32xf32>
    %cst_69 = arith.constant dense<0.000000e+00> : vector<16xf32>
    %112 = vector.multi_reduction <add>, %111, %cst_69 [1] : vector<16x32xf32> to vector<16xf32>
    %113 = vector.shape_cast %112 : vector<16xf32> to vector<16x1xf32>
    %cst_70 = arith.constant 3.200000e+01 : f32
    %114 = vector.broadcast %cst_70 : f32 to vector<16x1xf32>
    %115 = arith.divf %113, %114 : vector<16x1xf32>
    %116 = vector.broadcast %108 : vector<16x1xf32> to vector<16x32xf32>
    %117 = arith.subf %104, %116 : vector<16x32xf32>
    %cst_71 = arith.constant 9.99999974E-6 : f32
    %118 = vector.broadcast %cst_71 : f32 to vector<16x1xf32>
    %119 = arith.addf %115, %118 : vector<16x1xf32>
    %120 = math.rsqrt %119 : vector<16x1xf32>
    %121 = vector.broadcast %120 : vector<16x1xf32> to vector<16x32xf32>
    %122 = arith.mulf %117, %121 : vector<16x32xf32>
    %123 = vector.broadcast %101 : vector<1x32xf32> to vector<16x32xf32>
    %124 = arith.mulf %122, %123 : vector<16x32xf32>
    %125 = vector.broadcast %103 : vector<1x32xf32> to vector<16x32xf32>
    %126 = arith.addf %124, %125 : vector<16x32xf32>
    %c1 = arith.constant 1 : index
    %c0_72 = arith.constant 0 : index
    %c0_73 = arith.constant 0 : index
    %127 = vector.load %arg13[%c1, %c0_72, %c0_73] : memref<2x96x32xbf16, #tpu.memory_space<vmem>>, vector<1x96x32xbf16>
    %128 = vector.shape_cast %127 : vector<1x96x32xbf16> to vector<96x32xbf16>
    %129 = arith.truncf %126 : vector<16x32xf32> to vector<16x32xbf16>
    %cst_74 = arith.constant dense<0.000000e+00> : vector<16x96xf32>
    %130 = tpu.matmul %129, %128, %cst_74 {dimension_numbers = #tpu.dot_dimension_numbers<[1], [1], [0], [0], [0, 0, 1, 0], [], []>} : vector<16x32xbf16>, vector<96x32xbf16>, vector<16x96xf32> -> vector<16x96xf32>
    %131 = vector.extract_strided_slice %130 {offsets = [0, 0], sizes = [16, 32], strides = [1, 1]} : vector<16x96xf32> to vector<16x32xf32>
    %132 = vector.extract_strided_slice %130 {offsets = [0, 32], sizes = [16, 32], strides = [1, 1]} : vector<16x96xf32> to vector<16x32xf32>
    %133 = vector.extract_strided_slice %130 {offsets = [0, 64], sizes = [16, 32], strides = [1, 1]} : vector<16x96xf32> to vector<16x32xf32>
    %c1_75 = arith.constant 1 : index
    %c0_76 = arith.constant 0 : index
    %c0_77 = arith.constant 0 : index
    %134 = vector.load %arg14[%c1_75, %c0_76, %c0_77] : memref<2x32x32xbf16, #tpu.memory_space<vmem>>, vector<1x32x32xbf16>
    %135 = vector.shape_cast %134 : vector<1x32x32xbf16> to vector<32x32xbf16>
    %c1_78 = arith.constant 1 : index
    %c0_79 = arith.constant 0 : index
    %c0_80 = arith.constant 0 : index
    %136 = vector.load %arg15[%c1_78, %c0_79, %c0_80] : memref<2x1x32xf32, #tpu.memory_space<vmem>>, vector<1x1x32xf32>
    %137 = vector.shape_cast %136 : vector<1x1x32xf32> to vector<1x32xf32>
    %138 = tpu.concatenate %132, %132, %132, %132 in 0 : vector<16x32xf32>, vector<16x32xf32>, vector<16x32xf32>, vector<16x32xf32> -> vector<64x32xf32>
    %139 = arith.mulf %138, %0 : vector<64x32xf32>
    %140 = tpu.concatenate %133, %133, %133, %133 in 0 : vector<16x32xf32>, vector<16x32xf32>, vector<16x32xf32>, vector<16x32xf32> -> vector<64x32xf32>
    %141 = arith.mulf %140, %0 : vector<64x32xf32>
    %142 = arith.truncf %131 : vector<16x32xf32> to vector<16x32xbf16>
    %143 = arith.truncf %139 : vector<64x32xf32> to vector<64x32xbf16>
    %cst_81 = arith.constant dense<0.000000e+00> : vector<16x64xf32>
    %144 = tpu.matmul %142, %143, %cst_81 {dimension_numbers = #tpu.dot_dimension_numbers<[1], [1], [0], [0], [0, 0, 1, 0], [], []>} : vector<16x32xbf16>, vector<64x32xbf16>, vector<16x64xf32> -> vector<16x64xf32>
    %145 = arith.addf %144, %4 : vector<16x64xf32>
    %cst_82 = arith.constant dense<0xFF800000> : vector<16xf32>
    %146 = vector.multi_reduction <maximumf>, %145, %cst_82 [1] : vector<16x64xf32> to vector<16xf32>
    %147 = vector.shape_cast %146 : vector<16xf32> to vector<16x1xf32>
    %148 = vector.broadcast %147 : vector<16x1xf32> to vector<16x64xf32>
    %149 = arith.subf %145, %148 : vector<16x64xf32>
    %150 = math.exp %149 : vector<16x64xf32>
    %151 = arith.truncf %150 : vector<16x64xf32> to vector<16x64xbf16>
    %152 = arith.truncf %2 : vector<64x64xf32> to vector<64x64xbf16>
    %cst_83 = arith.constant dense<0.000000e+00> : vector<16x64xf32>
    %153 = tpu.matmul %151, %152, %cst_83 {dimension_numbers = #tpu.dot_dimension_numbers<[1], [0], [0], [1], [0, 0, 1, 1], [], []>} : vector<16x64xbf16>, vector<64x64xbf16>, vector<16x64xf32> -> vector<16x64xf32>
    %cst_84 = arith.constant 1.000000e-30 : f32
    %154 = vector.broadcast %cst_84 : f32 to vector<16x64xf32>
    %155 = arith.maximumf %153, %154 : vector<16x64xf32>
    %156 = tpu.reciprocal %155 {approx = true} : vector<16x64xf32> -> vector<16x64xf32>
    %157 = arith.mulf %150, %156 : vector<16x64xf32>
    %158 = arith.truncf %157 : vector<16x64xf32> to vector<16x64xbf16>
    %159 = arith.truncf %141 : vector<64x32xf32> to vector<64x32xbf16>
    %cst_85 = arith.constant dense<0.000000e+00> : vector<16x32xf32>
    %160 = tpu.matmul %158, %159, %cst_85 {dimension_numbers = #tpu.dot_dimension_numbers<[1], [0], [0], [1], [0, 0, 1, 1], [], []>} : vector<16x64xbf16>, vector<64x32xbf16>, vector<16x32xf32> -> vector<16x32xf32>
    %161 = arith.truncf %160 : vector<16x32xf32> to vector<16x32xbf16>
    %cst_86 = arith.constant dense<0.000000e+00> : vector<16x32xf32>
    %162 = tpu.matmul %161, %135, %cst_86 {dimension_numbers = #tpu.dot_dimension_numbers<[1], [1], [0], [0], [0, 0, 1, 0], [], []>} : vector<16x32xbf16>, vector<32x32xbf16>, vector<16x32xf32> -> vector<16x32xf32>
    %163 = vector.broadcast %137 : vector<1x32xf32> to vector<16x32xf32>
    %164 = arith.addf %162, %163 : vector<16x32xf32>
    %c1_87 = arith.constant 1 : index
    %c0_88 = arith.constant 0 : index
    %c0_89 = arith.constant 0 : index
    %165 = vector.load %arg16[%c1_87, %c0_88, %c0_89] : memref<2x1x32xf32, #tpu.memory_space<vmem>>, vector<1x1x32xf32>
    %166 = vector.shape_cast %165 : vector<1x1x32xf32> to vector<1x32xf32>
    %c1_90 = arith.constant 1 : index
    %c0_91 = arith.constant 0 : index
    %c0_92 = arith.constant 0 : index
    %167 = vector.load %arg17[%c1_90, %c0_91, %c0_92] : memref<2x1x32xf32, #tpu.memory_space<vmem>>, vector<1x1x32xf32>
    %168 = vector.shape_cast %167 : vector<1x1x32xf32> to vector<1x32xf32>
    %169 = arith.addf %126, %164 : vector<16x32xf32>
    %cst_93 = arith.constant dense<0.000000e+00> : vector<16xf32>
    %170 = vector.multi_reduction <add>, %169, %cst_93 [1] : vector<16x32xf32> to vector<16xf32>
    %171 = vector.shape_cast %170 : vector<16xf32> to vector<16x1xf32>
    %cst_94 = arith.constant 3.200000e+01 : f32
    %172 = vector.broadcast %cst_94 : f32 to vector<16x1xf32>
    %173 = arith.divf %171, %172 : vector<16x1xf32>
    %174 = vector.broadcast %173 : vector<16x1xf32> to vector<16x32xf32>
    %175 = arith.subf %169, %174 : vector<16x32xf32>
    %176 = arith.mulf %175, %175 : vector<16x32xf32>
    %cst_95 = arith.constant dense<0.000000e+00> : vector<16xf32>
    %177 = vector.multi_reduction <add>, %176, %cst_95 [1] : vector<16x32xf32> to vector<16xf32>
    %178 = vector.shape_cast %177 : vector<16xf32> to vector<16x1xf32>
    %cst_96 = arith.constant 3.200000e+01 : f32
    %179 = vector.broadcast %cst_96 : f32 to vector<16x1xf32>
    %180 = arith.divf %178, %179 : vector<16x1xf32>
    %181 = vector.broadcast %173 : vector<16x1xf32> to vector<16x32xf32>
    %182 = arith.subf %169, %181 : vector<16x32xf32>
    %cst_97 = arith.constant 9.99999974E-6 : f32
    %183 = vector.broadcast %cst_97 : f32 to vector<16x1xf32>
    %184 = arith.addf %180, %183 : vector<16x1xf32>
    %185 = math.rsqrt %184 : vector<16x1xf32>
    %186 = vector.broadcast %185 : vector<16x1xf32> to vector<16x32xf32>
    %187 = arith.mulf %182, %186 : vector<16x32xf32>
    %188 = vector.broadcast %166 : vector<1x32xf32> to vector<16x32xf32>
    %189 = arith.mulf %187, %188 : vector<16x32xf32>
    %190 = vector.broadcast %168 : vector<1x32xf32> to vector<16x32xf32>
    %191 = arith.addf %189, %190 : vector<16x32xf32>
    %c1_98 = arith.constant 1 : index
    %c0_99 = arith.constant 0 : index
    %c0_100 = arith.constant 0 : index
    %192 = vector.load %arg18[%c1_98, %c0_99, %c0_100] : memref<2x64x32xbf16, #tpu.memory_space<vmem>>, vector<1x64x32xbf16>
    %193 = vector.shape_cast %192 : vector<1x64x32xbf16> to vector<64x32xbf16>
    %194 = arith.truncf %191 : vector<16x32xf32> to vector<16x32xbf16>
    %cst_101 = arith.constant dense<0.000000e+00> : vector<16x64xf32>
    %195 = tpu.matmul %194, %193, %cst_101 {dimension_numbers = #tpu.dot_dimension_numbers<[1], [1], [0], [0], [0, 0, 1, 0], [], []>} : vector<16x32xbf16>, vector<64x32xbf16>, vector<16x64xf32> -> vector<16x64xf32>
    %c1_102 = arith.constant 1 : index
    %c0_103 = arith.constant 0 : index
    %c0_104 = arith.constant 0 : index
    %196 = vector.load %arg19[%c1_102, %c0_103, %c0_104] : memref<2x1x64xf32, #tpu.memory_space<vmem>>, vector<1x1x64xf32>
    %197 = vector.shape_cast %196 : vector<1x1x64xf32> to vector<1x64xf32>
    %198 = vector.broadcast %197 : vector<1x64xf32> to vector<16x64xf32>
    %199 = arith.addf %195, %198 : vector<16x64xf32>
    %cst_105 = arith.constant 0.000000e+00 : f32
    %200 = vector.broadcast %cst_105 : f32 to vector<16x64xf32>
    %201 = arith.maximumf %199, %200 : vector<16x64xf32>
    %c1_106 = arith.constant 1 : index
    %c0_107 = arith.constant 0 : index
    %c0_108 = arith.constant 0 : index
    %202 = vector.load %arg20[%c1_106, %c0_107, %c0_108] : memref<2x32x64xbf16, #tpu.memory_space<vmem>>, vector<1x32x64xbf16>
    %203 = vector.shape_cast %202 : vector<1x32x64xbf16> to vector<32x64xbf16>
    %204 = arith.truncf %201 : vector<16x64xf32> to vector<16x64xbf16>
    %cst_109 = arith.constant dense<0.000000e+00> : vector<16x32xf32>
    %205 = tpu.matmul %204, %203, %cst_109 {dimension_numbers = #tpu.dot_dimension_numbers<[1], [1], [0], [0], [0, 0, 1, 0], [], []>} : vector<16x64xbf16>, vector<32x64xbf16>, vector<16x32xf32> -> vector<16x32xf32>
    %c1_110 = arith.constant 1 : index
    %c0_111 = arith.constant 0 : index
    %c0_112 = arith.constant 0 : index
    %206 = vector.load %arg21[%c1_110, %c0_111, %c0_112] : memref<2x1x32xf32, #tpu.memory_space<vmem>>, vector<1x1x32xf32>
    %207 = vector.shape_cast %206 : vector<1x1x32xf32> to vector<1x32xf32>
    %208 = vector.broadcast %207 : vector<1x32xf32> to vector<16x32xf32>
    %209 = arith.addf %205, %208 : vector<16x32xf32>
    %c1_113 = arith.constant 1 : index
    %c0_114 = arith.constant 0 : index
    %c0_115 = arith.constant 0 : index
    %210 = vector.load %arg22[%c1_113, %c0_114, %c0_115] : memref<2x1x32xf32, #tpu.memory_space<vmem>>, vector<1x1x32xf32>
    %211 = vector.shape_cast %210 : vector<1x1x32xf32> to vector<1x32xf32>
    %c1_116 = arith.constant 1 : index
    %c0_117 = arith.constant 0 : index
    %c0_118 = arith.constant 0 : index
    %212 = vector.load %arg23[%c1_116, %c0_117, %c0_118] : memref<2x1x32xf32, #tpu.memory_space<vmem>>, vector<1x1x32xf32>
    %213 = vector.shape_cast %212 : vector<1x1x32xf32> to vector<1x32xf32>
    %214 = arith.addf %191, %209 : vector<16x32xf32>
    %cst_119 = arith.constant dense<0.000000e+00> : vector<16xf32>
    %215 = vector.multi_reduction <add>, %214, %cst_119 [1] : vector<16x32xf32> to vector<16xf32>
    %216 = vector.shape_cast %215 : vector<16xf32> to vector<16x1xf32>
    %cst_120 = arith.constant 3.200000e+01 : f32
    %217 = vector.broadcast %cst_120 : f32 to vector<16x1xf32>
    %218 = arith.divf %216, %217 : vector<16x1xf32>
    %219 = vector.broadcast %218 : vector<16x1xf32> to vector<16x32xf32>
    %220 = arith.subf %214, %219 : vector<16x32xf32>
    %221 = arith.mulf %220, %220 : vector<16x32xf32>
    %cst_121 = arith.constant dense<0.000000e+00> : vector<16xf32>
    %222 = vector.multi_reduction <add>, %221, %cst_121 [1] : vector<16x32xf32> to vector<16xf32>
    %223 = vector.shape_cast %222 : vector<16xf32> to vector<16x1xf32>
    %cst_122 = arith.constant 3.200000e+01 : f32
    %224 = vector.broadcast %cst_122 : f32 to vector<16x1xf32>
    %225 = arith.divf %223, %224 : vector<16x1xf32>
    %226 = vector.broadcast %218 : vector<16x1xf32> to vector<16x32xf32>
    %227 = arith.subf %214, %226 : vector<16x32xf32>
    %cst_123 = arith.constant 9.99999974E-6 : f32
    %228 = vector.broadcast %cst_123 : f32 to vector<16x1xf32>
    %229 = arith.addf %225, %228 : vector<16x1xf32>
    %230 = math.rsqrt %229 : vector<16x1xf32>
    %231 = vector.broadcast %230 : vector<16x1xf32> to vector<16x32xf32>
    %232 = arith.mulf %227, %231 : vector<16x32xf32>
    %233 = vector.broadcast %211 : vector<1x32xf32> to vector<16x32xf32>
    %234 = arith.mulf %232, %233 : vector<16x32xf32>
    %235 = vector.broadcast %213 : vector<1x32xf32> to vector<16x32xf32>
    %236 = arith.addf %234, %235 : vector<16x32xf32>
    %c0_124 = arith.constant 0 : index
    %c0_125 = arith.constant 0 : index
    %237 = vector.load %arg25[%c0_124, %c0_125] : memref<128x32xbf16, #tpu.memory_space<vmem>>, vector<128x32xbf16>
    %238 = arith.truncf %236 : vector<16x32xf32> to vector<16x32xbf16>
    %cst_126 = arith.constant dense<0.000000e+00> : vector<16x128xf32>
    %239 = tpu.matmul %238, %237, %cst_126 {dimension_numbers = #tpu.dot_dimension_numbers<[1], [1], [0], [0], [0, 0, 1, 0], [], []>} : vector<16x32xbf16>, vector<128x32xbf16>, vector<16x128xf32> -> vector<16x128xf32>
    %240 = tpu.iota {dimensions = array<i32: 1>} : vector<16x16xi32>
    %c0_127 = arith.constant 0 : index
    %c0_128 = arith.constant 0 : index
    %241 = vector.load %arg1[%c0_127, %c0_128] : memref<16x1xi32, #tpu.memory_space<vmem>>, vector<16x1xi32>
    %242 = vector.broadcast %241 : vector<16x1xi32> to vector<16x16xi32>
    %243 = arith.cmpi eq, %240, %242 : vector<16x16xi32>
    %244 = arith.extui %243 : vector<16x16xi1> to vector<16x16xi32>
    %245 = arith.sitofp %244 : vector<16x16xi32> to vector<16x16xf32>
    %c0_129 = arith.constant 0 : index
    %c0_130 = arith.constant 0 : index
    %246 = vector.load %arg24[%c0_129, %c0_130] : memref<16x32xf32, #tpu.memory_space<vmem>>, vector<16x32xf32>
    %cst_131 = arith.constant dense<0.000000e+00> : vector<16x32xf32>
    %247 = tpu.matmul %245, %246, %cst_131 {dimension_numbers = #tpu.dot_dimension_numbers<[1], [0], [0], [1], [0, 0, 1, 1], [], []>} : vector<16x16xf32>, vector<16x32xf32>, vector<16x32xf32> -> vector<16x32xf32>
    %c0_132 = arith.constant 0 : index
    %c0_133 = arith.constant 0 : index
    %248 = vector.load %arg4[%c0_132, %c0_133] : memref<16x32xf32, #tpu.memory_space<vmem>>, vector<16x32xf32>
    %249 = arith.addf %247, %248 : vector<16x32xf32>
    %c0_134 = arith.constant 0 : index
    %c0_135 = arith.constant 0 : index
    %c0_136 = arith.constant 0 : index
    %250 = vector.load %arg26[%c0_134, %c0_135, %c0_136] : memref<2x96x32xbf16, #tpu.memory_space<vmem>>, vector<1x96x32xbf16>
    %251 = vector.shape_cast %250 : vector<1x96x32xbf16> to vector<96x32xbf16>
    %252 = arith.truncf %249 : vector<16x32xf32> to vector<16x32xbf16>
    %cst_137 = arith.constant dense<0.000000e+00> : vector<16x96xf32>
    %253 = tpu.matmul %252, %251, %cst_137 {dimension_numbers = #tpu.dot_dimension_numbers<[1], [1], [0], [0], [0, 0, 1, 0], [], []>} : vector<16x32xbf16>, vector<96x32xbf16>, vector<16x96xf32> -> vector<16x96xf32>
    %254 = vector.extract_strided_slice %253 {offsets = [0, 0], sizes = [16, 32], strides = [1, 1]} : vector<16x96xf32> to vector<16x32xf32>
    %255 = vector.extract_strided_slice %253 {offsets = [0, 32], sizes = [16, 32], strides = [1, 1]} : vector<16x96xf32> to vector<16x32xf32>
    %256 = vector.extract_strided_slice %253 {offsets = [0, 64], sizes = [16, 32], strides = [1, 1]} : vector<16x96xf32> to vector<16x32xf32>
    %c0_138 = arith.constant 0 : index
    %c0_139 = arith.constant 0 : index
    %c0_140 = arith.constant 0 : index
    %257 = vector.load %arg27[%c0_138, %c0_139, %c0_140] : memref<2x32x32xbf16, #tpu.memory_space<vmem>>, vector<1x32x32xbf16>
    %258 = vector.shape_cast %257 : vector<1x32x32xbf16> to vector<32x32xbf16>
    %c0_141 = arith.constant 0 : index
    %c0_142 = arith.constant 0 : index
    %c0_143 = arith.constant 0 : index
    %259 = vector.load %arg28[%c0_141, %c0_142, %c0_143] : memref<2x1x32xf32, #tpu.memory_space<vmem>>, vector<1x1x32xf32>
    %260 = vector.shape_cast %259 : vector<1x1x32xf32> to vector<1x32xf32>
    %261 = tpu.concatenate %255, %255, %255, %255 in 0 : vector<16x32xf32>, vector<16x32xf32>, vector<16x32xf32>, vector<16x32xf32> -> vector<64x32xf32>
    %262 = arith.mulf %261, %1 : vector<64x32xf32>
    %263 = tpu.concatenate %256, %256, %256, %256 in 0 : vector<16x32xf32>, vector<16x32xf32>, vector<16x32xf32>, vector<16x32xf32> -> vector<64x32xf32>
    %264 = arith.mulf %263, %1 : vector<64x32xf32>
    %265 = arith.truncf %254 : vector<16x32xf32> to vector<16x32xbf16>
    %266 = arith.truncf %262 : vector<64x32xf32> to vector<64x32xbf16>
    %cst_144 = arith.constant dense<0.000000e+00> : vector<16x64xf32>
    %267 = tpu.matmul %265, %266, %cst_144 {dimension_numbers = #tpu.dot_dimension_numbers<[1], [1], [0], [0], [0, 0, 1, 0], [], []>} : vector<16x32xbf16>, vector<64x32xbf16>, vector<16x64xf32> -> vector<16x64xf32>
    %268 = arith.addf %267, %5 : vector<16x64xf32>
    %cst_145 = arith.constant dense<0xFF800000> : vector<16xf32>
    %269 = vector.multi_reduction <maximumf>, %268, %cst_145 [1] : vector<16x64xf32> to vector<16xf32>
    %270 = vector.shape_cast %269 : vector<16xf32> to vector<16x1xf32>
    %271 = vector.broadcast %270 : vector<16x1xf32> to vector<16x64xf32>
    %272 = arith.subf %268, %271 : vector<16x64xf32>
    %273 = math.exp %272 : vector<16x64xf32>
    %274 = arith.truncf %273 : vector<16x64xf32> to vector<16x64xbf16>
    %275 = arith.truncf %3 : vector<64x64xf32> to vector<64x64xbf16>
    %cst_146 = arith.constant dense<0.000000e+00> : vector<16x64xf32>
    %276 = tpu.matmul %274, %275, %cst_146 {dimension_numbers = #tpu.dot_dimension_numbers<[1], [0], [0], [1], [0, 0, 1, 1], [], []>} : vector<16x64xbf16>, vector<64x64xbf16>, vector<16x64xf32> -> vector<16x64xf32>
    %cst_147 = arith.constant 1.000000e-30 : f32
    %277 = vector.broadcast %cst_147 : f32 to vector<16x64xf32>
    %278 = arith.maximumf %276, %277 : vector<16x64xf32>
    %279 = tpu.reciprocal %278 {approx = true} : vector<16x64xf32> -> vector<16x64xf32>
    %280 = arith.mulf %273, %279 : vector<16x64xf32>
    %281 = arith.truncf %280 : vector<16x64xf32> to vector<16x64xbf16>
    %282 = arith.truncf %264 : vector<64x32xf32> to vector<64x32xbf16>
    %cst_148 = arith.constant dense<0.000000e+00> : vector<16x32xf32>
    %283 = tpu.matmul %281, %282, %cst_148 {dimension_numbers = #tpu.dot_dimension_numbers<[1], [0], [0], [1], [0, 0, 1, 1], [], []>} : vector<16x64xbf16>, vector<64x32xbf16>, vector<16x32xf32> -> vector<16x32xf32>
    %284 = arith.truncf %283 : vector<16x32xf32> to vector<16x32xbf16>
    %cst_149 = arith.constant dense<0.000000e+00> : vector<16x32xf32>
    %285 = tpu.matmul %284, %258, %cst_149 {dimension_numbers = #tpu.dot_dimension_numbers<[1], [1], [0], [0], [0, 0, 1, 0], [], []>} : vector<16x32xbf16>, vector<32x32xbf16>, vector<16x32xf32> -> vector<16x32xf32>
    %286 = vector.broadcast %260 : vector<1x32xf32> to vector<16x32xf32>
    %287 = arith.addf %285, %286 : vector<16x32xf32>
    %c0_150 = arith.constant 0 : index
    %c0_151 = arith.constant 0 : index
    %c0_152 = arith.constant 0 : index
    %288 = vector.load %arg29[%c0_150, %c0_151, %c0_152] : memref<2x1x32xf32, #tpu.memory_space<vmem>>, vector<1x1x32xf32>
    %289 = vector.shape_cast %288 : vector<1x1x32xf32> to vector<1x32xf32>
    %c0_153 = arith.constant 0 : index
    %c0_154 = arith.constant 0 : index
    %c0_155 = arith.constant 0 : index
    %290 = vector.load %arg30[%c0_153, %c0_154, %c0_155] : memref<2x1x32xf32, #tpu.memory_space<vmem>>, vector<1x1x32xf32>
    %291 = vector.shape_cast %290 : vector<1x1x32xf32> to vector<1x32xf32>
    %292 = arith.addf %249, %287 : vector<16x32xf32>
    %cst_156 = arith.constant dense<0.000000e+00> : vector<16xf32>
    %293 = vector.multi_reduction <add>, %292, %cst_156 [1] : vector<16x32xf32> to vector<16xf32>
    %294 = vector.shape_cast %293 : vector<16xf32> to vector<16x1xf32>
    %cst_157 = arith.constant 3.200000e+01 : f32
    %295 = vector.broadcast %cst_157 : f32 to vector<16x1xf32>
    %296 = arith.divf %294, %295 : vector<16x1xf32>
    %297 = vector.broadcast %296 : vector<16x1xf32> to vector<16x32xf32>
    %298 = arith.subf %292, %297 : vector<16x32xf32>
    %299 = arith.mulf %298, %298 : vector<16x32xf32>
    %cst_158 = arith.constant dense<0.000000e+00> : vector<16xf32>
    %300 = vector.multi_reduction <add>, %299, %cst_158 [1] : vector<16x32xf32> to vector<16xf32>
    %301 = vector.shape_cast %300 : vector<16xf32> to vector<16x1xf32>
    %cst_159 = arith.constant 3.200000e+01 : f32
    %302 = vector.broadcast %cst_159 : f32 to vector<16x1xf32>
    %303 = arith.divf %301, %302 : vector<16x1xf32>
    %304 = vector.broadcast %296 : vector<16x1xf32> to vector<16x32xf32>
    %305 = arith.subf %292, %304 : vector<16x32xf32>
    %cst_160 = arith.constant 9.99999974E-6 : f32
    %306 = vector.broadcast %cst_160 : f32 to vector<16x1xf32>
    %307 = arith.addf %303, %306 : vector<16x1xf32>
    %308 = math.rsqrt %307 : vector<16x1xf32>
    %309 = vector.broadcast %308 : vector<16x1xf32> to vector<16x32xf32>
    %310 = arith.mulf %305, %309 : vector<16x32xf32>
    %311 = vector.broadcast %289 : vector<1x32xf32> to vector<16x32xf32>
    %312 = arith.mulf %310, %311 : vector<16x32xf32>
    %313 = vector.broadcast %291 : vector<1x32xf32> to vector<16x32xf32>
    %314 = arith.addf %312, %313 : vector<16x32xf32>
    %c0_161 = arith.constant 0 : index
    %c0_162 = arith.constant 0 : index
    %c0_163 = arith.constant 0 : index
    %315 = vector.load %arg31[%c0_161, %c0_162, %c0_163] : memref<2x32x32xbf16, #tpu.memory_space<vmem>>, vector<1x32x32xbf16>
    %316 = vector.shape_cast %315 : vector<1x32x32xbf16> to vector<32x32xbf16>
    %317 = arith.truncf %314 : vector<16x32xf32> to vector<16x32xbf16>
    %cst_164 = arith.constant dense<0.000000e+00> : vector<16x32xf32>
    %318 = tpu.matmul %317, %316, %cst_164 {dimension_numbers = #tpu.dot_dimension_numbers<[1], [1], [0], [0], [0, 0, 1, 0], [], []>} : vector<16x32xbf16>, vector<32x32xbf16>, vector<16x32xf32> -> vector<16x32xf32>
    %319 = vector.extract_strided_slice %239 {offsets = [0, 0], sizes = [16, 32], strides = [1, 1]} : vector<16x128xf32> to vector<16x32xf32>
    %320 = vector.extract_strided_slice %239 {offsets = [0, 32], sizes = [16, 32], strides = [1, 1]} : vector<16x128xf32> to vector<16x32xf32>
    %c0_165 = arith.constant 0 : index
    %c0_166 = arith.constant 0 : index
    %c0_167 = arith.constant 0 : index
    %321 = vector.load %arg32[%c0_165, %c0_166, %c0_167] : memref<2x32x32xbf16, #tpu.memory_space<vmem>>, vector<1x32x32xbf16>
    %322 = vector.shape_cast %321 : vector<1x32x32xbf16> to vector<32x32xbf16>
    %c0_168 = arith.constant 0 : index
    %c0_169 = arith.constant 0 : index
    %c0_170 = arith.constant 0 : index
    %323 = vector.load %arg33[%c0_168, %c0_169, %c0_170] : memref<2x1x32xf32, #tpu.memory_space<vmem>>, vector<1x1x32xf32>
    %324 = vector.shape_cast %323 : vector<1x1x32xf32> to vector<1x32xf32>
    %325 = tpu.concatenate %319, %319, %319, %319 in 0 : vector<16x32xf32>, vector<16x32xf32>, vector<16x32xf32>, vector<16x32xf32> -> vector<64x32xf32>
    %326 = arith.mulf %325, %0 : vector<64x32xf32>
    %327 = tpu.concatenate %320, %320, %320, %320 in 0 : vector<16x32xf32>, vector<16x32xf32>, vector<16x32xf32>, vector<16x32xf32> -> vector<64x32xf32>
    %328 = arith.mulf %327, %0 : vector<64x32xf32>
    %329 = arith.truncf %318 : vector<16x32xf32> to vector<16x32xbf16>
    %330 = arith.truncf %326 : vector<64x32xf32> to vector<64x32xbf16>
    %cst_171 = arith.constant dense<0.000000e+00> : vector<16x64xf32>
    %331 = tpu.matmul %329, %330, %cst_171 {dimension_numbers = #tpu.dot_dimension_numbers<[1], [1], [0], [0], [0, 0, 1, 0], [], []>} : vector<16x32xbf16>, vector<64x32xbf16>, vector<16x64xf32> -> vector<16x64xf32>
    %332 = arith.addf %331, %6 : vector<16x64xf32>
    %cst_172 = arith.constant dense<0xFF800000> : vector<16xf32>
    %333 = vector.multi_reduction <maximumf>, %332, %cst_172 [1] : vector<16x64xf32> to vector<16xf32>
    %334 = vector.shape_cast %333 : vector<16xf32> to vector<16x1xf32>
    %335 = vector.broadcast %334 : vector<16x1xf32> to vector<16x64xf32>
    %336 = arith.subf %332, %335 : vector<16x64xf32>
    %337 = math.exp %336 : vector<16x64xf32>
    %338 = arith.truncf %337 : vector<16x64xf32> to vector<16x64xbf16>
    %339 = arith.truncf %2 : vector<64x64xf32> to vector<64x64xbf16>
    %cst_173 = arith.constant dense<0.000000e+00> : vector<16x64xf32>
    %340 = tpu.matmul %338, %339, %cst_173 {dimension_numbers = #tpu.dot_dimension_numbers<[1], [0], [0], [1], [0, 0, 1, 1], [], []>} : vector<16x64xbf16>, vector<64x64xbf16>, vector<16x64xf32> -> vector<16x64xf32>
    %cst_174 = arith.constant 1.000000e-30 : f32
    %341 = vector.broadcast %cst_174 : f32 to vector<16x64xf32>
    %342 = arith.maximumf %340, %341 : vector<16x64xf32>
    %343 = tpu.reciprocal %342 {approx = true} : vector<16x64xf32> -> vector<16x64xf32>
    %344 = arith.mulf %337, %343 : vector<16x64xf32>
    %345 = arith.truncf %344 : vector<16x64xf32> to vector<16x64xbf16>
    %346 = arith.truncf %328 : vector<64x32xf32> to vector<64x32xbf16>
    %cst_175 = arith.constant dense<0.000000e+00> : vector<16x32xf32>
    %347 = tpu.matmul %345, %346, %cst_175 {dimension_numbers = #tpu.dot_dimension_numbers<[1], [0], [0], [1], [0, 0, 1, 1], [], []>} : vector<16x64xbf16>, vector<64x32xbf16>, vector<16x32xf32> -> vector<16x32xf32>
    %348 = arith.truncf %347 : vector<16x32xf32> to vector<16x32xbf16>
    %cst_176 = arith.constant dense<0.000000e+00> : vector<16x32xf32>
    %349 = tpu.matmul %348, %322, %cst_176 {dimension_numbers = #tpu.dot_dimension_numbers<[1], [1], [0], [0], [0, 0, 1, 0], [], []>} : vector<16x32xbf16>, vector<32x32xbf16>, vector<16x32xf32> -> vector<16x32xf32>
    %350 = vector.broadcast %324 : vector<1x32xf32> to vector<16x32xf32>
    %351 = arith.addf %349, %350 : vector<16x32xf32>
    %c0_177 = arith.constant 0 : index
    %c0_178 = arith.constant 0 : index
    %c0_179 = arith.constant 0 : index
    %352 = vector.load %arg34[%c0_177, %c0_178, %c0_179] : memref<2x1x32xf32, #tpu.memory_space<vmem>>, vector<1x1x32xf32>
    %353 = vector.shape_cast %352 : vector<1x1x32xf32> to vector<1x32xf32>
    %c0_180 = arith.constant 0 : index
    %c0_181 = arith.constant 0 : index
    %c0_182 = arith.constant 0 : index
    %354 = vector.load %arg35[%c0_180, %c0_181, %c0_182] : memref<2x1x32xf32, #tpu.memory_space<vmem>>, vector<1x1x32xf32>
    %355 = vector.shape_cast %354 : vector<1x1x32xf32> to vector<1x32xf32>
    %356 = arith.addf %314, %351 : vector<16x32xf32>
    %cst_183 = arith.constant dense<0.000000e+00> : vector<16xf32>
    %357 = vector.multi_reduction <add>, %356, %cst_183 [1] : vector<16x32xf32> to vector<16xf32>
    %358 = vector.shape_cast %357 : vector<16xf32> to vector<16x1xf32>
    %cst_184 = arith.constant 3.200000e+01 : f32
    %359 = vector.broadcast %cst_184 : f32 to vector<16x1xf32>
    %360 = arith.divf %358, %359 : vector<16x1xf32>
    %361 = vector.broadcast %360 : vector<16x1xf32> to vector<16x32xf32>
    %362 = arith.subf %356, %361 : vector<16x32xf32>
    %363 = arith.mulf %362, %362 : vector<16x32xf32>
    %cst_185 = arith.constant dense<0.000000e+00> : vector<16xf32>
    %364 = vector.multi_reduction <add>, %363, %cst_185 [1] : vector<16x32xf32> to vector<16xf32>
    %365 = vector.shape_cast %364 : vector<16xf32> to vector<16x1xf32>
    %cst_186 = arith.constant 3.200000e+01 : f32
    %366 = vector.broadcast %cst_186 : f32 to vector<16x1xf32>
    %367 = arith.divf %365, %366 : vector<16x1xf32>
    %368 = vector.broadcast %360 : vector<16x1xf32> to vector<16x32xf32>
    %369 = arith.subf %356, %368 : vector<16x32xf32>
    %cst_187 = arith.constant 9.99999974E-6 : f32
    %370 = vector.broadcast %cst_187 : f32 to vector<16x1xf32>
    %371 = arith.addf %367, %370 : vector<16x1xf32>
    %372 = math.rsqrt %371 : vector<16x1xf32>
    %373 = vector.broadcast %372 : vector<16x1xf32> to vector<16x32xf32>
    %374 = arith.mulf %369, %373 : vector<16x32xf32>
    %375 = vector.broadcast %353 : vector<1x32xf32> to vector<16x32xf32>
    %376 = arith.mulf %374, %375 : vector<16x32xf32>
    %377 = vector.broadcast %355 : vector<1x32xf32> to vector<16x32xf32>
    %378 = arith.addf %376, %377 : vector<16x32xf32>
    %c0_188 = arith.constant 0 : index
    %c0_189 = arith.constant 0 : index
    %c0_190 = arith.constant 0 : index
    %379 = vector.load %arg36[%c0_188, %c0_189, %c0_190] : memref<2x64x32xbf16, #tpu.memory_space<vmem>>, vector<1x64x32xbf16>
    %380 = vector.shape_cast %379 : vector<1x64x32xbf16> to vector<64x32xbf16>
    %381 = arith.truncf %378 : vector<16x32xf32> to vector<16x32xbf16>
    %cst_191 = arith.constant dense<0.000000e+00> : vector<16x64xf32>
    %382 = tpu.matmul %381, %380, %cst_191 {dimension_numbers = #tpu.dot_dimension_numbers<[1], [1], [0], [0], [0, 0, 1, 0], [], []>} : vector<16x32xbf16>, vector<64x32xbf16>, vector<16x64xf32> -> vector<16x64xf32>
    %c0_192 = arith.constant 0 : index
    %c0_193 = arith.constant 0 : index
    %c0_194 = arith.constant 0 : index
    %383 = vector.load %arg37[%c0_192, %c0_193, %c0_194] : memref<2x1x64xf32, #tpu.memory_space<vmem>>, vector<1x1x64xf32>
    %384 = vector.shape_cast %383 : vector<1x1x64xf32> to vector<1x64xf32>
    %385 = vector.broadcast %384 : vector<1x64xf32> to vector<16x64xf32>
    %386 = arith.addf %382, %385 : vector<16x64xf32>
    %cst_195 = arith.constant 0.000000e+00 : f32
    %387 = vector.broadcast %cst_195 : f32 to vector<16x64xf32>
    %388 = arith.maximumf %386, %387 : vector<16x64xf32>
    %c0_196 = arith.constant 0 : index
    %c0_197 = arith.constant 0 : index
    %c0_198 = arith.constant 0 : index
    %389 = vector.load %arg38[%c0_196, %c0_197, %c0_198] : memref<2x32x64xbf16, #tpu.memory_space<vmem>>, vector<1x32x64xbf16>
    %390 = vector.shape_cast %389 : vector<1x32x64xbf16> to vector<32x64xbf16>
    %391 = arith.truncf %388 : vector<16x64xf32> to vector<16x64xbf16>
    %cst_199 = arith.constant dense<0.000000e+00> : vector<16x32xf32>
    %392 = tpu.matmul %391, %390, %cst_199 {dimension_numbers = #tpu.dot_dimension_numbers<[1], [1], [0], [0], [0, 0, 1, 0], [], []>} : vector<16x64xbf16>, vector<32x64xbf16>, vector<16x32xf32> -> vector<16x32xf32>
    %c0_200 = arith.constant 0 : index
    %c0_201 = arith.constant 0 : index
    %c0_202 = arith.constant 0 : index
    %393 = vector.load %arg39[%c0_200, %c0_201, %c0_202] : memref<2x1x32xf32, #tpu.memory_space<vmem>>, vector<1x1x32xf32>
    %394 = vector.shape_cast %393 : vector<1x1x32xf32> to vector<1x32xf32>
    %395 = vector.broadcast %394 : vector<1x32xf32> to vector<16x32xf32>
    %396 = arith.addf %392, %395 : vector<16x32xf32>
    %c0_203 = arith.constant 0 : index
    %c0_204 = arith.constant 0 : index
    %c0_205 = arith.constant 0 : index
    %397 = vector.load %arg40[%c0_203, %c0_204, %c0_205] : memref<2x1x32xf32, #tpu.memory_space<vmem>>, vector<1x1x32xf32>
    %398 = vector.shape_cast %397 : vector<1x1x32xf32> to vector<1x32xf32>
    %c0_206 = arith.constant 0 : index
    %c0_207 = arith.constant 0 : index
    %c0_208 = arith.constant 0 : index
    %399 = vector.load %arg41[%c0_206, %c0_207, %c0_208] : memref<2x1x32xf32, #tpu.memory_space<vmem>>, vector<1x1x32xf32>
    %400 = vector.shape_cast %399 : vector<1x1x32xf32> to vector<1x32xf32>
    %401 = arith.addf %378, %396 : vector<16x32xf32>
    %cst_209 = arith.constant dense<0.000000e+00> : vector<16xf32>
    %402 = vector.multi_reduction <add>, %401, %cst_209 [1] : vector<16x32xf32> to vector<16xf32>
    %403 = vector.shape_cast %402 : vector<16xf32> to vector<16x1xf32>
    %cst_210 = arith.constant 3.200000e+01 : f32
    %404 = vector.broadcast %cst_210 : f32 to vector<16x1xf32>
    %405 = arith.divf %403, %404 : vector<16x1xf32>
    %406 = vector.broadcast %405 : vector<16x1xf32> to vector<16x32xf32>
    %407 = arith.subf %401, %406 : vector<16x32xf32>
    %408 = arith.mulf %407, %407 : vector<16x32xf32>
    %cst_211 = arith.constant dense<0.000000e+00> : vector<16xf32>
    %409 = vector.multi_reduction <add>, %408, %cst_211 [1] : vector<16x32xf32> to vector<16xf32>
    %410 = vector.shape_cast %409 : vector<16xf32> to vector<16x1xf32>
    %cst_212 = arith.constant 3.200000e+01 : f32
    %411 = vector.broadcast %cst_212 : f32 to vector<16x1xf32>
    %412 = arith.divf %410, %411 : vector<16x1xf32>
    %413 = vector.broadcast %405 : vector<16x1xf32> to vector<16x32xf32>
    %414 = arith.subf %401, %413 : vector<16x32xf32>
    %cst_213 = arith.constant 9.99999974E-6 : f32
    %415 = vector.broadcast %cst_213 : f32 to vector<16x1xf32>
    %416 = arith.addf %412, %415 : vector<16x1xf32>
    %417 = math.rsqrt %416 : vector<16x1xf32>
    %418 = vector.broadcast %417 : vector<16x1xf32> to vector<16x32xf32>
    %419 = arith.mulf %414, %418 : vector<16x32xf32>
    %420 = vector.broadcast %398 : vector<1x32xf32> to vector<16x32xf32>
    %421 = arith.mulf %419, %420 : vector<16x32xf32>
    %422 = vector.broadcast %400 : vector<1x32xf32> to vector<16x32xf32>
    %423 = arith.addf %421, %422 : vector<16x32xf32>
    %c1_214 = arith.constant 1 : index
    %c0_215 = arith.constant 0 : index
    %c0_216 = arith.constant 0 : index
    %424 = vector.load %arg26[%c1_214, %c0_215, %c0_216] : memref<2x96x32xbf16, #tpu.memory_space<vmem>>, vector<1x96x32xbf16>
    %425 = vector.shape_cast %424 : vector<1x96x32xbf16> to vector<96x32xbf16>
    %426 = arith.truncf %423 : vector<16x32xf32> to vector<16x32xbf16>
    %cst_217 = arith.constant dense<0.000000e+00> : vector<16x96xf32>
    %427 = tpu.matmul %426, %425, %cst_217 {dimension_numbers = #tpu.dot_dimension_numbers<[1], [1], [0], [0], [0, 0, 1, 0], [], []>} : vector<16x32xbf16>, vector<96x32xbf16>, vector<16x96xf32> -> vector<16x96xf32>
    %428 = vector.extract_strided_slice %427 {offsets = [0, 0], sizes = [16, 32], strides = [1, 1]} : vector<16x96xf32> to vector<16x32xf32>
    %429 = vector.extract_strided_slice %427 {offsets = [0, 32], sizes = [16, 32], strides = [1, 1]} : vector<16x96xf32> to vector<16x32xf32>
    %430 = vector.extract_strided_slice %427 {offsets = [0, 64], sizes = [16, 32], strides = [1, 1]} : vector<16x96xf32> to vector<16x32xf32>
    %c1_218 = arith.constant 1 : index
    %c0_219 = arith.constant 0 : index
    %c0_220 = arith.constant 0 : index
    %431 = vector.load %arg27[%c1_218, %c0_219, %c0_220] : memref<2x32x32xbf16, #tpu.memory_space<vmem>>, vector<1x32x32xbf16>
    %432 = vector.shape_cast %431 : vector<1x32x32xbf16> to vector<32x32xbf16>
    %c1_221 = arith.constant 1 : index
    %c0_222 = arith.constant 0 : index
    %c0_223 = arith.constant 0 : index
    %433 = vector.load %arg28[%c1_221, %c0_222, %c0_223] : memref<2x1x32xf32, #tpu.memory_space<vmem>>, vector<1x1x32xf32>
    %434 = vector.shape_cast %433 : vector<1x1x32xf32> to vector<1x32xf32>
    %435 = tpu.concatenate %429, %429, %429, %429 in 0 : vector<16x32xf32>, vector<16x32xf32>, vector<16x32xf32>, vector<16x32xf32> -> vector<64x32xf32>
    %436 = arith.mulf %435, %1 : vector<64x32xf32>
    %437 = tpu.concatenate %430, %430, %430, %430 in 0 : vector<16x32xf32>, vector<16x32xf32>, vector<16x32xf32>, vector<16x32xf32> -> vector<64x32xf32>
    %438 = arith.mulf %437, %1 : vector<64x32xf32>
    %439 = arith.truncf %428 : vector<16x32xf32> to vector<16x32xbf16>
    %440 = arith.truncf %436 : vector<64x32xf32> to vector<64x32xbf16>
    %cst_224 = arith.constant dense<0.000000e+00> : vector<16x64xf32>
    %441 = tpu.matmul %439, %440, %cst_224 {dimension_numbers = #tpu.dot_dimension_numbers<[1], [1], [0], [0], [0, 0, 1, 0], [], []>} : vector<16x32xbf16>, vector<64x32xbf16>, vector<16x64xf32> -> vector<16x64xf32>
    %442 = arith.addf %441, %5 : vector<16x64xf32>
    %cst_225 = arith.constant dense<0xFF800000> : vector<16xf32>
    %443 = vector.multi_reduction <maximumf>, %442, %cst_225 [1] : vector<16x64xf32> to vector<16xf32>
    %444 = vector.shape_cast %443 : vector<16xf32> to vector<16x1xf32>
    %445 = vector.broadcast %444 : vector<16x1xf32> to vector<16x64xf32>
    %446 = arith.subf %442, %445 : vector<16x64xf32>
    %447 = math.exp %446 : vector<16x64xf32>
    %448 = arith.truncf %447 : vector<16x64xf32> to vector<16x64xbf16>
    %449 = arith.truncf %3 : vector<64x64xf32> to vector<64x64xbf16>
    %cst_226 = arith.constant dense<0.000000e+00> : vector<16x64xf32>
    %450 = tpu.matmul %448, %449, %cst_226 {dimension_numbers = #tpu.dot_dimension_numbers<[1], [0], [0], [1], [0, 0, 1, 1], [], []>} : vector<16x64xbf16>, vector<64x64xbf16>, vector<16x64xf32> -> vector<16x64xf32>
    %cst_227 = arith.constant 1.000000e-30 : f32
    %451 = vector.broadcast %cst_227 : f32 to vector<16x64xf32>
    %452 = arith.maximumf %450, %451 : vector<16x64xf32>
    %453 = tpu.reciprocal %452 {approx = true} : vector<16x64xf32> -> vector<16x64xf32>
    %454 = arith.mulf %447, %453 : vector<16x64xf32>
    %455 = arith.truncf %454 : vector<16x64xf32> to vector<16x64xbf16>
    %456 = arith.truncf %438 : vector<64x32xf32> to vector<64x32xbf16>
    %cst_228 = arith.constant dense<0.000000e+00> : vector<16x32xf32>
    %457 = tpu.matmul %455, %456, %cst_228 {dimension_numbers = #tpu.dot_dimension_numbers<[1], [0], [0], [1], [0, 0, 1, 1], [], []>} : vector<16x64xbf16>, vector<64x32xbf16>, vector<16x32xf32> -> vector<16x32xf32>
    %458 = arith.truncf %457 : vector<16x32xf32> to vector<16x32xbf16>
    %cst_229 = arith.constant dense<0.000000e+00> : vector<16x32xf32>
    %459 = tpu.matmul %458, %432, %cst_229 {dimension_numbers = #tpu.dot_dimension_numbers<[1], [1], [0], [0], [0, 0, 1, 0], [], []>} : vector<16x32xbf16>, vector<32x32xbf16>, vector<16x32xf32> -> vector<16x32xf32>
    %460 = vector.broadcast %434 : vector<1x32xf32> to vector<16x32xf32>
    %461 = arith.addf %459, %460 : vector<16x32xf32>
    %c1_230 = arith.constant 1 : index
    %c0_231 = arith.constant 0 : index
    %c0_232 = arith.constant 0 : index
    %462 = vector.load %arg29[%c1_230, %c0_231, %c0_232] : memref<2x1x32xf32, #tpu.memory_space<vmem>>, vector<1x1x32xf32>
    %463 = vector.shape_cast %462 : vector<1x1x32xf32> to vector<1x32xf32>
    %c1_233 = arith.constant 1 : index
    %c0_234 = arith.constant 0 : index
    %c0_235 = arith.constant 0 : index
    %464 = vector.load %arg30[%c1_233, %c0_234, %c0_235] : memref<2x1x32xf32, #tpu.memory_space<vmem>>, vector<1x1x32xf32>
    %465 = vector.shape_cast %464 : vector<1x1x32xf32> to vector<1x32xf32>
    %466 = arith.addf %423, %461 : vector<16x32xf32>
    %cst_236 = arith.constant dense<0.000000e+00> : vector<16xf32>
    %467 = vector.multi_reduction <add>, %466, %cst_236 [1] : vector<16x32xf32> to vector<16xf32>
    %468 = vector.shape_cast %467 : vector<16xf32> to vector<16x1xf32>
    %cst_237 = arith.constant 3.200000e+01 : f32
    %469 = vector.broadcast %cst_237 : f32 to vector<16x1xf32>
    %470 = arith.divf %468, %469 : vector<16x1xf32>
    %471 = vector.broadcast %470 : vector<16x1xf32> to vector<16x32xf32>
    %472 = arith.subf %466, %471 : vector<16x32xf32>
    %473 = arith.mulf %472, %472 : vector<16x32xf32>
    %cst_238 = arith.constant dense<0.000000e+00> : vector<16xf32>
    %474 = vector.multi_reduction <add>, %473, %cst_238 [1] : vector<16x32xf32> to vector<16xf32>
    %475 = vector.shape_cast %474 : vector<16xf32> to vector<16x1xf32>
    %cst_239 = arith.constant 3.200000e+01 : f32
    %476 = vector.broadcast %cst_239 : f32 to vector<16x1xf32>
    %477 = arith.divf %475, %476 : vector<16x1xf32>
    %478 = vector.broadcast %470 : vector<16x1xf32> to vector<16x32xf32>
    %479 = arith.subf %466, %478 : vector<16x32xf32>
    %cst_240 = arith.constant 9.99999974E-6 : f32
    %480 = vector.broadcast %cst_240 : f32 to vector<16x1xf32>
    %481 = arith.addf %477, %480 : vector<16x1xf32>
    %482 = math.rsqrt %481 : vector<16x1xf32>
    %483 = vector.broadcast %482 : vector<16x1xf32> to vector<16x32xf32>
    %484 = arith.mulf %479, %483 : vector<16x32xf32>
    %485 = vector.broadcast %463 : vector<1x32xf32> to vector<16x32xf32>
    %486 = arith.mulf %484, %485 : vector<16x32xf32>
    %487 = vector.broadcast %465 : vector<1x32xf32> to vector<16x32xf32>
    %488 = arith.addf %486, %487 : vector<16x32xf32>
    %c1_241 = arith.constant 1 : index
    %c0_242 = arith.constant 0 : index
    %c0_243 = arith.constant 0 : index
    %489 = vector.load %arg31[%c1_241, %c0_242, %c0_243] : memref<2x32x32xbf16, #tpu.memory_space<vmem>>, vector<1x32x32xbf16>
    %490 = vector.shape_cast %489 : vector<1x32x32xbf16> to vector<32x32xbf16>
    %491 = arith.truncf %488 : vector<16x32xf32> to vector<16x32xbf16>
    %cst_244 = arith.constant dense<0.000000e+00> : vector<16x32xf32>
    %492 = tpu.matmul %491, %490, %cst_244 {dimension_numbers = #tpu.dot_dimension_numbers<[1], [1], [0], [0], [0, 0, 1, 0], [], []>} : vector<16x32xbf16>, vector<32x32xbf16>, vector<16x32xf32> -> vector<16x32xf32>
    %493 = vector.extract_strided_slice %239 {offsets = [0, 64], sizes = [16, 32], strides = [1, 1]} : vector<16x128xf32> to vector<16x32xf32>
    %494 = vector.extract_strided_slice %239 {offsets = [0, 96], sizes = [16, 32], strides = [1, 1]} : vector<16x128xf32> to vector<16x32xf32>
    %c1_245 = arith.constant 1 : index
    %c0_246 = arith.constant 0 : index
    %c0_247 = arith.constant 0 : index
    %495 = vector.load %arg32[%c1_245, %c0_246, %c0_247] : memref<2x32x32xbf16, #tpu.memory_space<vmem>>, vector<1x32x32xbf16>
    %496 = vector.shape_cast %495 : vector<1x32x32xbf16> to vector<32x32xbf16>
    %c1_248 = arith.constant 1 : index
    %c0_249 = arith.constant 0 : index
    %c0_250 = arith.constant 0 : index
    %497 = vector.load %arg33[%c1_248, %c0_249, %c0_250] : memref<2x1x32xf32, #tpu.memory_space<vmem>>, vector<1x1x32xf32>
    %498 = vector.shape_cast %497 : vector<1x1x32xf32> to vector<1x32xf32>
    %499 = tpu.concatenate %493, %493, %493, %493 in 0 : vector<16x32xf32>, vector<16x32xf32>, vector<16x32xf32>, vector<16x32xf32> -> vector<64x32xf32>
    %500 = arith.mulf %499, %0 : vector<64x32xf32>
    %501 = tpu.concatenate %494, %494, %494, %494 in 0 : vector<16x32xf32>, vector<16x32xf32>, vector<16x32xf32>, vector<16x32xf32> -> vector<64x32xf32>
    %502 = arith.mulf %501, %0 : vector<64x32xf32>
    %503 = arith.truncf %492 : vector<16x32xf32> to vector<16x32xbf16>
    %504 = arith.truncf %500 : vector<64x32xf32> to vector<64x32xbf16>
    %cst_251 = arith.constant dense<0.000000e+00> : vector<16x64xf32>
    %505 = tpu.matmul %503, %504, %cst_251 {dimension_numbers = #tpu.dot_dimension_numbers<[1], [1], [0], [0], [0, 0, 1, 0], [], []>} : vector<16x32xbf16>, vector<64x32xbf16>, vector<16x64xf32> -> vector<16x64xf32>
    %506 = arith.addf %505, %6 : vector<16x64xf32>
    %cst_252 = arith.constant dense<0xFF800000> : vector<16xf32>
    %507 = vector.multi_reduction <maximumf>, %506, %cst_252 [1] : vector<16x64xf32> to vector<16xf32>
    %508 = vector.shape_cast %507 : vector<16xf32> to vector<16x1xf32>
    %509 = vector.broadcast %508 : vector<16x1xf32> to vector<16x64xf32>
    %510 = arith.subf %506, %509 : vector<16x64xf32>
    %511 = math.exp %510 : vector<16x64xf32>
    %512 = arith.truncf %511 : vector<16x64xf32> to vector<16x64xbf16>
    %513 = arith.truncf %2 : vector<64x64xf32> to vector<64x64xbf16>
    %cst_253 = arith.constant dense<0.000000e+00> : vector<16x64xf32>
    %514 = tpu.matmul %512, %513, %cst_253 {dimension_numbers = #tpu.dot_dimension_numbers<[1], [0], [0], [1], [0, 0, 1, 1], [], []>} : vector<16x64xbf16>, vector<64x64xbf16>, vector<16x64xf32> -> vector<16x64xf32>
    %cst_254 = arith.constant 1.000000e-30 : f32
    %515 = vector.broadcast %cst_254 : f32 to vector<16x64xf32>
    %516 = arith.maximumf %514, %515 : vector<16x64xf32>
    %517 = tpu.reciprocal %516 {approx = true} : vector<16x64xf32> -> vector<16x64xf32>
    %518 = arith.mulf %511, %517 : vector<16x64xf32>
    %519 = arith.truncf %518 : vector<16x64xf32> to vector<16x64xbf16>
    %520 = arith.truncf %502 : vector<64x32xf32> to vector<64x32xbf16>
    %cst_255 = arith.constant dense<0.000000e+00> : vector<16x32xf32>
    %521 = tpu.matmul %519, %520, %cst_255 {dimension_numbers = #tpu.dot_dimension_numbers<[1], [0], [0], [1], [0, 0, 1, 1], [], []>} : vector<16x64xbf16>, vector<64x32xbf16>, vector<16x32xf32> -> vector<16x32xf32>
    %522 = arith.truncf %521 : vector<16x32xf32> to vector<16x32xbf16>
    %cst_256 = arith.constant dense<0.000000e+00> : vector<16x32xf32>
    %523 = tpu.matmul %522, %496, %cst_256 {dimension_numbers = #tpu.dot_dimension_numbers<[1], [1], [0], [0], [0, 0, 1, 0], [], []>} : vector<16x32xbf16>, vector<32x32xbf16>, vector<16x32xf32> -> vector<16x32xf32>
    %524 = vector.broadcast %498 : vector<1x32xf32> to vector<16x32xf32>
    %525 = arith.addf %523, %524 : vector<16x32xf32>
    %c1_257 = arith.constant 1 : index
    %c0_258 = arith.constant 0 : index
    %c0_259 = arith.constant 0 : index
    %526 = vector.load %arg34[%c1_257, %c0_258, %c0_259] : memref<2x1x32xf32, #tpu.memory_space<vmem>>, vector<1x1x32xf32>
    %527 = vector.shape_cast %526 : vector<1x1x32xf32> to vector<1x32xf32>
    %c1_260 = arith.constant 1 : index
    %c0_261 = arith.constant 0 : index
    %c0_262 = arith.constant 0 : index
    %528 = vector.load %arg35[%c1_260, %c0_261, %c0_262] : memref<2x1x32xf32, #tpu.memory_space<vmem>>, vector<1x1x32xf32>
    %529 = vector.shape_cast %528 : vector<1x1x32xf32> to vector<1x32xf32>
    %530 = arith.addf %488, %525 : vector<16x32xf32>
    %cst_263 = arith.constant dense<0.000000e+00> : vector<16xf32>
    %531 = vector.multi_reduction <add>, %530, %cst_263 [1] : vector<16x32xf32> to vector<16xf32>
    %532 = vector.shape_cast %531 : vector<16xf32> to vector<16x1xf32>
    %cst_264 = arith.constant 3.200000e+01 : f32
    %533 = vector.broadcast %cst_264 : f32 to vector<16x1xf32>
    %534 = arith.divf %532, %533 : vector<16x1xf32>
    %535 = vector.broadcast %534 : vector<16x1xf32> to vector<16x32xf32>
    %536 = arith.subf %530, %535 : vector<16x32xf32>
    %537 = arith.mulf %536, %536 : vector<16x32xf32>
    %cst_265 = arith.constant dense<0.000000e+00> : vector<16xf32>
    %538 = vector.multi_reduction <add>, %537, %cst_265 [1] : vector<16x32xf32> to vector<16xf32>
    %539 = vector.shape_cast %538 : vector<16xf32> to vector<16x1xf32>
    %cst_266 = arith.constant 3.200000e+01 : f32
    %540 = vector.broadcast %cst_266 : f32 to vector<16x1xf32>
    %541 = arith.divf %539, %540 : vector<16x1xf32>
    %542 = vector.broadcast %534 : vector<16x1xf32> to vector<16x32xf32>
    %543 = arith.subf %530, %542 : vector<16x32xf32>
    %cst_267 = arith.constant 9.99999974E-6 : f32
    %544 = vector.broadcast %cst_267 : f32 to vector<16x1xf32>
    %545 = arith.addf %541, %544 : vector<16x1xf32>
    %546 = math.rsqrt %545 : vector<16x1xf32>
    %547 = vector.broadcast %546 : vector<16x1xf32> to vector<16x32xf32>
    %548 = arith.mulf %543, %547 : vector<16x32xf32>
    %549 = vector.broadcast %527 : vector<1x32xf32> to vector<16x32xf32>
    %550 = arith.mulf %548, %549 : vector<16x32xf32>
    %551 = vector.broadcast %529 : vector<1x32xf32> to vector<16x32xf32>
    %552 = arith.addf %550, %551 : vector<16x32xf32>
    %c1_268 = arith.constant 1 : index
    %c0_269 = arith.constant 0 : index
    %c0_270 = arith.constant 0 : index
    %553 = vector.load %arg36[%c1_268, %c0_269, %c0_270] : memref<2x64x32xbf16, #tpu.memory_space<vmem>>, vector<1x64x32xbf16>
    %554 = vector.shape_cast %553 : vector<1x64x32xbf16> to vector<64x32xbf16>
    %555 = arith.truncf %552 : vector<16x32xf32> to vector<16x32xbf16>
    %cst_271 = arith.constant dense<0.000000e+00> : vector<16x64xf32>
    %556 = tpu.matmul %555, %554, %cst_271 {dimension_numbers = #tpu.dot_dimension_numbers<[1], [1], [0], [0], [0, 0, 1, 0], [], []>} : vector<16x32xbf16>, vector<64x32xbf16>, vector<16x64xf32> -> vector<16x64xf32>
    %c1_272 = arith.constant 1 : index
    %c0_273 = arith.constant 0 : index
    %c0_274 = arith.constant 0 : index
    %557 = vector.load %arg37[%c1_272, %c0_273, %c0_274] : memref<2x1x64xf32, #tpu.memory_space<vmem>>, vector<1x1x64xf32>
    %558 = vector.shape_cast %557 : vector<1x1x64xf32> to vector<1x64xf32>
    %559 = vector.broadcast %558 : vector<1x64xf32> to vector<16x64xf32>
    %560 = arith.addf %556, %559 : vector<16x64xf32>
    %cst_275 = arith.constant 0.000000e+00 : f32
    %561 = vector.broadcast %cst_275 : f32 to vector<16x64xf32>
    %562 = arith.maximumf %560, %561 : vector<16x64xf32>
    %c1_276 = arith.constant 1 : index
    %c0_277 = arith.constant 0 : index
    %c0_278 = arith.constant 0 : index
    %563 = vector.load %arg38[%c1_276, %c0_277, %c0_278] : memref<2x32x64xbf16, #tpu.memory_space<vmem>>, vector<1x32x64xbf16>
    %564 = vector.shape_cast %563 : vector<1x32x64xbf16> to vector<32x64xbf16>
    %565 = arith.truncf %562 : vector<16x64xf32> to vector<16x64xbf16>
    %cst_279 = arith.constant dense<0.000000e+00> : vector<16x32xf32>
    %566 = tpu.matmul %565, %564, %cst_279 {dimension_numbers = #tpu.dot_dimension_numbers<[1], [1], [0], [0], [0, 0, 1, 0], [], []>} : vector<16x64xbf16>, vector<32x64xbf16>, vector<16x32xf32> -> vector<16x32xf32>
    %c1_280 = arith.constant 1 : index
    %c0_281 = arith.constant 0 : index
    %c0_282 = arith.constant 0 : index
    %567 = vector.load %arg39[%c1_280, %c0_281, %c0_282] : memref<2x1x32xf32, #tpu.memory_space<vmem>>, vector<1x1x32xf32>
    %568 = vector.shape_cast %567 : vector<1x1x32xf32> to vector<1x32xf32>
    %569 = vector.broadcast %568 : vector<1x32xf32> to vector<16x32xf32>
    %570 = arith.addf %566, %569 : vector<16x32xf32>
    %c1_283 = arith.constant 1 : index
    %c0_284 = arith.constant 0 : index
    %c0_285 = arith.constant 0 : index
    %571 = vector.load %arg40[%c1_283, %c0_284, %c0_285] : memref<2x1x32xf32, #tpu.memory_space<vmem>>, vector<1x1x32xf32>
    %572 = vector.shape_cast %571 : vector<1x1x32xf32> to vector<1x32xf32>
    %c1_286 = arith.constant 1 : index
    %c0_287 = arith.constant 0 : index
    %c0_288 = arith.constant 0 : index
    %573 = vector.load %arg41[%c1_286, %c0_287, %c0_288] : memref<2x1x32xf32, #tpu.memory_space<vmem>>, vector<1x1x32xf32>
    %574 = vector.shape_cast %573 : vector<1x1x32xf32> to vector<1x32xf32>
    %575 = arith.addf %552, %570 : vector<16x32xf32>
    %cst_289 = arith.constant dense<0.000000e+00> : vector<16xf32>
    %576 = vector.multi_reduction <add>, %575, %cst_289 [1] : vector<16x32xf32> to vector<16xf32>
    %577 = vector.shape_cast %576 : vector<16xf32> to vector<16x1xf32>
    %cst_290 = arith.constant 3.200000e+01 : f32
    %578 = vector.broadcast %cst_290 : f32 to vector<16x1xf32>
    %579 = arith.divf %577, %578 : vector<16x1xf32>
    %580 = vector.broadcast %579 : vector<16x1xf32> to vector<16x32xf32>
    %581 = arith.subf %575, %580 : vector<16x32xf32>
    %582 = arith.mulf %581, %581 : vector<16x32xf32>
    %cst_291 = arith.constant dense<0.000000e+00> : vector<16xf32>
    %583 = vector.multi_reduction <add>, %582, %cst_291 [1] : vector<16x32xf32> to vector<16xf32>
    %584 = vector.shape_cast %583 : vector<16xf32> to vector<16x1xf32>
    %cst_292 = arith.constant 3.200000e+01 : f32
    %585 = vector.broadcast %cst_292 : f32 to vector<16x1xf32>
    %586 = arith.divf %584, %585 : vector<16x1xf32>
    %587 = vector.broadcast %579 : vector<16x1xf32> to vector<16x32xf32>
    %588 = arith.subf %575, %587 : vector<16x32xf32>
    %cst_293 = arith.constant 9.99999974E-6 : f32
    %589 = vector.broadcast %cst_293 : f32 to vector<16x1xf32>
    %590 = arith.addf %586, %589 : vector<16x1xf32>
    %591 = math.rsqrt %590 : vector<16x1xf32>
    %592 = vector.broadcast %591 : vector<16x1xf32> to vector<16x32xf32>
    %593 = arith.mulf %588, %592 : vector<16x32xf32>
    %594 = vector.broadcast %572 : vector<1x32xf32> to vector<16x32xf32>
    %595 = arith.mulf %593, %594 : vector<16x32xf32>
    %596 = vector.broadcast %574 : vector<1x32xf32> to vector<16x32xf32>
    %597 = arith.addf %595, %596 : vector<16x32xf32>
    %c0_294 = arith.constant 0 : index
    %c0_295 = arith.constant 0 : index
    %598 = vector.load %arg42[%c0_294, %c0_295] : memref<16x32xbf16, #tpu.memory_space<vmem>>, vector<16x32xbf16>
    %599 = arith.truncf %597 : vector<16x32xf32> to vector<16x32xbf16>
    %cst_296 = arith.constant dense<0.000000e+00> : vector<16x16xf32>
    %600 = tpu.matmul %599, %598, %cst_296 {dimension_numbers = #tpu.dot_dimension_numbers<[1], [1], [0], [0], [0, 0, 1, 0], [], []>} : vector<16x32xbf16>, vector<16x32xbf16>, vector<16x16xf32> -> vector<16x16xf32>
    %c0_297 = arith.constant 0 : index
    %c0_298 = arith.constant 0 : index
    %601 = vector.load %arg43[%c0_297, %c0_298] : memref<1x16xf32, #tpu.memory_space<vmem>>, vector<1x16xf32>
    %602 = vector.broadcast %601 : vector<1x16xf32> to vector<16x16xf32>
    %603 = arith.addf %600, %602 : vector<16x16xf32>
    %cst_299 = arith.constant dense<0xFF800000> : vector<16xf32>
    %604 = vector.multi_reduction <maximumf>, %603, %cst_299 [1] : vector<16x16xf32> to vector<16xf32>
    %605 = vector.shape_cast %604 : vector<16xf32> to vector<16x1xf32>
    %606 = vector.broadcast %605 : vector<16x1xf32> to vector<16x16xf32>
    %607 = arith.subf %603, %606 : vector<16x16xf32>
    %608 = math.exp %607 : vector<16x16xf32>
    %cst_300 = arith.constant dense<0.000000e+00> : vector<16xf32>
    %609 = vector.multi_reduction <add>, %608, %cst_300 [1] : vector<16x16xf32> to vector<16xf32>
    %610 = vector.shape_cast %609 : vector<16xf32> to vector<16x1xf32>
    %611 = math.log %610 : vector<16x1xf32>
    %612 = arith.addf %611, %605 : vector<16x1xf32>
    %c0_301 = arith.constant 0 : index
    %c0_302 = arith.constant 0 : index
    %613 = vector.load %arg2[%c0_301, %c0_302] : memref<16x1xi32, #tpu.memory_space<vmem>>, vector<16x1xi32>
    %614 = tpu.iota {dimensions = array<i32: 1>} : vector<16x16xi32>
    %615 = vector.broadcast %613 : vector<16x1xi32> to vector<16x16xi32>
    %616 = arith.cmpi eq, %614, %615 : vector<16x16xi32>
    %cst_303 = arith.constant 0.000000e+00 : f32
    %617 = vector.broadcast %cst_303 : f32 to vector<16x16xf32>
    %618 = arith.select %616, %603, %617 : vector<16x16xi1>, vector<16x16xf32>
    %cst_304 = arith.constant dense<0.000000e+00> : vector<16xf32>
    %619 = vector.multi_reduction <add>, %618, %cst_304 [1] : vector<16x16xf32> to vector<16xf32>
    %620 = vector.shape_cast %619 : vector<16xf32> to vector<16x1xf32>
    %c0_i32 = arith.constant 0 : i32
    %621 = vector.broadcast %c0_i32 : i32 to vector<16x1xi32>
    %622 = arith.cmpi ne, %613, %621 : vector<16x1xi32>
    %623 = arith.extui %622 : vector<16x1xi1> to vector<16x1xi32>
    %624 = arith.sitofp %623 : vector<16x1xi32> to vector<16x1xf32>
    %625 = arith.subf %612, %620 : vector<16x1xf32>
    %626 = arith.mulf %625, %624 : vector<16x1xf32>
    %cst_305 = arith.constant dense<0.000000e+00> : vector<1xf32>
    %627 = vector.multi_reduction <add>, %626, %cst_305 [0] : vector<16x1xf32> to vector<1xf32>
    %628 = vector.shape_cast %627 : vector<1xf32> to vector<1x1xf32>
    %cst_306 = arith.constant dense<0.000000e+00> : vector<1xf32>
    %629 = vector.multi_reduction <add>, %624, %cst_306 [0] : vector<16x1xf32> to vector<1xf32>
    %630 = vector.shape_cast %629 : vector<1xf32> to vector<1x1xf32>
    %cst_307 = arith.constant 1.000000e+00 : f32
    %631 = vector.broadcast %cst_307 : f32 to vector<1x1xf32>
    %632 = arith.maximumf %630, %631 : vector<1x1xf32>
    %633 = arith.divf %628, %632 : vector<1x1xf32>
    %c0_308 = arith.constant 0 : index
    %c0_309 = arith.constant 0 : index
    %634 = vector.load %arg44[%c0_308, %c0_309] : memref<1x1xf32, #tpu.memory_space<vmem>>, vector<1x1xf32>
    tpu.vector_store %arg44[%c0_308, %c0_309], %633 {strides = array<i32>} : memref<1x1xf32, #tpu.memory_space<vmem>>, vector<1x1xf32>,
    return
  }
}

</mosaic_0001>

<llo_original>
// kernel: nmt_loss.1
$region0: #{nmt_loss.1}
  #allocation0 [shape = 'u32[]', space=smem, size = 0x4, offset = 0x4, fixed_abs, tag = 'smem constant byte address 0x4 - core index']
  #allocation1 [shape = 'u32[144,128]{1,0:T(1,128)}', space=vmem, size = 0x12000, scoped, tag = 'internal scratch']
  %s0 = inlined_call_operand.smem [shape: u32[45], index: -1, kind: input, shape index: {}]
  %s1 = sld [smem:[%s0]]
  %s2 = scalar_lea.smem %s0, 1
  %s3 = sld [smem:[%s2]]
  %s4 = scalar_lea.smem %s0, 2
  %s5 = sld [smem:[%s4]]
  %s6 = scalar_lea.smem %s0, 3
  %s7 = sld [smem:[%s6]]
  %s8 = scalar_lea.smem %s0, 4
  %s9 = sld [smem:[%s8]]
  %s10 = scalar_lea.smem %s0, 5
  %s11 = sld [smem:[%s10]]
  %s12 = scalar_lea.smem %s0, 6
  %s13 = sld [smem:[%s12]]
  %s14 = scalar_lea.smem %s0, 7
  %s15 = sld [smem:[%s14]]
  %s16 = scalar_lea.smem %s0, 8
  %s17 = sld [smem:[%s16]]
  %s18 = scalar_lea.smem %s0, 9
  %s19 = sld [smem:[%s18]]
  %s20 = scalar_lea.smem %s0, 10
  %s21 = sld [smem:[%s20]]
  %s22 = scalar_lea.smem %s0, 11
  %s23 = sld [smem:[%s22]]
  %s24 = scalar_lea.smem %s0, 12
  %s25 = sld [smem:[%s24]]
  %s26 = scalar_lea.smem %s0, 13
  %s27 = sld [smem:[%s26]]
  %s28 = scalar_lea.smem %s0, 14
  %s29 = sld [smem:[%s28]]
  %s30 = scalar_lea.smem %s0, 15
  %s31 = sld [smem:[%s30]]
  %s32 = scalar_lea.smem %s0, 16
  %s33 = sld [smem:[%s32]]
  %s34 = scalar_lea.smem %s0, 17
  %s35 = sld [smem:[%s34]]
  %s36 = scalar_lea.smem %s0, 18
  %s37 = sld [smem:[%s36]]
  %s38 = scalar_lea.smem %s0, 19
  %s39 = sld [smem:[%s38]]
  %s40 = scalar_lea.smem %s0, 20
  %s41 = sld [smem:[%s40]]
  %s42 = scalar_lea.smem %s0, 21
  %s43 = sld [smem:[%s42]]
  %s44 = scalar_lea.smem %s0, 22
  %s45 = sld [smem:[%s44]]
  %s46 = scalar_lea.smem %s0, 23
  %s47 = sld [smem:[%s46]]
  %s48 = scalar_lea.smem %s0, 24
  %s49 = sld [smem:[%s48]]
  %s50 = scalar_lea.smem %s0, 25
  %s51 = sld [smem:[%s50]]
  %s52 = scalar_lea.smem %s0, 26
  %s53 = sld [smem:[%s52]]
  %s54 = scalar_lea.smem %s0, 27
  %s55 = sld [smem:[%s54]]
  %s56 = scalar_lea.smem %s0, 28
  %s57 = sld [smem:[%s56]]
  %s58 = scalar_lea.smem %s0, 29
  %s59 = sld [smem:[%s58]]
  %s60 = scalar_lea.smem %s0, 30
  %s61 = sld [smem:[%s60]]
  %s62 = scalar_lea.smem %s0, 31
  %s63 = sld [smem:[%s62]]
  %s64 = scalar_lea.smem %s0, 32
  %s65 = sld [smem:[%s64]]
  %s66 = scalar_lea.smem %s0, 33
  %s67 = sld [smem:[%s66]]
  %s68 = scalar_lea.smem %s0, 34
  %s69 = sld [smem:[%s68]]
  %s70 = scalar_lea.smem %s0, 35
  %s71 = sld [smem:[%s70]]
  %s72 = scalar_lea.smem %s0, 36
  %s73 = sld [smem:[%s72]]
  %s74 = scalar_lea.smem %s0, 37
  %s75 = sld [smem:[%s74]]
  %s76 = scalar_lea.smem %s0, 38
  %s77 = sld [smem:[%s76]]
  %s78 = scalar_lea.smem %s0, 39
  %s79 = sld [smem:[%s78]]
  %s80 = scalar_lea.smem %s0, 40
  %s81 = sld [smem:[%s80]]
  %s82 = scalar_lea.smem %s0, 41
  %s83 = sld [smem:[%s82]]
  %s84 = scalar_lea.smem %s0, 42
  %s85 = sld [smem:[%s84]]
  %s86 = scalar_lea.smem %s0, 43
  %s87 = sld [smem:[%s86]]
  %s88 = scalar_lea.smem %s0, 44
  %s89 = sld [smem:[%s88]]
  %s90 = sld [smem:[#allocation0]]
  $region186: #{nmt_loss.1} parent=0
    _
  %s92 = ssub.s32 1, %s90
  %s93 = scalar_select 0, %s92, %s90
  $region1: #{nmt_loss.1} parent=0
    #allocation2 [shape = 'u8[512]{0}', space=vmem, size = 0x400, scoped, tag = 'output window, operand 0, single buffered']
    #allocation3 [shape = 's32[1]{0}', space=sflag, size = 0x4, scoped, tag = 'scoped memory for nmt_loss.1']
    %94 = vsyncpa [#allocation3], 0
    // Predicated region
    $region2: #{nmt_loss.1} parent=1 // pred_check
      _
    $region3: #{nmt_loss.1} parent=1 // pred_check_branch
      %96 = sbr.rel (0) target = $region5
    $region4: #{nmt_loss.1} parent=1 // pred_region
      _
    $region5: #{nmt_loss.1} parent=1 // pred_fallthru
      _
    // Predicated region
    $region6: #{nmt_loss.1} parent=1 // pred_check
      _
    $region7: #{nmt_loss.1} parent=1 // pred_check_branch
      %98 = sbr.rel (0) target = $region9
    $region8: #{nmt_loss.1} parent=1 // pred_region
      _
    $region9: #{nmt_loss.1} parent=1 // pred_fallthru
      _
    // Predicated region
    $region10: #{nmt_loss.1} parent=1 // pred_check
      _
    $region11: #{nmt_loss.1} parent=1 // pred_check_branch
      %100 = sbr.rel (0) target = $region13
    $region12: #{nmt_loss.1} parent=1 // pred_region
      _
    $region13: #{nmt_loss.1} parent=1 // pred_fallthru
      _
    // Predicated region
    $region14: #{nmt_loss.1} parent=1 // pred_check
      _
    $region15: #{nmt_loss.1} parent=1 // pred_check_branch
      %102 = sbr.rel (0) target = $region17
    $region16: #{nmt_loss.1} parent=1 // pred_region
      _
    $region17: #{nmt_loss.1} parent=1 // pred_fallthru
      _
    // Predicated region
    $region18: #{nmt_loss.1} parent=1 // pred_check
      _
    $region19: #{nmt_loss.1} parent=1 // pred_check_branch
      %104 = sbr.rel (0) target = $region21
    $region20: #{nmt_loss.1} parent=1 // pred_region
      _
    $region21: #{nmt_loss.1} parent=1 // pred_fallthru
      _
    // Predicated region
    $region22: #{nmt_loss.1} parent=1 // pred_check
      _
    $region23: #{nmt_loss.1} parent=1 // pred_check_branch
      %106 = sbr.rel (0) target = $region25
    $region24: #{nmt_loss.1} parent=1 // pred_region
      _
    $region25: #{nmt_loss.1} parent=1 // pred_fallthru
      _
    // Predicated region
    $region26: #{nmt_loss.1} parent=1 // pred_check
      _
    $region27: #{nmt_loss.1} parent=1 // pred_check_branch
      %108 = sbr.rel (0) target = $region29
    $region28: #{nmt_loss.1} parent=1 // pred_region
      _
    $region29: #{nmt_loss.1} parent=1 // pred_fallthru
      _
    // Predicated region
    $region30: #{nmt_loss.1} parent=1 // pred_check
      _
    $region31: #{nmt_loss.1} parent=1 // pred_check_branch
      %110 = sbr.rel (0) target = $region33
    $region32: #{nmt_loss.1} parent=1 // pred_region
      _
    $region33: #{nmt_loss.1} parent=1 // pred_fallthru
      _
    // Predicated region
    $region34: #{nmt_loss.1} parent=1 // pred_check
      _
    $region35: #{nmt_loss.1} parent=1 // pred_check_branch
      %112 = sbr.rel (0) target = $region37
    $region36: #{nmt_loss.1} parent=1 // pred_region
      _
    $region37: #{nmt_loss.1} parent=1 // pred_fallthru
      _
    // Predicated region
    $region38: #{nmt_loss.1} parent=1 // pred_check
      _
    $region39: #{nmt_loss.1} parent=1 // pred_check_branch
      %114 = sbr.rel (0) target = $region41
    $region40: #{nmt_loss.1} parent=1 // pred_region
      _
    $region41: #{nmt_loss.1} parent=1 // pred_fallthru
      _
    // Predicated region
    $region42: #{nmt_loss.1} parent=1 // pred_check
      _
    $region43: #{nmt_loss.1} parent=1 // pred_check_branch
      %116 = sbr.rel (0) target = $region45
    $region44: #{nmt_loss.1} parent=1 // pred_region
      _
    $region45: #{nmt_loss.1} parent=1 // pred_fallthru
      _
    // Predicated region
    $region46: #{nmt_loss.1} parent=1 // pred_check
      _
    $region47: #{nmt_loss.1} parent=1 // pred_check_branch
      %118 = sbr.rel (0) target = $region49
    $region48: #{nmt_loss.1} parent=1 // pred_region
      _
    $region49: #{nmt_loss.1} parent=1 // pred_fallthru
      _
    // Predicated region
    $region50: #{nmt_loss.1} parent=1 // pred_check
      _
    $region51: #{nmt_loss.1} parent=1 // pred_check_branch
      %120 = sbr.rel (0) target = $region53
    $region52: #{nmt_loss.1} parent=1 // pred_region
      _
    $region53: #{nmt_loss.1} parent=1 // pred_fallthru
      _
    // Predicated region
    $region54: #{nmt_loss.1} parent=1 // pred_check
      _
    $region55: #{nmt_loss.1} parent=1 // pred_check_branch
      %122 = sbr.rel (0) target = $region57
    $region56: #{nmt_loss.1} parent=1 // pred_region
      _
    $region57: #{nmt_loss.1} parent=1 // pred_fallthru
      _
    // Predicated region
    $region58: #{nmt_loss.1} parent=1 // pred_check
      _
    $region59: #{nmt_loss.1} parent=1 // pred_check_branch
      %124 = sbr.rel (0) target = $region61
    $region60: #{nmt_loss.1} parent=1 // pred_region
      _
    $region61: #{nmt_loss.1} parent=1 // pred_fallthru
      _
    // Predicated region
    $region62: #{nmt_loss.1} parent=1 // pred_check
      _
    $region63: #{nmt_loss.1} parent=1 // pred_check_branch
      %126 = sbr.rel (0) target = $region65
    $region64: #{nmt_loss.1} parent=1 // pred_region
      _
    $region65: #{nmt_loss.1} parent=1 // pred_fallthru
      _
    // Predicated region
    $region66: #{nmt_loss.1} parent=1 // pred_check
      _
    $region67: #{nmt_loss.1} parent=1 // pred_check_branch
      %128 = sbr.rel (0) target = $region69
    $region68: #{nmt_loss.1} parent=1 // pred_region
      _
    $region69: #{nmt_loss.1} parent=1 // pred_fallthru
      _
    // Predicated region
    $region70: #{nmt_loss.1} parent=1 // pred_check
      _
    $region71: #{nmt_loss.1} parent=1 // pred_check_branch
      %130 = sbr.rel (0) target = $region73
    $region72: #{nmt_loss.1} parent=1 // pred_region
      _
    $region73: #{nmt_loss.1} parent=1 // pred_fallthru
      _
    // Predicated region
    $region74: #{nmt_loss.1} parent=1 // pred_check
      _
    $region75: #{nmt_loss.1} parent=1 // pred_check_branch
      %132 = sbr.rel (0) target = $region77
    $region76: #{nmt_loss.1} parent=1 // pred_region
      _
    $region77: #{nmt_loss.1} parent=1 // pred_fallthru
      _
    // Predicated region
    $region78: #{nmt_loss.1} parent=1 // pred_check
      _
    $region79: #{nmt_loss.1} parent=1 // pred_check_branch
      %134 = sbr.rel (0) target = $region81
    $region80: #{nmt_loss.1} parent=1 // pred_region
      _
    $region81: #{nmt_loss.1} parent=1 // pred_fallthru
      _
    // Predicated region
    $region82: #{nmt_loss.1} parent=1 // pred_check
      _
    $region83: #{nmt_loss.1} parent=1 // pred_check_branch
      %136 = sbr.rel (0) target = $region85
    $region84: #{nmt_loss.1} parent=1 // pred_region
      _
    $region85: #{nmt_loss.1} parent=1 // pred_fallthru
      _
    // Predicated region
    $region86: #{nmt_loss.1} parent=1 // pred_check
      _
    $region87: #{nmt_loss.1} parent=1 // pred_check_branch
      %138 = sbr.rel (0) target = $region89
    $region88: #{nmt_loss.1} parent=1 // pred_region
      _
    $region89: #{nmt_loss.1} parent=1 // pred_fallthru
      _
    // Predicated region
    $region90: #{nmt_loss.1} parent=1 // pred_check
      _
    $region91: #{nmt_loss.1} parent=1 // pred_check_branch
      %140 = sbr.rel (0) target = $region93
    $region92: #{nmt_loss.1} parent=1 // pred_region
      _
    $region93: #{nmt_loss.1} parent=1 // pred_fallthru
      _
    // Predicated region
    $region94: #{nmt_loss.1} parent=1 // pred_check
      _
    $region95: #{nmt_loss.1} parent=1 // pred_check_branch
      %142 = sbr.rel (0) target = $region97
    $region96: #{nmt_loss.1} parent=1 // pred_region
      _
    $region97: #{nmt_loss.1} parent=1 // pred_fallthru
      _
    // Predicated region
    $region98: #{nmt_loss.1} parent=1 // pred_check
      _
    $region99: #{nmt_loss.1} parent=1 // pred_check_branch
      %144 = sbr.rel (0) target = $region101
    $region100: #{nmt_loss.1} parent=1 // pred_region
      _
    $region101: #{nmt_loss.1} parent=1 // pred_fallthru
      _
    // Predicated region
    $region102: #{nmt_loss.1} parent=1 // pred_check
      _
    $region103: #{nmt_loss.1} parent=1 // pred_check_branch
      %146 = sbr.rel (0) target = $region105
    $region104: #{nmt_loss.1} parent=1 // pred_region
      _
    $region105: #{nmt_loss.1} parent=1 // pred_fallthru
      _
    // Predicated region
    $region106: #{nmt_loss.1} parent=1 // pred_check
      _
    $region107: #{nmt_loss.1} parent=1 // pred_check_branch
      %148 = sbr.rel (0) target = $region109
    $region108: #{nmt_loss.1} parent=1 // pred_region
      _
    $region109: #{nmt_loss.1} parent=1 // pred_fallthru
      _
    // Predicated region
    $region110: #{nmt_loss.1} parent=1 // pred_check
      _
    $region111: #{nmt_loss.1} parent=1 // pred_check_branch
      %150 = sbr.rel (0) target = $region113
    $region112: #{nmt_loss.1} parent=1 // pred_region
      _
    $region113: #{nmt_loss.1} parent=1 // pred_fallthru
      _
    // Predicated region
    $region114: #{nmt_loss.1} parent=1 // pred_check
      _
    $region115: #{nmt_loss.1} parent=1 // pred_check_branch
      %152 = sbr.rel (0) target = $region117
    $region116: #{nmt_loss.1} parent=1 // pred_region
      _
    $region117: #{nmt_loss.1} parent=1 // pred_fallthru
      _
    // Predicated region
    $region118: #{nmt_loss.1} parent=1 // pred_check
      _
    $region119: #{nmt_loss.1} parent=1 // pred_check_branch
      %154 = sbr.rel (0) target = $region121
    $region120: #{nmt_loss.1} parent=1 // pred_region
      _
    $region121: #{nmt_loss.1} parent=1 // pred_fallthru
      _
    // Predicated region
    $region122: #{nmt_loss.1} parent=1 // pred_check
      _
    $region123: #{nmt_loss.1} parent=1 // pred_check_branch
      %156 = sbr.rel (0) target = $region125
    $region124: #{nmt_loss.1} parent=1 // pred_region
      _
    $region125: #{nmt_loss.1} parent=1 // pred_fallthru
      _
    // Predicated region
    $region126: #{nmt_loss.1} parent=1 // pred_check
      _
    $region127: #{nmt_loss.1} parent=1 // pred_check_branch
      %158 = sbr.rel (0) target = $region129
    $region128: #{nmt_loss.1} parent=1 // pred_region
      _
    $region129: #{nmt_loss.1} parent=1 // pred_fallthru
      _
    // Predicated region
    $region130: #{nmt_loss.1} parent=1 // pred_check
      _
    $region131: #{nmt_loss.1} parent=1 // pred_check_branch
      %160 = sbr.rel (0) target = $region133
    $region132: #{nmt_loss.1} parent=1 // pred_region
      _
    $region133: #{nmt_loss.1} parent=1 // pred_fallthru
      _
    // Predicated region
    $region134: #{nmt_loss.1} parent=1 // pred_check
      _
    $region135: #{nmt_loss.1} parent=1 // pred_check_branch
      %162 = sbr.rel (0) target = $region137
    $region136: #{nmt_loss.1} parent=1 // pred_region
      _
    $region137: #{nmt_loss.1} parent=1 // pred_fallthru
      _
    // Predicated region
    $region138: #{nmt_loss.1} parent=1 // pred_check
      _
    $region139: #{nmt_loss.1} parent=1 // pred_check_branch
      %164 = sbr.rel (0) target = $region141
    $region140: #{nmt_loss.1} parent=1 // pred_region
      _
    $region141: #{nmt_loss.1} parent=1 // pred_fallthru
      _
    // Predicated region
    $region142: #{nmt_loss.1} parent=1 // pred_check
      _
    $region143: #{nmt_loss.1} parent=1 // pred_check_branch
      %166 = sbr.rel (0) target = $region145
    $region144: #{nmt_loss.1} parent=1 // pred_region
      _
    $region145: #{nmt_loss.1} parent=1 // pred_fallthru
      _
    // Predicated region
    $region146: #{nmt_loss.1} parent=1 // pred_check
      _
    $region147: #{nmt_loss.1} parent=1 // pred_check_branch
      %168 = sbr.rel (0) target = $region149
    $region148: #{nmt_loss.1} parent=1 // pred_region
      _
    $region149: #{nmt_loss.1} parent=1 // pred_fallthru
      _
    // Predicated region
    $region150: #{nmt_loss.1} parent=1 // pred_check
      _
    $region151: #{nmt_loss.1} parent=1 // pred_check_branch
      %170 = sbr.rel (0) target = $region153
    $region152: #{nmt_loss.1} parent=1 // pred_region
      _
    $region153: #{nmt_loss.1} parent=1 // pred_fallthru
      _
    // Predicated region
    $region154: #{nmt_loss.1} parent=1 // pred_check
      _
    $region155: #{nmt_loss.1} parent=1 // pred_check_branch
      %172 = sbr.rel (0) target = $region157
    $region156: #{nmt_loss.1} parent=1 // pred_region
      _
    $region157: #{nmt_loss.1} parent=1 // pred_fallthru
      _
    // Predicated region
    $region158: #{nmt_loss.1} parent=1 // pred_check
      _
    $region159: #{nmt_loss.1} parent=1 // pred_check_branch
      %174 = sbr.rel (0) target = $region161
    $region160: #{nmt_loss.1} parent=1 // pred_region
      _
    $region161: #{nmt_loss.1} parent=1 // pred_fallthru
      _
    // Predicated region
    $region162: #{nmt_loss.1} parent=1 // pred_check
      _
    $region163: #{nmt_loss.1} parent=1 // pred_check_branch
      %176 = sbr.rel (0) target = $region165
    $region164: #{nmt_loss.1} parent=1 // pred_region
      _
    $region165: #{nmt_loss.1} parent=1 // pred_fallthru
      _
    // Predicated region
    $region166: #{nmt_loss.1} parent=1 // pred_check
      _
    $region167: #{nmt_loss.1} parent=1 // pred_check_branch
      %178 = sbr.rel (0) target = $region169
    $region168: #{nmt_loss.1} parent=1 // pred_region
      _
    $region169: #{nmt_loss.1} parent=1 // pred_fallthru
      _
    // Predicated region
    $region170: #{nmt_loss.1} parent=1 // pred_check
      _
    $region171: #{nmt_loss.1} parent=1 // pred_check_branch
      %180 = sbr.rel (0) target = $region173
    $region172: #{nmt_loss.1} parent=1 // pred_region
      _
    $region173: #{nmt_loss.1} parent=1 // pred_fallthru
      _
    // Predicated region
    $region174: #{nmt_loss.1} parent=1 // pred_check
      _
    $region175: #{nmt_loss.1} parent=1 // pred_check_branch
      %182 = sbr.rel (0) target = $region177
    $region176: #{nmt_loss.1} parent=1 // pred_region
      _
    $region177: #{nmt_loss.1} parent=1 // pred_fallthru
      _
    %v184 = vld [vmem:[%s17] sm:$0xff]
    %v185 = vld [vmem:[%s17 + $0x8] sm:$0xff]
    %v186 = vld [vmem:[%s17 + $0x10] sm:$0xff]
    %v187 = vld [vmem:[%s17 + $0x18] sm:$0xff]
    %v188 = vld [vmem:[%s17 + $0x20] sm:$0xff]
    %v189 = vld [vmem:[%s17 + $0x28] sm:$0xff]
    %v190 = vld [vmem:[%s17 + $0x30] sm:$0xff]
    %v191 = vld [vmem:[%s17 + $0x38] sm:$0xff]
    %v192 = vld [vmem:[%s19] sm:$0xff]
    %v193 = vld [vmem:[%s19 + $0x8] sm:$0xff]
    %v194 = vld [vmem:[%s19 + $0x10] sm:$0xff]
    %v195 = vld [vmem:[%s19 + $0x18] sm:$0xff]
    %v196 = vld [vmem:[%s19 + $0x20] sm:$0xff]
    %v197 = vld [vmem:[%s19 + $0x28] sm:$0xff]
    %v198 = vld [vmem:[%s19 + $0x30] sm:$0xff]
    %v199 = vld [vmem:[%s19 + $0x38] sm:$0xff]
    %v200 = vld [vmem:[%s21] sm:$0xff]
    %v201 = vld [vmem:[%s21 + $0x8] sm:$0xff]
    %v202 = vld [vmem:[%s21 + $0x10] sm:$0xff]
    %v203 = vld [vmem:[%s21 + $0x18] sm:$0xff]
    %v204 = vld [vmem:[%s21 + $0x20] sm:$0xff]
    %v205 = vld [vmem:[%s21 + $0x28] sm:$0xff]
    %v206 = vld [vmem:[%s21 + $0x30] sm:$0xff]
    %v207 = vld [vmem:[%s21 + $0x38] sm:$0xff]
    %v208 = vld [vmem:[%s23] sm:$0xff]
    %v209 = vld [vmem:[%s23 + $0x8] sm:$0xff]
    %v210 = vld [vmem:[%s23 + $0x10] sm:$0xff]
    %v211 = vld [vmem:[%s23 + $0x18] sm:$0xff]
    %v212 = vld [vmem:[%s23 + $0x20] sm:$0xff]
    %v213 = vld [vmem:[%s23 + $0x28] sm:$0xff]
    %v214 = vld [vmem:[%s23 + $0x30] sm:$0xff]
    %v215 = vld [vmem:[%s23 + $0x38] sm:$0xff]
    %v216 = vld [vmem:[%s11] sm:$0xff]
    %v217 = vld [vmem:[%s11 + $0x8] sm:$0xff]
    %v218 = vld [vmem:[%s13] sm:$0xff]
    %v219 = vld [vmem:[%s13 + $0x8] sm:$0xff]
    %v220 = vld [vmem:[%s15] sm:$0xff]
    %v221 = vld [vmem:[%s15 + $0x8] sm:$0xff]
    %v222 = vlaneseq
    %v223 = vand.u32 %v222, 127
    %v224 = vld [vmem:[%s1] sm:$0xff]
    %v225 = vld [vmem:[%s1 + $0x8] sm:$0xff]
    %226 = vset.pattern.permute.xlu0 0
    %227 = vperm.xlu0 %226, %v224
    %v228 = vpop.permute.xlu0 %227
    %229 = vset.pattern.permute.xlu0 0
    %230 = vperm.xlu0 %229, %v225
    %v231 = vpop.permute.xlu0 %230
    %vm232 = vcmp.eq.s32.totalorder %v223, %v228
    %vm233 = vcmp.eq.s32.totalorder %v223, %v231
    %v234 = vsel %vm232, 1, 0
    %v235 = vsel %vm233, 1, 0
    %v236 = vcvt.s32.f32 %v234
    %v237 = vcvt.s32.f32 %v235
    %v238 = vld [vmem:[%s25] sm:$0xff]
    %v239 = vld [vmem:[%s25 + $0x8] sm:$0xff]
    %v240 = vld [vmem:[%s7] sm:$0xff]
    %v241 = vld [vmem:[%s7 + $0x8] sm:$0xff]
    %vm242 = vcmask 130048
    %v244 = vsel %vm242, %v236, 0
    %v247 = vsel %vm242, %v237, 0
    %249 = vmatprep.subr.mxu0 0.0
    %250 = vmatpush1.msra.mxu0 %v238
    %251 = vmatprep.subr.mxu0 0.0
    %252 = vmatpush1.msra.mxu0 %v239
    %253 = vmatprep.subr.mxu0 0.0
    %254 = vmatpush1.msra.mxu0 0.0
    %255 = vmatprep.subr.mxu0 0.0
    %256 = vmatpush1.msra.mxu0 0.0
    %257 = vmatprep.subr.mxu0 0.0
    %258 = vmatpush1.msra.mxu0 0.0
    %259 = vmatprep.subr.mxu0 0.0
    %260 = vmatpush1.msra.mxu0 0.0
    %261 = vmatprep.subr.mxu0 0.0
    %262 = vmatpush1.msra.mxu0 0.0
    %263 = vmatprep.subr.mxu0 0.0
    %264 = vmatpush1.msra.mxu0 0.0
    %265 = vmatprep.subr.mxu0 0.0
    %266 = vmatpush1.msra.mxu0 0.0
    %267 = vmatprep.subr.mxu0 0.0
    %268 = vmatpush1.msra.mxu0 0.0
    %269 = vmatprep.subr.mxu0 0.0
    %270 = vmatpush1.msra.mxu0 0.0
    %271 = vmatprep.subr.mxu0 0.0
    %272 = vmatpush1.msra.mxu0 0.0
    %273 = vmatprep.subr.mxu0 0.0
    %274 = vmatpush1.msra.mxu0 0.0
    %275 = vmatprep.subr.mxu0 0.0
    %276 = vmatpush1.msra.mxu0 0.0
    %277 = vmatprep.subr.mxu0 0.0
    %278 = vmatpush1.msra.mxu0 0.0
    %279 = vmatprep.subr.mxu0 0.0
    %280 = vmatpush1.msra.mxu0 0.0
    %281 = vmatprep.subr.mxu0 0.0
    %282 = vmatpush1.msra.mxu0 0.0
    %283 = vmatprep.subr.mxu0 0.0
    %284 = vmatpush1.msra.mxu0 0.0
    %285 = vmatprep.subr.mxu0 0.0
    %286 = vmatpush1.msra.mxu0 0.0
    %287 = vmatprep.subr.mxu0 0.0
    %288 = vmatpush1.msra.mxu0 0.0
    %289 = vmatprep.subr.mxu0 0.0
    %290 = vmatpush1.msra.mxu0 0.0
    %291 = vmatprep.subr.mxu0 0.0
    %292 = vmatpush1.msra.mxu0 0.0
    %293 = vmatprep.subr.mxu0 0.0
    %294 = vmatpush1.msra.mxu0 0.0
    %295 = vmatprep.subr.mxu0 0.0
    %296 = vmatpush1.msra.mxu0 0.0
    %297 = vmatprep.subr.mxu0 0.0
    %298 = vmatpush1.msra.mxu0 0.0
    %299 = vmatprep.subr.mxu0 0.0
    %300 = vmatpush1.msra.mxu0 0.0
    %301 = vmatprep.subr.mxu0 0.0
    %302 = vmatpush1.msra.mxu0 0.0
    %303 = vmatprep.subr.mxu0 0.0
    %304 = vmatpush1.msra.mxu0 0.0
    %305 = vmatprep.subr.mxu0 0.0
    %306 = vmatpush1.msra.mxu0 0.0
    %307 = vmatprep.subr.mxu0 0.0
    %308 = vmatpush1.msra.mxu0 0.0
    %309 = vmatprep.subr.mxu0 0.0
    %310 = vmatpush1.msra.mxu0 0.0
    %311 = vmatprep.subr.mxu0 0.0
    %312 = vmatpush1.msra.mxu0 0.0
    %313 = vmatprep.mubr.f32.mxu0 0.0
    %314 = vmatmul.mubr.f32.gmra.mrb[0].mxu0 %v244
    %v315 = vpop.f32.mrb[0].mxu0
    %v316 = vadd.f32 %v240, %v315
    %v317 = vpop.f32.mrb[0].mxu0
    %318 = vmatprep.mubr.f32.mxu0 0.0
    %319 = vmatmul.mubr.f32.gmra.mrb[0].mxu0 %v247
    %v320 = vpop.f32.mrb[0].mxu0
    %v321 = vadd.f32 %v241, %v320
    %v322 = vpop.f32.mrb[0].mxu0
    %323 = vdwg.mxu0
    %v324 = vld [vmem:[%s27] sm:$0xf]
    %v325 = vld [vmem:[%s27 + $0x4] sm:$0xf]
    %v326 = vld [vmem:[%s27 + $0x8] sm:$0xf]
    %v327 = vld [vmem:[%s27 + $0xc] sm:$0xf]
    %v328 = vld [vmem:[%s27 + $0x10] sm:$0xf]
    %v329 = vld [vmem:[%s27 + $0x14] sm:$0xf]
    %v330 = vld [vmem:[%s27 + $0x18] sm:$0xf]
    %v331 = vld [vmem:[%s27 + $0x1c] sm:$0xf]
    %v332 = vld [vmem:[%s27 + $0x20] sm:$0xf]
    %v333 = vld [vmem:[%s27 + $0x24] sm:$0xf]
    %v334 = vld [vmem:[%s27 + $0x28] sm:$0xf]
    %v335 = vld [vmem:[%s27 + $0x2c] sm:$0xf]
    %v336 = vpack.c.bf16 %v321, %v316
    %v349 = vunpack.c.l.b16 %v324
    %v350 = vunpack.c.l.b16 %v325
    %v351 = vunpack.c.l.b16 %v326
    %v352 = vunpack.c.l.b16 %v327
    %v353 = vunpack.c.l.b16 %v328
    %v354 = vunpack.c.l.b16 %v329
    %v355 = vunpack.c.l.b16 %v330
    %v356 = vunpack.c.l.b16 %v331
    %v357 = vunpack.c.l.b16 %v332
    %v358 = vunpack.c.l.b16 %v333
    %v359 = vunpack.c.l.b16 %v334
    %v360 = vunpack.c.l.b16 %v335
    %v361 = vpack.c.b16 %v350, %v349
    %v362 = vpack.c.b16 %v352, %v351
    %v363 = vpack.c.b16 %v354, %v353
    %v364 = vpack.c.b16 %v356, %v355
    %v365 = vpack.c.b16 %v358, %v357
    %v366 = vpack.c.b16 %v360, %v359
    %vm367 = vcmask 261120
    %v369 = vsel %vm367, %v336, 0
    %v372 = vsel %vm367, %v361, 0
    %v375 = vsel %vm367, %v362, 0
    %v378 = vsel %vm367, %v363, 0
    %v381 = vsel %vm367, %v364, 0
    %v384 = vsel %vm367, %v365, 0
    %v387 = vsel %vm367, %v366, 0
    %389 = vmatprep.subr.bf16.mxu0 0
    %390 = vmatpush1.bf16.xpose.msra.mxu0 %v372
    %391 = vmatprep.subr.bf16.mxu0 0
    %392 = vmatpush1.bf16.xpose.msra.mxu0 %v375
    %393 = vmatprep.subr.bf16.mxu0 0
    %394 = vmatpush1.bf16.xpose.msra.mxu0 %v378
    %395 = vmatprep.subr.bf16.mxu0 0
    %396 = vmatpush1.bf16.xpose.msra.mxu0 %v381
    %397 = vmatprep.subr.bf16.mxu0 0
    %398 = vmatpush1.bf16.xpose.msra.mxu0 %v384
    %399 = vmatprep.subr.bf16.mxu0 0
    %400 = vmatpush1.bf16.xpose.msra.mxu0 %v387
    %401 = vmatprep.subr.bf16.mxu0 0
    %402 = vmatpush1.bf16.xpose.msra.mxu0 0
    %403 = vmatprep.subr.bf16.mxu0 0
    %404 = vmatpush1.bf16.xpose.msra.mxu0 0
    %405 = vmatprep.subr.bf16.mxu0 0
    %406 = vmatpush1.bf16.xpose.msra.mxu0 0
    %407 = vmatprep.subr.bf16.mxu0 0
    %408 = vmatpush1.bf16.xpose.msra.mxu0 0
    %409 = vmatprep.subr.bf16.mxu0 0
    %410 = vmatpush1.bf16.xpose.msra.mxu0 0
    %411 = vmatprep.subr.bf16.mxu0 0
    %412 = vmatpush1.bf16.xpose.msra.mxu0 0
    %413 = vmatprep.subr.bf16.mxu0 0
    %414 = vmatpush1.bf16.xpose.msra.mxu0 0
    %415 = vmatprep.subr.bf16.mxu0 0
    %416 = vmatpush1.bf16.xpose.msra.mxu0 0
    %417 = vmatprep.subr.bf16.mxu0 0
    %418 = vmatpush1.bf16.xpose.msra.mxu0 0
    %419 = vmatprep.subr.bf16.mxu0 0
    %420 = vmatpush1.bf16.xpose.msra.mxu0 0
    %421 = vmatprep.mubr.bf16.mxu0 0
    %422 = vmatmul.mubr.bf16.gmra.mrb[0].mxu0 %v369
    %v423 = vpop.f32.mrb[0].mxu0
    %v424 = vadd.f32 0.0, %v423
    %v425 = vpop.f32.mrb[0].mxu0
    %v426 = vpop.f32.mrb[0].mxu0
    %v427 = vadd.f32 0.0, %v426
    %v428 = vpop.f32.mrb[0].mxu0
    %429 = vdwg.mxu0
    %v430 = vld [vmem:[%s29] sm:$0xf]
    %v431 = vld [vmem:[%s29 + $0x4] sm:$0xf]
    %v432 = vld [vmem:[%s29 + $0x8] sm:$0xf]
    %v433 = vld [vmem:[%s29 + $0xc] sm:$0xf]
    %v434 = vld [vmem:[%s31] sm:$0x1]
    %443 = vrot.lane.b32.xlu0 %v184, 32
    %v444 = vpop.permute.xlu0 %443
    %445 = vrot.lane.b32.xlu0 %v185, 32
    %v446 = vpop.permute.xlu0 %445
    %447 = vrot.lane.b32.xlu0 %v186, 32
    %v448 = vpop.permute.xlu0 %447
    %449 = vrot.lane.b32.xlu0 %v187, 32
    %v450 = vpop.permute.xlu0 %449
    %451 = vrot.lane.b32.xlu0 %v188, 32
    %v452 = vpop.permute.xlu0 %451
    %453 = vrot.lane.b32.xlu0 %v189, 32
    %v454 = vpop.permute.xlu0 %453
    %455 = vrot.lane.b32.xlu0 %v190, 32
    %v456 = vpop.permute.xlu0 %455
    %457 = vrot.lane.b32.xlu0 %v191, 32
    %v458 = vpop.permute.xlu0 %457
    %v467 = vmul.f32 %v424, %v444
    %v468 = vmul.f32 %v427, %v446
    %v469 = vmul.f32 %v424, %v448
    %v470 = vmul.f32 %v427, %v450
    %v471 = vmul.f32 %v424, %v452
    %v472 = vmul.f32 %v427, %v454
    %v473 = vmul.f32 %v424, %v456
    %v474 = vmul.f32 %v427, %v458
    %475 = vrot.lane.b32.xlu0 %v184, 64
    %v476 = vpop.permute.xlu0 %475
    %477 = vrot.lane.b32.xlu0 %v185, 64
    %v478 = vpop.permute.xlu0 %477
    %479 = vrot.lane.b32.xlu0 %v186, 64
    %v480 = vpop.permute.xlu0 %479
    %481 = vrot.lane.b32.xlu0 %v187, 64
    %v482 = vpop.permute.xlu0 %481
    %483 = vrot.lane.b32.xlu0 %v188, 64
    %v484 = vpop.permute.xlu0 %483
    %485 = vrot.lane.b32.xlu0 %v189, 64
    %v486 = vpop.permute.xlu0 %485
    %487 = vrot.lane.b32.xlu0 %v190, 64
    %v488 = vpop.permute.xlu0 %487
    %489 = vrot.lane.b32.xlu0 %v191, 64
    %v490 = vpop.permute.xlu0 %489
    %v499 = vmul.f32 %v424, %v476
    %v500 = vmul.f32 %v427, %v478
    %v501 = vmul.f32 %v424, %v480
    %v502 = vmul.f32 %v427, %v482
    %v503 = vmul.f32 %v424, %v484
    %v504 = vmul.f32 %v427, %v486
    %v505 = vmul.f32 %v424, %v488
    %v506 = vmul.f32 %v427, %v490
    %v507 = vpack.c.bf16 %v427, %v424
    %v508 = vpack.c.bf16 %v468, %v467
    %v509 = vpack.c.bf16 %v470, %v469
    %v510 = vpack.c.bf16 %v472, %v471
    %v511 = vpack.c.bf16 %v474, %v473
    %516 = vrot.lane.b32.xlu0 %v508, 96
    %v517 = vpop.permute.xlu0 %516
    %518 = vrot.lane.b32.xlu0 %v509, 96
    %v519 = vpop.permute.xlu0 %518
    %520 = vrot.lane.b32.xlu0 %v510, 96
    %v521 = vpop.permute.xlu0 %520
    %522 = vrot.lane.b32.xlu0 %v511, 96
    %v523 = vpop.permute.xlu0 %522
    %v525 = vsel %vm367, %v507, 0
    %v528 = vsel %vm367, %v517, 0
    %v531 = vsel %vm367, %v519, 0
    %v534 = vsel %vm367, %v521, 0
    %v537 = vsel %vm367, %v523, 0
    %539 = vmatprep.subr.bf16.mxu0 0
    %540 = vmatpush1.bf16.xpose.msra.mxu0 %v528
    %541 = vmatprep.subr.bf16.mxu0 0
    %542 = vmatpush1.bf16.xpose.msra.mxu0 %v531
    %543 = vmatprep.subr.bf16.mxu0 0
    %544 = vmatpush1.bf16.xpose.msra.mxu0 %v534
    %545 = vmatprep.subr.bf16.mxu0 0
    %546 = vmatpush1.bf16.xpose.msra.mxu0 %v537
    %547 = vmatprep.subr.bf16.mxu0 0
    %548 = vmatpush1.bf16.xpose.msra.mxu0 0
    %549 = vmatprep.subr.bf16.mxu0 0
    %550 = vmatpush1.bf16.xpose.msra.mxu0 0
    %551 = vmatprep.subr.bf16.mxu0 0
    %552 = vmatpush1.bf16.xpose.msra.mxu0 0
    %553 = vmatprep.subr.bf16.mxu0 0
    %554 = vmatpush1.bf16.xpose.msra.mxu0 0
    %555 = vmatprep.subr.bf16.mxu0 0
    %556 = vmatpush1.bf16.xpose.msra.mxu0 0
    %557 = vmatprep.subr.bf16.mxu0 0
    %558 = vmatpush1.bf16.xpose.msra.mxu0 0
    %559 = vmatprep.subr.bf16.mxu0 0
    %560 = vmatpush1.bf16.xpose.msra.mxu0 0
    %561 = vmatprep.subr.bf16.mxu0 0
    %562 = vmatpush1.bf16.xpose.msra.mxu0 0
    %563 = vmatprep.subr.bf16.mxu0 0
    %564 = vmatpush1.bf16.xpose.msra.mxu0 0
    %565 = vmatprep.subr.bf16.mxu0 0
    %566 = vmatpush1.bf16.xpose.msra.mxu0 0
    %567 = vmatprep.subr.bf16.mxu0 0
    %568 = vmatpush1.bf16.xpose.msra.mxu0 0
    %569 = vmatprep.subr.bf16.mxu0 0
    %570 = vmatpush1.bf16.xpose.msra.mxu0 0
    %571 = vmatprep.mubr.bf16.mxu0 0
    %572 = vmatmul.mubr.bf16.gmra.mrb[0].mxu0 %v525
    %v573 = vpop.f32.mrb[0].mxu0
    %v574 = vadd.f32 %v216, %v573
    %v575 = vpop.f32.mrb[0].mxu0
    %v576 = vpop.f32.mrb[0].mxu0
    %v577 = vadd.f32 %v217, %v576
    %v578 = vpop.f32.mrb[0].mxu0
    %579 = vdwg.mxu0
    %vm580 = vcmask 523264
    %v581 = vsel %vm580, %v574, -inf
    %582 = vmax.xlane.f32.xlu0 %v581
    %v583 = vpop.xlane.xlu0 %582
    %v584 = vsel %vm580, %v577, -inf
    %585 = vmax.xlane.f32.xlu0 %v584
    %v586 = vpop.xlane.xlu0 %585
    %v587 = vsub.f32 %v574, %v583
    %v588 = vsub.f32 %v577, %v586
    %v589 = vmul.f32 %v587, 1.442695
    %v590 = vpow.pop %v589
    %v591 = vmul.f32 %v588, 1.442695
    %v592 = vpow.pop %v591
    %v593 = vpack.c.bf16 %v592, %v590
    %v594 = vpack.c.bf16 %v201, %v200
    %v595 = vpack.c.bf16 %v203, %v202
    %v596 = vpack.c.bf16 %v205, %v204
    %v597 = vpack.c.bf16 %v207, %v206
    %v599 = vsel %vm580, %v593, 0
    %601 = vmatprep.subr.bf16.mxu0 0
    %602 = vmatpush1.bf16.msra.mxu0 %v594
    %603 = vmatprep.subr.bf16.mxu0 0
    %604 = vmatpush1.bf16.msra.mxu0 %v595
    %605 = vmatprep.subr.bf16.mxu0 0
    %606 = vmatpush1.bf16.msra.mxu0 %v596
    %607 = vmatprep.subr.bf16.mxu0 0
    %608 = vmatpush1.bf16.msra.mxu0 %v597
    %609 = vmatprep.subr.bf16.mxu0 0
    %610 = vmatpush1.bf16.msra.mxu0 0
    %611 = vmatprep.subr.bf16.mxu0 0
    %612 = vmatpush1.bf16.msra.mxu0 0
    %613 = vmatprep.subr.bf16.mxu0 0
    %614 = vmatpush1.bf16.msra.mxu0 0
    %615 = vmatprep.subr.bf16.mxu0 0
    %616 = vmatpush1.bf16.msra.mxu0 0
    %617 = vmatprep.subr.bf16.mxu0 0
    %618 = vmatpush1.bf16.msra.mxu0 0
    %619 = vmatprep.subr.bf16.mxu0 0
    %620 = vmatpush1.bf16.msra.mxu0 0
    %621 = vmatprep.subr.bf16.mxu0 0
    %622 = vmatpush1.bf16.msra.mxu0 0
    %623 = vmatprep.subr.bf16.mxu0 0
    %624 = vmatpush1.bf16.msra.mxu0 0
    %625 = vmatprep.subr.bf16.mxu0 0
    %626 = vmatpush1.bf16.msra.mxu0 0
    %627 = vmatprep.subr.bf16.mxu0 0
    %628 = vmatpush1.bf16.msra.mxu0 0
    %629 = vmatprep.subr.bf16.mxu0 0
    %630 = vmatpush1.bf16.msra.mxu0 0
    %631 = vmatprep.subr.bf16.mxu0 0
    %632 = vmatpush1.bf16.msra.mxu0 0
    %633 = vmatprep.mubr.bf16.mxu0 0
    %634 = vmatmul.mubr.bf16.gmra.mrb[0].mxu0 %v599
    %v635 = vpop.f32.mrb[0].mxu0
    %v636 = vadd.f32 0.0, %v635
    %v637 = vpop.f32.mrb[0].mxu0
    %v638 = vpop.f32.mrb[0].mxu0
    %v639 = vadd.f32 0.0, %v638
    %v640 = vpop.f32.mrb[0].mxu0
    %641 = vdwg.mxu0
    %v642 = vmax.f32 %v636, 1e-30
    %v643 = vmax.f32 %v639, 1e-30
    %v644 = vrcp.pop %v642
    %v645 = vrcp.pop %v643
    %v646 = vmul.f32 %v590, %v644
    %v647 = vmul.f32 %v592, %v645
    %v648 = vpack.c.bf16 %v647, %v646
    %v649 = vpack.c.bf16 %v500, %v499
    %v650 = vpack.c.bf16 %v502, %v501
    %v651 = vpack.c.bf16 %v504, %v503
    %v652 = vpack.c.bf16 %v506, %v505
    %657 = vrot.lane.b32.xlu0 %v649, 64
    %v658 = vpop.permute.xlu0 %657
    %659 = vrot.lane.b32.xlu0 %v650, 64
    %v660 = vpop.permute.xlu0 %659
    %661 = vrot.lane.b32.xlu0 %v651, 64
    %v662 = vpop.permute.xlu0 %661
    %663 = vrot.lane.b32.xlu0 %v652, 64
    %v664 = vpop.permute.xlu0 %663
    %v670 = vsel %vm580, %v648, 0
    %672 = vmatprep.subr.bf16.mxu0 0
    %673 = vmatpush1.bf16.msra.mxu0 %v658
    %674 = vmatprep.subr.bf16.mxu0 0
    %675 = vmatpush1.bf16.msra.mxu0 %v660
    %676 = vmatprep.subr.bf16.mxu0 0
    %677 = vmatpush1.bf16.msra.mxu0 %v662
    %678 = vmatprep.subr.bf16.mxu0 0
    %679 = vmatpush1.bf16.msra.mxu0 %v664
    %680 = vmatprep.subr.bf16.mxu0 0
    %681 = vmatpush1.bf16.msra.mxu0 0
    %682 = vmatprep.subr.bf16.mxu0 0
    %683 = vmatpush1.bf16.msra.mxu0 0
    %684 = vmatprep.subr.bf16.mxu0 0
    %685 = vmatpush1.bf16.msra.mxu0 0
    %686 = vmatprep.subr.bf16.mxu0 0
    %687 = vmatpush1.bf16.msra.mxu0 0
    %688 = vmatprep.subr.bf16.mxu0 0
    %689 = vmatpush1.bf16.msra.mxu0 0
    %690 = vmatprep.subr.bf16.mxu0 0
    %691 = vmatpush1.bf16.msra.mxu0 0
    %692 = vmatprep.subr.bf16.mxu0 0
    %693 = vmatpush1.bf16.msra.mxu0 0
    %694 = vmatprep.subr.bf16.mxu0 0
    %695 = vmatpush1.bf16.msra.mxu0 0
    %696 = vmatprep.subr.bf16.mxu0 0
    %697 = vmatpush1.bf16.msra.mxu0 0
    %698 = vmatprep.subr.bf16.mxu0 0
    %699 = vmatpush1.bf16.msra.mxu0 0
    %700 = vmatprep.subr.bf16.mxu0 0
    %701 = vmatpush1.bf16.msra.mxu0 0
    %702 = vmatprep.subr.bf16.mxu0 0
    %703 = vmatpush1.bf16.msra.mxu0 0
    %704 = vmatprep.mubr.bf16.mxu0 0
    %705 = vmatmul.mubr.bf16.gmra.mrb[0].mxu0 %v670
    %v706 = vpop.f32.mrb[0].mxu0
    %v707 = vadd.f32 0.0, %v706
    %v708 = vpop.f32.mrb[0].mxu0
    %v709 = vpop.f32.mrb[0].mxu0
    %v710 = vadd.f32 0.0, %v709
    %v711 = vpop.f32.mrb[0].mxu0
    %712 = vdwg.mxu0
    %v713 = vpack.c.bf16 %v710, %v707
    %v715 = vlaneseq
    %v716 = vshrl.u32 %v715, 7
    %v717 = vsub.s32 0, %v716
    %v718 = vrot.slane %v434, %v717
    %v724 = vunpack.c.l.b16 %v430
    %v725 = vunpack.c.l.b16 %v431
    %v726 = vunpack.c.l.b16 %v432
    %v727 = vunpack.c.l.b16 %v433
    %v728 = vpack.c.b16 %v725, %v724
    %v729 = vpack.c.b16 %v727, %v726
    %v731 = vsel %vm367, %v713, 0
    %v734 = vsel %vm367, %v728, 0
    %v737 = vsel %vm367, %v729, 0
    %739 = vmatprep.subr.bf16.mxu0 0
    %740 = vmatpush1.bf16.xpose.msra.mxu0 %v734
    %741 = vmatprep.subr.bf16.mxu0 0
    %742 = vmatpush1.bf16.xpose.msra.mxu0 %v737
    %743 = vmatprep.subr.bf16.mxu0 0
    %744 = vmatpush1.bf16.xpose.msra.mxu0 0
    %745 = vmatprep.subr.bf16.mxu0 0
    %746 = vmatpush1.bf16.xpose.msra.mxu0 0
    %747 = vmatprep.subr.bf16.mxu0 0
    %748 = vmatpush1.bf16.xpose.msra.mxu0 0
    %749 = vmatprep.subr.bf16.mxu0 0
    %750 = vmatpush1.bf16.xpose.msra.mxu0 0
    %751 = vmatprep.subr.bf16.mxu0 0
    %752 = vmatpush1.bf16.xpose.msra.mxu0 0
    %753 = vmatprep.subr.bf16.mxu0 0
    %754 = vmatpush1.bf16.xpose.msra.mxu0 0
    %755 = vmatprep.subr.bf16.mxu0 0
    %756 = vmatpush1.bf16.xpose.msra.mxu0 0
    %757 = vmatprep.subr.bf16.mxu0 0
    %758 = vmatpush1.bf16.xpose.msra.mxu0 0
    %759 = vmatprep.subr.bf16.mxu0 0
    %760 = vmatpush1.bf16.xpose.msra.mxu0 0
    %761 = vmatprep.subr.bf16.mxu0 0
    %762 = vmatpush1.bf16.xpose.msra.mxu0 0
    %763 = vmatprep.subr.bf16.mxu0 0
    %764 = vmatpush1.bf16.xpose.msra.mxu0 0
    %765 = vmatprep.subr.bf16.mxu0 0
    %766 = vmatpush1.bf16.xpose.msra.mxu0 0
    %767 = vmatprep.subr.bf16.mxu0 0
    %768 = vmatpush1.bf16.xpose.msra.mxu0 0
    %769 = vmatprep.subr.bf16.mxu0 0
    %770 = vmatpush1.bf16.xpose.msra.mxu0 0
    %771 = vmatprep.mubr.bf16.mxu0 0
    %772 = vmatmul.mubr.bf16.gmra.mrb[0].mxu0 %v731
    %v773 = vpop.f32.mrb[0].mxu0
    %v774 = vadd.f32 %v718, %v773
    %v775 = vpop.f32.mrb[0].mxu0
    %v776 = vpop.f32.mrb[0].mxu0
    %v777 = vadd.f32 %v718, %v776
    %v778 = vpop.f32.mrb[0].mxu0
    %779 = vdwg.mxu0
    %v780 = vld [vmem:[%s33] sm:$0x1]
    %v781 = vld [vmem:[%s35] sm:$0x1]
    %v782 = vadd.f32 %v316, %v774
    %v783 = vadd.f32 %v321, %v777
    %v784 = vsel %vm367, %v782, 0.0
    %785 = vadd.xlane.f32.xlu0 %v784
    %v786 = vpop.xlane.xlu0 %785
    %v787 = vsel %vm367, %v783, 0.0
    %788 = vadd.xlane.f32.xlu0 %v787
    %v789 = vpop.xlane.xlu0 %788
    %v790 = vrcp.pop 32.0
    %v791 = vmul.f32 %v786, %v790
    %v792 = vmul.f32 %v789, %v790
    %v793 = vsub.f32 %v782, %v791
    %v794 = vsub.f32 %v783, %v792
    %v795 = vmul.f32 %v793, %v793
    %v796 = vmul.f32 %v794, %v794
    %v797 = vsel %vm367, %v795, 0.0
    %798 = vadd.xlane.f32.xlu0 %v797
    %v799 = vpop.xlane.xlu0 %798
    %v800 = vsel %vm367, %v796, 0.0
    %801 = vadd.xlane.f32.xlu0 %v800
    %v802 = vpop.xlane.xlu0 %801
    %v803 = vmul.f32 %v799, %v790
    %v804 = vmul.f32 %v802, %v790
    %v805 = vadd.f32 %v803, 1e-05
    %v806 = vadd.f32 %v804, 1e-05
    %v807 = vrsqrt.pop %v805
    %v808 = vrsqrt.pop %v806
    %v809 = vmul.f32 %v793, %v807
    %v810 = vmul.f32 %v794, %v808
    %v812 = vlaneseq
    %v813 = vshrl.u32 %v812, 7
    %v814 = vsub.s32 0, %v813
    %v815 = vrot.slane %v780, %v814
    %v817 = vmul.f32 %v809, %v815
    %v818 = vmul.f32 %v810, %v815
    %v820 = vlaneseq
    %v821 = vshrl.u32 %v820, 7
    %v822 = vsub.s32 0, %v821
    %v823 = vrot.slane %v781, %v822
    %v825 = vadd.f32 %v817, %v823
    %v826 = vadd.f32 %v818, %v823
    %v827 = vld [vmem:[%s37] sm:$0xf]
    %v828 = vld [vmem:[%s37 + $0x4] sm:$0xf]
    %v829 = vld [vmem:[%s37 + $0x8] sm:$0xf]
    %v830 = vld [vmem:[%s37 + $0xc] sm:$0xf]
    %v831 = vld [vmem:[%s37 + $0x10] sm:$0xf]
    %v832 = vld [vmem:[%s37 + $0x14] sm:$0xf]
    %v833 = vld [vmem:[%s37 + $0x18] sm:$0xf]
    %v834 = vld [vmem:[%s37 + $0x1c] sm:$0xf]
    %v835 = vpack.c.bf16 %v826, %v825
    %v836 = vld [vmem:[%s39] sm:$0x1]
    %v838 = vlaneseq
    %v839 = vshrl.u32 %v838, 7
    %v840 = vsub.s32 0, %v839
    %v841 = vrot.slane %v836, %v840
    %v851 = vunpack.c.l.b16 %v827
    %v852 = vunpack.c.l.b16 %v828
    %v853 = vunpack.c.l.b16 %v829
    %v854 = vunpack.c.l.b16 %v830
    %v855 = vunpack.c.l.b16 %v831
    %v856 = vunpack.c.l.b16 %v832
    %v857 = vunpack.c.l.b16 %v833
    %v858 = vunpack.c.l.b16 %v834
    %v859 = vpack.c.b16 %v852, %v851
    %v860 = vpack.c.b16 %v854, %v853
    %v861 = vpack.c.b16 %v856, %v855
    %v862 = vpack.c.b16 %v858, %v857
    %v864 = vsel %vm367, %v835, 0
    %v867 = vsel %vm367, %v859, 0
    %v870 = vsel %vm367, %v860, 0
    %v873 = vsel %vm367, %v861, 0
    %v876 = vsel %vm367, %v862, 0
    %878 = vmatprep.subr.bf16.mxu0 0
    %879 = vmatpush1.bf16.xpose.msra.mxu0 %v867
    %880 = vmatprep.subr.bf16.mxu0 0
    %881 = vmatpush1.bf16.xpose.msra.mxu0 %v870
    %882 = vmatprep.subr.bf16.mxu0 0
    %883 = vmatpush1.bf16.xpose.msra.mxu0 %v873
    %884 = vmatprep.subr.bf16.mxu0 0
    %885 = vmatpush1.bf16.xpose.msra.mxu0 %v876
    %886 = vmatprep.subr.bf16.mxu0 0
    %887 = vmatpush1.bf16.xpose.msra.mxu0 0
    %888 = vmatprep.subr.bf16.mxu0 0
    %889 = vmatpush1.bf16.xpose.msra.mxu0 0
    %890 = vmatprep.subr.bf16.mxu0 0
    %891 = vmatpush1.bf16.xpose.msra.mxu0 0
    %892 = vmatprep.subr.bf16.mxu0 0
    %893 = vmatpush1.bf16.xpose.msra.mxu0 0
    %894 = vmatprep.subr.bf16.mxu0 0
    %895 = vmatpush1.bf16.xpose.msra.mxu0 0
    %896 = vmatprep.subr.bf16.mxu0 0
    %897 = vmatpush1.bf16.xpose.msra.mxu0 0
    %898 = vmatprep.subr.bf16.mxu0 0
    %899 = vmatpush1.bf16.xpose.msra.mxu0 0
    %900 = vmatprep.subr.bf16.mxu0 0
    %901 = vmatpush1.bf16.xpose.msra.mxu0 0
    %902 = vmatprep.subr.bf16.mxu0 0
    %903 = vmatpush1.bf16.xpose.msra.mxu0 0
    %904 = vmatprep.subr.bf16.mxu0 0
    %905 = vmatpush1.bf16.xpose.msra.mxu0 0
    %906 = vmatprep.subr.bf16.mxu0 0
    %907 = vmatpush1.bf16.xpose.msra.mxu0 0
    %908 = vmatprep.subr.bf16.mxu0 0
    %909 = vmatpush1.bf16.xpose.msra.mxu0 0
    %910 = vmatprep.mubr.bf16.mxu0 0
    %911 = vmatmul.mubr.bf16.gmra.mrb[0].mxu0 %v864
    %v912 = vpop.f32.mrb[0].mxu0
    %v913 = vadd.f32 %v841, %v912
    %v914 = vpop.f32.mrb[0].mxu0
    %v915 = vpop.f32.mrb[0].mxu0
    %v916 = vadd.f32 %v841, %v915
    %v917 = vpop.f32.mrb[0].mxu0
    %918 = vdwg.mxu0
    %v919 = vmax.f32 %v913, 0.0
    %v920 = vmax.f32 %v916, 0.0
    %v921 = vld [vmem:[%s41] sm:$0xf]
    %v922 = vld [vmem:[%s41 + $0x4] sm:$0xf]
    %v923 = vld [vmem:[%s41 + $0x8] sm:$0xf]
    %v924 = vld [vmem:[%s41 + $0xc] sm:$0xf]
    %v925 = vpack.c.bf16 %v920, %v919
    %v926 = vld [vmem:[%s43] sm:$0x1]
    %v928 = vlaneseq
    %v929 = vshrl.u32 %v928, 7
    %v930 = vsub.s32 0, %v929
    %v931 = vrot.slane %v926, %v930
    %v937 = vunpack.c.l.b16 %v921
    %v938 = vunpack.c.l.b16 %v922
    %v939 = vunpack.c.l.b16 %v923
    %v940 = vunpack.c.l.b16 %v924
    %v941 = vpack.c.b16 %v938, %v937
    %v942 = vpack.c.b16 %v940, %v939
    %v944 = vsel %vm580, %v925, 0
    %v947 = vsel %vm580, %v941, 0
    %v950 = vsel %vm580, %v942, 0
    %952 = vmatprep.subr.bf16.mxu0 0
    %953 = vmatpush1.bf16.xpose.msra.mxu0 %v947
    %954 = vmatprep.subr.bf16.mxu0 0
    %955 = vmatpush1.bf16.xpose.msra.mxu0 %v950
    %956 = vmatprep.subr.bf16.mxu0 0
    %957 = vmatpush1.bf16.xpose.msra.mxu0 0
    %958 = vmatprep.subr.bf16.mxu0 0
    %959 = vmatpush1.bf16.xpose.msra.mxu0 0
    %960 = vmatprep.subr.bf16.mxu0 0
    %961 = vmatpush1.bf16.xpose.msra.mxu0 0
    %962 = vmatprep.subr.bf16.mxu0 0
    %963 = vmatpush1.bf16.xpose.msra.mxu0 0
    %964 = vmatprep.subr.bf16.mxu0 0
    %965 = vmatpush1.bf16.xpose.msra.mxu0 0
    %966 = vmatprep.subr.bf16.mxu0 0
    %967 = vmatpush1.bf16.xpose.msra.mxu0 0
    %968 = vmatprep.subr.bf16.mxu0 0
    %969 = vmatpush1.bf16.xpose.msra.mxu0 0
    %970 = vmatprep.subr.bf16.mxu0 0
    %971 = vmatpush1.bf16.xpose.msra.mxu0 0
    %972 = vmatprep.subr.bf16.mxu0 0
    %973 = vmatpush1.bf16.xpose.msra.mxu0 0
    %974 = vmatprep.subr.bf16.mxu0 0
    %975 = vmatpush1.bf16.xpose.msra.mxu0 0
    %976 = vmatprep.subr.bf16.mxu0 0
    %977 = vmatpush1.bf16.xpose.msra.mxu0 0
    %978 = vmatprep.subr.bf16.mxu0 0
    %979 = vmatpush1.bf16.xpose.msra.mxu0 0
    %980 = vmatprep.subr.bf16.mxu0 0
    %981 = vmatpush1.bf16.xpose.msra.mxu0 0
    %982 = vmatprep.subr.bf16.mxu0 0
    %983 = vmatpush1.bf16.xpose.msra.mxu0 0
    %984 = vmatprep.mubr.bf16.mxu0 0
    %985 = vmatmul.mubr.bf16.gmra.mrb[0].mxu0 %v944
    %v986 = vpop.f32.mrb[0].mxu0
    %v987 = vadd.f32 %v931, %v986
    %v988 = vpop.f32.mrb[0].mxu0
    %v989 = vpop.f32.mrb[0].mxu0
    %v990 = vadd.f32 %v931, %v989
    %v991 = vpop.f32.mrb[0].mxu0
    %992 = vdwg.mxu0
    %v993 = vld [vmem:[%s45] sm:$0x1]
    %v994 = vld [vmem:[%s47] sm:$0x1]
    %v995 = vadd.f32 %v825, %v987
    %v996 = vadd.f32 %v826, %v990
    %v997 = vsel %vm367, %v995, 0.0
    %998 = vadd.xlane.f32.xlu0 %v997
    %v999 = vpop.xlane.xlu0 %998
    %v1000 = vsel %vm367, %v996, 0.0
    %1001 = vadd.xlane.f32.xlu0 %v1000
    %v1002 = vpop.xlane.xlu0 %1001
    %v1003 = vmul.f32 %v999, %v790
    %v1004 = vmul.f32 %v1002, %v790
    %v1005 = vsub.f32 %v995, %v1003
    %v1006 = vsub.f32 %v996, %v1004
    %v1007 = vmul.f32 %v1005, %v1005
    %v1008 = vmul.f32 %v1006, %v1006
    %v1009 = vsel %vm367, %v1007, 0.0
    %1010 = vadd.xlane.f32.xlu0 %v1009
    %v1011 = vpop.xlane.xlu0 %1010
    %v1012 = vsel %vm367, %v1008, 0.0
    %1013 = vadd.xlane.f32.xlu0 %v1012
    %v1014 = vpop.xlane.xlu0 %1013
    %v1015 = vmul.f32 %v1011, %v790
    %v1016 = vmul.f32 %v1014, %v790
    %v1017 = vadd.f32 %v1015, 1e-05
    %v1018 = vadd.f32 %v1016, 1e-05
    %v1019 = vrsqrt.pop %v1017
    %v1020 = vrsqrt.pop %v1018
    %v1021 = vmul.f32 %v1005, %v1019
    %v1022 = vmul.f32 %v1006, %v1020
    %v1024 = vlaneseq
    %v1025 = vshrl.u32 %v1024, 7
    %v1026 = vsub.s32 0, %v1025
    %v1027 = vrot.slane %v993, %v1026
    %v1029 = vmul.f32 %v1021, %v1027
    %v1030 = vmul.f32 %v1022, %v1027
    %v1032 = vlaneseq
    %v1033 = vshrl.u32 %v1032, 7
    %v1034 = vsub.s32 0, %v1033
    %v1035 = vrot.slane %v994, %v1034
    %v1037 = vadd.f32 %v1029, %v1035
    %v1038 = vadd.f32 %v1030, %v1035
    %s1039 = scalar_lea.vmem %s27, 48
    %v1040 = vld [vmem:[%s1039] sm:$0xf]
    %v1041 = vld [vmem:[%s1039 + $0x4] sm:$0xf]
    %v1042 = vld [vmem:[%s1039 + $0x8] sm:$0xf]
    %v1043 = vld [vmem:[%s1039 + $0xc] sm:$0xf]
    %v1044 = vld [vmem:[%s1039 + $0x10] sm:$0xf]
    %v1045 = vld [vmem:[%s1039 + $0x14] sm:$0xf]
    %v1046 = vld [vmem:[%s1039 + $0x18] sm:$0xf]
    %v1047 = vld [vmem:[%s1039 + $0x1c] sm:$0xf]
    %v1048 = vld [vmem:[%s1039 + $0x20] sm:$0xf]
    %v1049 = vld [vmem:[%s1039 + $0x24] sm:$0xf]
    %v1050 = vld [vmem:[%s1039 + $0x28] sm:$0xf]
    %v1051 = vld [vmem:[%s1039 + $0x2c] sm:$0xf]
    %v1052 = vpack.c.bf16 %v1038, %v1037
    %v1065 = vunpack.c.l.b16 %v1040
    %v1066 = vunpack.c.l.b16 %v1041
    %v1067 = vunpack.c.l.b16 %v1042
    %v1068 = vunpack.c.l.b16 %v1043
    %v1069 = vunpack.c.l.b16 %v1044
    %v1070 = vunpack.c.l.b16 %v1045
    %v1071 = vunpack.c.l.b16 %v1046
    %v1072 = vunpack.c.l.b16 %v1047
    %v1073 = vunpack.c.l.b16 %v1048
    %v1074 = vunpack.c.l.b16 %v1049
    %v1075 = vunpack.c.l.b16 %v1050
    %v1076 = vunpack.c.l.b16 %v1051
    %v1077 = vpack.c.b16 %v1066, %v1065
    %v1078 = vpack.c.b16 %v1068, %v1067
    %v1079 = vpack.c.b16 %v1070, %v1069
    %v1080 = vpack.c.b16 %v1072, %v1071
    %v1081 = vpack.c.b16 %v1074, %v1073
    %v1082 = vpack.c.b16 %v1076, %v1075
    %v1084 = vsel %vm367, %v1052, 0
    %v1087 = vsel %vm367, %v1077, 0
    %v1090 = vsel %vm367, %v1078, 0
    %v1093 = vsel %vm367, %v1079, 0
    %v1096 = vsel %vm367, %v1080, 0
    %v1099 = vsel %vm367, %v1081, 0
    %v1102 = vsel %vm367, %v1082, 0
    %1104 = vmatprep.subr.bf16.mxu0 0
    %1105 = vmatpush1.bf16.xpose.msra.mxu0 %v1087
    %1106 = vmatprep.subr.bf16.mxu0 0
    %1107 = vmatpush1.bf16.xpose.msra.mxu0 %v1090
    %1108 = vmatprep.subr.bf16.mxu0 0
    %1109 = vmatpush1.bf16.xpose.msra.mxu0 %v1093
    %1110 = vmatprep.subr.bf16.mxu0 0
    %1111 = vmatpush1.bf16.xpose.msra.mxu0 %v1096
    %1112 = vmatprep.subr.bf16.mxu0 0
    %1113 = vmatpush1.bf16.xpose.msra.mxu0 %v1099
    %1114 = vmatprep.subr.bf16.mxu0 0
    %1115 = vmatpush1.bf16.xpose.msra.mxu0 %v1102
    %1116 = vmatprep.subr.bf16.mxu0 0
    %1117 = vmatpush1.bf16.xpose.msra.mxu0 0
    %1118 = vmatprep.subr.bf16.mxu0 0
    %1119 = vmatpush1.bf16.xpose.msra.mxu0 0
    %1120 = vmatprep.subr.bf16.mxu0 0
    %1121 = vmatpush1.bf16.xpose.msra.mxu0 0
    %1122 = vmatprep.subr.bf16.mxu0 0
    %1123 = vmatpush1.bf16.xpose.msra.mxu0 0
    %1124 = vmatprep.subr.bf16.mxu0 0
    %1125 = vmatpush1.bf16.xpose.msra.mxu0 0
    %1126 = vmatprep.subr.bf16.mxu0 0
    %1127 = vmatpush1.bf16.xpose.msra.mxu0 0
    %1128 = vmatprep.subr.bf16.mxu0 0
    %1129 = vmatpush1.bf16.xpose.msra.mxu0 0
    %1130 = vmatprep.subr.bf16.mxu0 0
    %1131 = vmatpush1.bf16.xpose.msra.mxu0 0
    %1132 = vmatprep.subr.bf16.mxu0 0
    %1133 = vmatpush1.bf16.xpose.msra.mxu0 0
    %1134 = vmatprep.subr.bf16.mxu0 0
    %1135 = vmatpush1.bf16.xpose.msra.mxu0 0
    %1136 = vmatprep.mubr.bf16.mxu0 0
    %1137 = vmatmul.mubr.bf16.gmra.mrb[0].mxu0 %v1084
    %v1138 = vpop.f32.mrb[0].mxu0
    %v1139 = vadd.f32 0.0, %v1138
    %v1140 = vpop.f32.mrb[0].mxu0
    %v1141 = vpop.f32.mrb[0].mxu0
    %v1142 = vadd.f32 0.0, %v1141
    %v1143 = vpop.f32.mrb[0].mxu0
    %1144 = vdwg.mxu0
    %s1145 = scalar_lea.vmem %s29, 16
    %v1146 = vld [vmem:[%s1145] sm:$0xf]
    %v1147 = vld [vmem:[%s1145 + $0x4] sm:$0xf]
    %v1148 = vld [vmem:[%s1145 + $0x8] sm:$0xf]
    %v1149 = vld [vmem:[%s1145 + $0xc] sm:$0xf]
    %s1150 = scalar_lea.vmem %s31, 1
    %v1151 = vld [vmem:[%s1150] sm:$0x1]
    %v1152 = vmul.f32 %v1139, %v444
    %v1153 = vmul.f32 %v1142, %v446
    %v1154 = vmul.f32 %v1139, %v448
    %v1155 = vmul.f32 %v1142, %v450
    %v1156 = vmul.f32 %v1139, %v452
    %v1157 = vmul.f32 %v1142, %v454
    %v1158 = vmul.f32 %v1139, %v456
    %v1159 = vmul.f32 %v1142, %v458
    %v1160 = vmul.f32 %v1139, %v476
    %v1161 = vmul.f32 %v1142, %v478
    %v1162 = vmul.f32 %v1139, %v480
    %v1163 = vmul.f32 %v1142, %v482
    %v1164 = vmul.f32 %v1139, %v484
    %v1165 = vmul.f32 %v1142, %v486
    %v1166 = vmul.f32 %v1139, %v488
    %v1167 = vmul.f32 %v1142, %v490
    %v1168 = vpack.c.bf16 %v1142, %v1139
    %v1169 = vpack.c.bf16 %v1153, %v1152
    %v1170 = vpack.c.bf16 %v1155, %v1154
    %v1171 = vpack.c.bf16 %v1157, %v1156
    %v1172 = vpack.c.bf16 %v1159, %v1158
    %1177 = vrot.lane.b32.xlu0 %v1169, 96
    %v1178 = vpop.permute.xlu0 %1177
    %1179 = vrot.lane.b32.xlu0 %v1170, 96
    %v1180 = vpop.permute.xlu0 %1179
    %1181 = vrot.lane.b32.xlu0 %v1171, 96
    %v1182 = vpop.permute.xlu0 %1181
    %1183 = vrot.lane.b32.xlu0 %v1172, 96
    %v1184 = vpop.permute.xlu0 %1183
    %v1186 = vsel %vm367, %v1168, 0
    %v1189 = vsel %vm367, %v1178, 0
    %v1192 = vsel %vm367, %v1180, 0
    %v1195 = vsel %vm367, %v1182, 0
    %v1198 = vsel %vm367, %v1184, 0
    %1200 = vmatprep.subr.bf16.mxu0 0
    %1201 = vmatpush1.bf16.xpose.msra.mxu0 %v1189
    %1202 = vmatprep.subr.bf16.mxu0 0
    %1203 = vmatpush1.bf16.xpose.msra.mxu0 %v1192
    %1204 = vmatprep.subr.bf16.mxu0 0
    %1205 = vmatpush1.bf16.xpose.msra.mxu0 %v1195
    %1206 = vmatprep.subr.bf16.mxu0 0
    %1207 = vmatpush1.bf16.xpose.msra.mxu0 %v1198
    %1208 = vmatprep.subr.bf16.mxu0 0
    %1209 = vmatpush1.bf16.xpose.msra.mxu0 0
    %1210 = vmatprep.subr.bf16.mxu0 0
    %1211 = vmatpush1.bf16.xpose.msra.mxu0 0
    %1212 = vmatprep.subr.bf16.mxu0 0
    %1213 = vmatpush1.bf16.xpose.msra.mxu0 0
    %1214 = vmatprep.subr.bf16.mxu0 0
    %1215 = vmatpush1.bf16.xpose.msra.mxu0 0
    %1216 = vmatprep.subr.bf16.mxu0 0
    %1217 = vmatpush1.bf16.xpose.msra.mxu0 0
    %1218 = vmatprep.subr.bf16.mxu0 0
    %1219 = vmatpush1.bf16.xpose.msra.mxu0 0
    %1220 = vmatprep.subr.bf16.mxu0 0
    %1221 = vmatpush1.bf16.xpose.msra.mxu0 0
    %1222 = vmatprep.subr.bf16.mxu0 0
    %1223 = vmatpush1.bf16.xpose.msra.mxu0 0
    %1224 = vmatprep.subr.bf16.mxu0 0
    %1225 = vmatpush1.bf16.xpose.msra.mxu0 0
    %1226 = vmatprep.subr.bf16.mxu0 0
    %1227 = vmatpush1.bf16.xpose.msra.mxu0 0
    %1228 = vmatprep.subr.bf16.mxu0 0
    %1229 = vmatpush1.bf16.xpose.msra.mxu0 0
    %1230 = vmatprep.subr.bf16.mxu0 0
    %1231 = vmatpush1.bf16.xpose.msra.mxu0 0
    %1232 = vmatprep.mubr.bf16.mxu0 0
    %1233 = vmatmul.mubr.bf16.gmra.mrb[0].mxu0 %v1186
    %v1234 = vpop.f32.mrb[0].mxu0
    %v1235 = vadd.f32 %v216, %v1234
    %v1236 = vpop.f32.mrb[0].mxu0
    %v1237 = vpop.f32.mrb[0].mxu0
    %v1238 = vadd.f32 %v217, %v1237
    %v1239 = vpop.f32.mrb[0].mxu0
    %1240 = vdwg.mxu0
    %v1241 = vsel %vm580, %v1235, -inf
    %1242 = vmax.xlane.f32.xlu0 %v1241
    %v1243 = vpop.xlane.xlu0 %1242
    %v1244 = vsel %vm580, %v1238, -inf
    %1245 = vmax.xlane.f32.xlu0 %v1244
    %v1246 = vpop.xlane.xlu0 %1245
    %v1247 = vsub.f32 %v1235, %v1243
    %v1248 = vsub.f32 %v1238, %v1246
    %v1249 = vmul.f32 %v1247, 1.442695
    %v1250 = vpow.pop %v1249
    %v1251 = vmul.f32 %v1248, 1.442695
    %v1252 = vpow.pop %v1251
    %v1253 = vpack.c.bf16 %v1252, %v1250
    %v1255 = vsel %vm580, %v1253, 0
    %1257 = vmatprep.subr.bf16.mxu0 0
    %1258 = vmatpush1.bf16.msra.mxu0 %v594
    %1259 = vmatprep.subr.bf16.mxu0 0
    %1260 = vmatpush1.bf16.msra.mxu0 %v595
    %1261 = vmatprep.subr.bf16.mxu0 0
    %1262 = vmatpush1.bf16.msra.mxu0 %v596
    %1263 = vmatprep.subr.bf16.mxu0 0
    %1264 = vmatpush1.bf16.msra.mxu0 %v597
    %1265 = vmatprep.subr.bf16.mxu0 0
    %1266 = vmatpush1.bf16.msra.mxu0 0
    %1267 = vmatprep.subr.bf16.mxu0 0
    %1268 = vmatpush1.bf16.msra.mxu0 0
    %1269 = vmatprep.subr.bf16.mxu0 0
    %1270 = vmatpush1.bf16.msra.mxu0 0
    %1271 = vmatprep.subr.bf16.mxu0 0
    %1272 = vmatpush1.bf16.msra.mxu0 0
    %1273 = vmatprep.subr.bf16.mxu0 0
    %1274 = vmatpush1.bf16.msra.mxu0 0
    %1275 = vmatprep.subr.bf16.mxu0 0
    %1276 = vmatpush1.bf16.msra.mxu0 0
    %1277 = vmatprep.subr.bf16.mxu0 0
    %1278 = vmatpush1.bf16.msra.mxu0 0
    %1279 = vmatprep.subr.bf16.mxu0 0
    %1280 = vmatpush1.bf16.msra.mxu0 0
    %1281 = vmatprep.subr.bf16.mxu0 0
    %1282 = vmatpush1.bf16.msra.mxu0 0
    %1283 = vmatprep.subr.bf16.mxu0 0
    %1284 = vmatpush1.bf16.msra.mxu0 0
    %1285 = vmatprep.subr.bf16.mxu0 0
    %1286 = vmatpush1.bf16.msra.mxu0 0
    %1287 = vmatprep.subr.bf16.mxu0 0
    %1288 = vmatpush1.bf16.msra.mxu0 0
    %1289 = vmatprep.mubr.bf16.mxu0 0
    %1290 = vmatmul.mubr.bf16.gmra.mrb[0].mxu0 %v1255
    %v1291 = vpop.f32.mrb[0].mxu0
    %v1292 = vadd.f32 0.0, %v1291
    %v1293 = vpop.f32.mrb[0].mxu0
    %v1294 = vpop.f32.mrb[0].mxu0
    %v1295 = vadd.f32 0.0, %v1294
    %v1296 = vpop.f32.mrb[0].mxu0
    %1297 = vdwg.mxu0
    %v1298 = vmax.f32 %v1292, 1e-30
    %v1299 = vmax.f32 %v1295, 1e-30
    %v1300 = vrcp.pop %v1298
    %v1301 = vrcp.pop %v1299
    %v1302 = vmul.f32 %v1250, %v1300
    %v1303 = vmul.f32 %v1252, %v1301
    %v1304 = vpack.c.bf16 %v1303, %v1302
    %v1305 = vpack.c.bf16 %v1161, %v1160
    %v1306 = vpack.c.bf16 %v1163, %v1162
    %v1307 = vpack.c.bf16 %v1165, %v1164
    %v1308 = vpack.c.bf16 %v1167, %v1166
    %1313 = vrot.lane.b32.xlu0 %v1305, 64
    %v1314 = vpop.permute.xlu0 %1313
    %1315 = vrot.lane.b32.xlu0 %v1306, 64
    %v1316 = vpop.permute.xlu0 %1315
    %1317 = vrot.lane.b32.xlu0 %v1307, 64
    %v1318 = vpop.permute.xlu0 %1317
    %1319 = vrot.lane.b32.xlu0 %v1308, 64
    %v1320 = vpop.permute.xlu0 %1319
    %v1326 = vsel %vm580, %v1304, 0
    %1328 = vmatprep.subr.bf16.mxu0 0
    %1329 = vmatpush1.bf16.msra.mxu0 %v1314
    %1330 = vmatprep.subr.bf16.mxu0 0
    %1331 = vmatpush1.bf16.msra.mxu0 %v1316
    %1332 = vmatprep.subr.bf16.mxu0 0
    %1333 = vmatpush1.bf16.msra.mxu0 %v1318
    %1334 = vmatprep.subr.bf16.mxu0 0
    %1335 = vmatpush1.bf16.msra.mxu0 %v1320
    %1336 = vmatprep.subr.bf16.mxu0 0
    %1337 = vmatpush1.bf16.msra.mxu0 0
    %1338 = vmatprep.subr.bf16.mxu0 0
    %1339 = vmatpush1.bf16.msra.mxu0 0
    %1340 = vmatprep.subr.bf16.mxu0 0
    %1341 = vmatpush1.bf16.msra.mxu0 0
    %1342 = vmatprep.subr.bf16.mxu0 0
    %1343 = vmatpush1.bf16.msra.mxu0 0
    %1344 = vmatprep.subr.bf16.mxu0 0
    %1345 = vmatpush1.bf16.msra.mxu0 0
    %1346 = vmatprep.subr.bf16.mxu0 0
    %1347 = vmatpush1.bf16.msra.mxu0 0
    %1348 = vmatprep.subr.bf16.mxu0 0
    %1349 = vmatpush1.bf16.msra.mxu0 0
    %1350 = vmatprep.subr.bf16.mxu0 0
    %1351 = vmatpush1.bf16.msra.mxu0 0
    %1352 = vmatprep.subr.bf16.mxu0 0
    %1353 = vmatpush1.bf16.msra.mxu0 0
    %1354 = vmatprep.subr.bf16.mxu0 0
    %1355 = vmatpush1.bf16.msra.mxu0 0
    %1356 = vmatprep.subr.bf16.mxu0 0
    %1357 = vmatpush1.bf16.msra.mxu0 0
    %1358 = vmatprep.subr.bf16.mxu0 0
    %1359 = vmatpush1.bf16.msra.mxu0 0
    %1360 = vmatprep.mubr.bf16.mxu0 0
    %1361 = vmatmul.mubr.bf16.gmra.mrb[0].mxu0 %v1326
    %v1362 = vpop.f32.mrb[0].mxu0
    %v1363 = vadd.f32 0.0, %v1362
    %v1364 = vpop.f32.mrb[0].mxu0
    %v1365 = vpop.f32.mrb[0].mxu0
    %v1366 = vadd.f32 0.0, %v1365
    %v1367 = vpop.f32.mrb[0].mxu0
    %1368 = vdwg.mxu0
    %v1369 = vpack.c.bf16 %v1366, %v1363
    %v1371 = vlaneseq
    %v1372 = vshrl.u32 %v1371, 7
    %v1373 = vsub.s32 0, %v1372
    %v1374 = vrot.slane %v1151, %v1373
    %v1380 = vunpack.c.l.b16 %v1146
    %v1381 = vunpack.c.l.b16 %v1147
    %v1382 = vunpack.c.l.b16 %v1148
    %v1383 = vunpack.c.l.b16 %v1149
    %v1384 = vpack.c.b16 %v1381, %v1380
    %v1385 = vpack.c.b16 %v1383, %v1382
    %v1387 = vsel %vm367, %v1369, 0
    %v1390 = vsel %vm367, %v1384, 0
    %v1393 = vsel %vm367, %v1385, 0
    %1395 = vmatprep.subr.bf16.mxu0 0
    %1396 = vmatpush1.bf16.xpose.msra.mxu0 %v1390
    %1397 = vmatprep.subr.bf16.mxu0 0
    %1398 = vmatpush1.bf16.xpose.msra.mxu0 %v1393
    %1399 = vmatprep.subr.bf16.mxu0 0
    %1400 = vmatpush1.bf16.xpose.msra.mxu0 0
    %1401 = vmatprep.subr.bf16.mxu0 0
    %1402 = vmatpush1.bf16.xpose.msra.mxu0 0
    %1403 = vmatprep.subr.bf16.mxu0 0
    %1404 = vmatpush1.bf16.xpose.msra.mxu0 0
    %1405 = vmatprep.subr.bf16.mxu0 0
    %1406 = vmatpush1.bf16.xpose.msra.mxu0 0
    %1407 = vmatprep.subr.bf16.mxu0 0
    %1408 = vmatpush1.bf16.xpose.msra.mxu0 0
    %1409 = vmatprep.subr.bf16.mxu0 0
    %1410 = vmatpush1.bf16.xpose.msra.mxu0 0
    %1411 = vmatprep.subr.bf16.mxu0 0
    %1412 = vmatpush1.bf16.xpose.msra.mxu0 0
    %1413 = vmatprep.subr.bf16.mxu0 0
    %1414 = vmatpush1.bf16.xpose.msra.mxu0 0
    %1415 = vmatprep.subr.bf16.mxu0 0
    %1416 = vmatpush1.bf16.xpose.msra.mxu0 0
    %1417 = vmatprep.subr.bf16.mxu0 0
    %1418 = vmatpush1.bf16.xpose.msra.mxu0 0
    %1419 = vmatprep.subr.bf16.mxu0 0
    %1420 = vmatpush1.bf16.xpose.msra.mxu0 0
    %1421 = vmatprep.subr.bf16.mxu0 0
    %1422 = vmatpush1.bf16.xpose.msra.mxu0 0
    %1423 = vmatprep.subr.bf16.mxu0 0
    %1424 = vmatpush1.bf16.xpose.msra.mxu0 0
    %1425 = vmatprep.subr.bf16.mxu0 0
    %1426 = vmatpush1.bf16.xpose.msra.mxu0 0
    %1427 = vmatprep.mubr.bf16.mxu0 0
    %1428 = vmatmul.mubr.bf16.gmra.mrb[0].mxu0 %v1387
    %v1429 = vpop.f32.mrb[0].mxu0
    %v1430 = vadd.f32 %v1374, %v1429
    %v1431 = vpop.f32.mrb[0].mxu0
    %v1432 = vpop.f32.mrb[0].mxu0
    %v1433 = vadd.f32 %v1374, %v1432
    %v1434 = vpop.f32.mrb[0].mxu0
    %1435 = vdwg.mxu0
    %s1436 = scalar_lea.vmem %s33, 1
    %v1437 = vld [vmem:[%s1436] sm:$0x1]
    %s1438 = scalar_lea.vmem %s35, 1
    %v1439 = vld [vmem:[%s1438] sm:$0x1]
    %v1440 = vadd.f32 %v1037, %v1430
    %v1441 = vadd.f32 %v1038, %v1433
    %v1442 = vsel %vm367, %v1440, 0.0
    %1443 = vadd.xlane.f32.xlu0 %v1442
    %v1444 = vpop.xlane.xlu0 %1443
    %v1445 = vsel %vm367, %v1441, 0.0
    %1446 = vadd.xlane.f32.xlu0 %v1445
    %v1447 = vpop.xlane.xlu0 %1446
    %v1448 = vmul.f32 %v1444, %v790
    %v1449 = vmul.f32 %v1447, %v790
    %v1450 = vsub.f32 %v1440, %v1448
    %v1451 = vsub.f32 %v1441, %v1449
    %v1452 = vmul.f32 %v1450, %v1450
    %v1453 = vmul.f32 %v1451, %v1451
    %v1454 = vsel %vm367, %v1452, 0.0
    %1455 = vadd.xlane.f32.xlu0 %v1454
    %v1456 = vpop.xlane.xlu0 %1455
    %v1457 = vsel %vm367, %v1453, 0.0
    %1458 = vadd.xlane.f32.xlu0 %v1457
    %v1459 = vpop.xlane.xlu0 %1458
    %v1460 = vmul.f32 %v1456, %v790
    %v1461 = vmul.f32 %v1459, %v790
    %v1462 = vadd.f32 %v1460, 1e-05
    %v1463 = vadd.f32 %v1461, 1e-05
    %v1464 = vrsqrt.pop %v1462
    %v1465 = vrsqrt.pop %v1463
    %v1466 = vmul.f32 %v1450, %v1464
    %v1467 = vmul.f32 %v1451, %v1465
    %v1469 = vlaneseq
    %v1470 = vshrl.u32 %v1469, 7
    %v1471 = vsub.s32 0, %v1470
    %v1472 = vrot.slane %v1437, %v1471
    %v1474 = vmul.f32 %v1466, %v1472
    %v1475 = vmul.f32 %v1467, %v1472
    %v1477 = vlaneseq
    %v1478 = vshrl.u32 %v1477, 7
    %v1479 = vsub.s32 0, %v1478
    %v1480 = vrot.slane %v1439, %v1479
    %v1482 = vadd.f32 %v1474, %v1480
    %v1483 = vadd.f32 %v1475, %v1480
    %s1484 = scalar_lea.vmem %s37, 32
    %v1485 = vld [vmem:[%s1484] sm:$0xf]
    %v1486 = vld [vmem:[%s1484 + $0x4] sm:$0xf]
    %v1487 = vld [vmem:[%s1484 + $0x8] sm:$0xf]
    %v1488 = vld [vmem:[%s1484 + $0xc] sm:$0xf]
    %v1489 = vld [vmem:[%s1484 + $0x10] sm:$0xf]
    %v1490 = vld [vmem:[%s1484 + $0x14] sm:$0xf]
    %v1491 = vld [vmem:[%s1484 + $0x18] sm:$0xf]
    %v1492 = vld [vmem:[%s1484 + $0x1c] sm:$0xf]
    %v1493 = vpack.c.bf16 %v1483, %v1482
    %s1494 = scalar_lea.vmem %s39, 1
    %v1495 = vld [vmem:[%s1494] sm:$0x1]
    %v1497 = vlaneseq
    %v1498 = vshrl.u32 %v1497, 7
    %v1499 = vsub.s32 0, %v1498
    %v1500 = vrot.slane %v1495, %v1499
    %v1510 = vunpack.c.l.b16 %v1485
    %v1511 = vunpack.c.l.b16 %v1486
    %v1512 = vunpack.c.l.b16 %v1487
    %v1513 = vunpack.c.l.b16 %v1488
    %v1514 = vunpack.c.l.b16 %v1489
    %v1515 = vunpack.c.l.b16 %v1490
    %v1516 = vunpack.c.l.b16 %v1491
    %v1517 = vunpack.c.l.b16 %v1492
    %v1518 = vpack.c.b16 %v1511, %v1510
    %v1519 = vpack.c.b16 %v1513, %v1512
    %v1520 = vpack.c.b16 %v1515, %v1514
    %v1521 = vpack.c.b16 %v1517, %v1516
    %v1523 = vsel %vm367, %v1493, 0
    %v1526 = vsel %vm367, %v1518, 0
    %v1529 = vsel %vm367, %v1519, 0
    %v1532 = vsel %vm367, %v1520, 0
    %v1535 = vsel %vm367, %v1521, 0
    %1537 = vmatprep.subr.bf16.mxu0 0
    %1538 = vmatpush1.bf16.xpose.msra.mxu0 %v1526
    %1539 = vmatprep.subr.bf16.mxu0 0
    %1540 = vmatpush1.bf16.xpose.msra.mxu0 %v1529
    %1541 = vmatprep.subr.bf16.mxu0 0
    %1542 = vmatpush1.bf16.xpose.msra.mxu0 %v1532
    %1543 = vmatprep.subr.bf16.mxu0 0
    %1544 = vmatpush1.bf16.xpose.msra.mxu0 %v1535
    %1545 = vmatprep.subr.bf16.mxu0 0
    %1546 = vmatpush1.bf16.xpose.msra.mxu0 0
    %1547 = vmatprep.subr.bf16.mxu0 0
    %1548 = vmatpush1.bf16.xpose.msra.mxu0 0
    %1549 = vmatprep.subr.bf16.mxu0 0
    %1550 = vmatpush1.bf16.xpose.msra.mxu0 0
    %1551 = vmatprep.subr.bf16.mxu0 0
    %1552 = vmatpush1.bf16.xpose.msra.mxu0 0
    %1553 = vmatprep.subr.bf16.mxu0 0
    %1554 = vmatpush1.bf16.xpose.msra.mxu0 0
    %1555 = vmatprep.subr.bf16.mxu0 0
    %1556 = vmatpush1.bf16.xpose.msra.mxu0 0
    %1557 = vmatprep.subr.bf16.mxu0 0
    %1558 = vmatpush1.bf16.xpose.msra.mxu0 0
    %1559 = vmatprep.subr.bf16.mxu0 0
    %1560 = vmatpush1.bf16.xpose.msra.mxu0 0
    %1561 = vmatprep.subr.bf16.mxu0 0
    %1562 = vmatpush1.bf16.xpose.msra.mxu0 0
    %1563 = vmatprep.subr.bf16.mxu0 0
    %1564 = vmatpush1.bf16.xpose.msra.mxu0 0
    %1565 = vmatprep.subr.bf16.mxu0 0
    %1566 = vmatpush1.bf16.xpose.msra.mxu0 0
    %1567 = vmatprep.subr.bf16.mxu0 0
    %1568 = vmatpush1.bf16.xpose.msra.mxu0 0
    %1569 = vmatprep.mubr.bf16.mxu0 0
    %1570 = vmatmul.mubr.bf16.gmra.mrb[0].mxu0 %v1523
    %v1571 = vpop.f32.mrb[0].mxu0
    %v1572 = vadd.f32 %v1500, %v1571
    %v1573 = vpop.f32.mrb[0].mxu0
    %v1574 = vpop.f32.mrb[0].mxu0
    %v1575 = vadd.f32 %v1500, %v1574
    %v1576 = vpop.f32.mrb[0].mxu0
    %1577 = vdwg.mxu0
    %v1578 = vmax.f32 %v1572, 0.0
    %v1579 = vmax.f32 %v1575, 0.0
    %s1580 = scalar_lea.vmem %s41, 16
    %v1581 = vld [vmem:[%s1580] sm:$0xf]
    %v1582 = vld [vmem:[%s1580 + $0x4] sm:$0xf]
    %v1583 = vld [vmem:[%s1580 + $0x8] sm:$0xf]
    %v1584 = vld [vmem:[%s1580 + $0xc] sm:$0xf]
    %v1585 = vpack.c.bf16 %v1579, %v1578
    %s1586 = scalar_lea.vmem %s43, 1
    %v1587 = vld [vmem:[%s1586] sm:$0x1]
    %v1589 = vlaneseq
    %v1590 = vshrl.u32 %v1589, 7
    %v1591 = vsub.s32 0, %v1590
    %v1592 = vrot.slane %v1587, %v1591
    %v1598 = vunpack.c.l.b16 %v1581
    %v1599 = vunpack.c.l.b16 %v1582
    %v1600 = vunpack.c.l.b16 %v1583
    %v1601 = vunpack.c.l.b16 %v1584
    %v1602 = vpack.c.b16 %v1599, %v1598
    %v1603 = vpack.c.b16 %v1601, %v1600
    %v1605 = vsel %vm580, %v1585, 0
    %v1608 = vsel %vm580, %v1602, 0
    %v1611 = vsel %vm580, %v1603, 0
    %1613 = vmatprep.subr.bf16.mxu0 0
    %1614 = vmatpush1.bf16.xpose.msra.mxu0 %v1608
    %1615 = vmatprep.subr.bf16.mxu0 0
    %1616 = vmatpush1.bf16.xpose.msra.mxu0 %v1611
    %1617 = vmatprep.subr.bf16.mxu0 0
    %1618 = vmatpush1.bf16.xpose.msra.mxu0 0
    %1619 = vmatprep.subr.bf16.mxu0 0
    %1620 = vmatpush1.bf16.xpose.msra.mxu0 0
    %1621 = vmatprep.subr.bf16.mxu0 0
    %1622 = vmatpush1.bf16.xpose.msra.mxu0 0
    %1623 = vmatprep.subr.bf16.mxu0 0
    %1624 = vmatpush1.bf16.xpose.msra.mxu0 0
    %1625 = vmatprep.subr.bf16.mxu0 0
    %1626 = vmatpush1.bf16.xpose.msra.mxu0 0
    %1627 = vmatprep.subr.bf16.mxu0 0
    %1628 = vmatpush1.bf16.xpose.msra.mxu0 0
    %1629 = vmatprep.subr.bf16.mxu0 0
    %1630 = vmatpush1.bf16.xpose.msra.mxu0 0
    %1631 = vmatprep.subr.bf16.mxu0 0
    %1632 = vmatpush1.bf16.xpose.msra.mxu0 0
    %1633 = vmatprep.subr.bf16.mxu0 0
    %1634 = vmatpush1.bf16.xpose.msra.mxu0 0
    %1635 = vmatprep.subr.bf16.mxu0 0
    %1636 = vmatpush1.bf16.xpose.msra.mxu0 0
    %1637 = vmatprep.subr.bf16.mxu0 0
    %1638 = vmatpush1.bf16.xpose.msra.mxu0 0
    %1639 = vmatprep.subr.bf16.mxu0 0
    %1640 = vmatpush1.bf16.xpose.msra.mxu0 0
    %1641 = vmatprep.subr.bf16.mxu0 0
    %1642 = vmatpush1.bf16.xpose.msra.mxu0 0
    %1643 = vmatprep.subr.bf16.mxu0 0
    %1644 = vmatpush1.bf16.xpose.msra.mxu0 0
    %1645 = vmatprep.mubr.bf16.mxu0 0
    %1646 = vmatmul.mubr.bf16.gmra.mrb[0].mxu0 %v1605
    %v1647 = vpop.f32.mrb[0].mxu0
    %v1648 = vadd.f32 %v1592, %v1647
    %v1649 = vpop.f32.mrb[0].mxu0
    %v1650 = vpop.f32.mrb[0].mxu0
    %v1651 = vadd.f32 %v1592, %v1650
    %v1652 = vpop.f32.mrb[0].mxu0
    %1653 = vdwg.mxu0
    %s1654 = scalar_lea.vmem %s45, 1
    %v1655 = vld [vmem:[%s1654] sm:$0x1]
    %s1656 = scalar_lea.vmem %s47, 1
    %v1657 = vld [vmem:[%s1656] sm:$0x1]
    %v1658 = vadd.f32 %v1482, %v1648
    %v1659 = vadd.f32 %v1483, %v1651
    %v1660 = vsel %vm367, %v1658, 0.0
    %1661 = vadd.xlane.f32.xlu0 %v1660
    %v1662 = vpop.xlane.xlu0 %1661
    %v1663 = vsel %vm367, %v1659, 0.0
    %1664 = vadd.xlane.f32.xlu0 %v1663
    %v1665 = vpop.xlane.xlu0 %1664
    %v1666 = vmul.f32 %v1662, %v790
    %v1667 = vmul.f32 %v1665, %v790
    %v1668 = vsub.f32 %v1658, %v1666
    %v1669 = vsub.f32 %v1659, %v1667
    %v1670 = vmul.f32 %v1668, %v1668
    %v1671 = vmul.f32 %v1669, %v1669
    %v1672 = vsel %vm367, %v1670, 0.0
    %1673 = vadd.xlane.f32.xlu0 %v1672
    %v1674 = vpop.xlane.xlu0 %1673
    %v1675 = vsel %vm367, %v1671, 0.0
    %1676 = vadd.xlane.f32.xlu0 %v1675
    %v1677 = vpop.xlane.xlu0 %1676
    %v1678 = vmul.f32 %v1674, %v790
    %v1679 = vmul.f32 %v1677, %v790
    %v1680 = vadd.f32 %v1678, 1e-05
    %v1681 = vadd.f32 %v1679, 1e-05
    %v1682 = vrsqrt.pop %v1680
    %v1683 = vrsqrt.pop %v1681
    %v1684 = vmul.f32 %v1668, %v1682
    %v1685 = vmul.f32 %v1669, %v1683
    %v1687 = vlaneseq
    %v1688 = vshrl.u32 %v1687, 7
    %v1689 = vsub.s32 0, %v1688
    %v1690 = vrot.slane %v1655, %v1689
    %v1692 = vmul.f32 %v1684, %v1690
    %v1693 = vmul.f32 %v1685, %v1690
    %v1695 = vlaneseq
    %v1696 = vshrl.u32 %v1695, 7
    %v1697 = vsub.s32 0, %v1696
    %v1698 = vrot.slane %v1657, %v1697
    %v1700 = vadd.f32 %v1692, %v1698
    %v1701 = vadd.f32 %v1693, %v1698
    %v1702 = vld [vmem:[%s51] sm:$0xf]
    %v1703 = vld [vmem:[%s51 + $0x4] sm:$0xf]
    %v1704 = vld [vmem:[%s51 + $0x8] sm:$0xf]
    %v1705 = vld [vmem:[%s51 + $0xc] sm:$0xf]
    %v1706 = vld [vmem:[%s51 + $0x10] sm:$0xf]
    %v1707 = vld [vmem:[%s51 + $0x14] sm:$0xf]
    %v1708 = vld [vmem:[%s51 + $0x18] sm:$0xf]
    %v1709 = vld [vmem:[%s51 + $0x1c] sm:$0xf]
    %v1710 = vld [vmem:[%s51 + $0x20] sm:$0xf]
    %v1711 = vld [vmem:[%s51 + $0x24] sm:$0xf]
    %v1712 = vld [vmem:[%s51 + $0x28] sm:$0xf]
    %v1713 = vld [vmem:[%s51 + $0x2c] sm:$0xf]
    %v1714 = vld [vmem:[%s51 + $0x30] sm:$0xf]
    %v1715 = vld [vmem:[%s51 + $0x34] sm:$0xf]
    %v1716 = vld [vmem:[%s51 + $0x38] sm:$0xf]
    %v1717 = vld [vmem:[%s51 + $0x3c] sm:$0xf]
    %v1718 = vpack.c.bf16 %v1701, %v1700
    %v1735 = vunpack.c.l.b16 %v1702
    %v1736 = vunpack.c.l.b16 %v1703
    %v1737 = vunpack.c.l.b16 %v1704
    %v1738 = vunpack.c.l.b16 %v1705
    %v1739 = vunpack.c.l.b16 %v1706
    %v1740 = vunpack.c.l.b16 %v1707
    %v1741 = vunpack.c.l.b16 %v1708
    %v1742 = vunpack.c.l.b16 %v1709
    %v1743 = vunpack.c.l.b16 %v1710
    %v1744 = vunpack.c.l.b16 %v1711
    %v1745 = vunpack.c.l.b16 %v1712
    %v1746 = vunpack.c.l.b16 %v1713
    %v1747 = vunpack.c.l.b16 %v1714
    %v1748 = vunpack.c.l.b16 %v1715
    %v1749 = vunpack.c.l.b16 %v1716
    %v1750 = vunpack.c.l.b16 %v1717
    %v1751 = vpack.c.b16 %v1736, %v1735
    %v1752 = vpack.c.b16 %v1738, %v1737
    %v1753 = vpack.c.b16 %v1740, %v1739
    %v1754 = vpack.c.b16 %v1742, %v1741
    %v1755 = vpack.c.b16 %v1744, %v1743
    %v1756 = vpack.c.b16 %v1746, %v1745
    %v1757 = vpack.c.b16 %v1748, %v1747
    %v1758 = vpack.c.b16 %v1750, %v1749
    %v1760 = vsel %vm367, %v1718, 0
    %v1763 = vsel %vm367, %v1751, 0
    %v1766 = vsel %vm367, %v1752, 0
    %v1769 = vsel %vm367, %v1753, 0
    %v1772 = vsel %vm367, %v1754, 0
    %v1775 = vsel %vm367, %v1755, 0
    %v1778 = vsel %vm367, %v1756, 0
    %v1781 = vsel %vm367, %v1757, 0
    %v1784 = vsel %vm367, %v1758, 0
    %1786 = vmatprep.subr.bf16.mxu0 0
    %1787 = vmatpush1.bf16.xpose.msra.mxu0 %v1763
    %1788 = vmatprep.subr.bf16.mxu0 0
    %1789 = vmatpush1.bf16.xpose.msra.mxu0 %v1766
    %1790 = vmatprep.subr.bf16.mxu0 0
    %1791 = vmatpush1.bf16.xpose.msra.mxu0 %v1769
    %1792 = vmatprep.subr.bf16.mxu0 0
    %1793 = vmatpush1.bf16.xpose.msra.mxu0 %v1772
    %1794 = vmatprep.subr.bf16.mxu0 0
    %1795 = vmatpush1.bf16.xpose.msra.mxu0 %v1775
    %1796 = vmatprep.subr.bf16.mxu0 0
    %1797 = vmatpush1.bf16.xpose.msra.mxu0 %v1778
    %1798 = vmatprep.subr.bf16.mxu0 0
    %1799 = vmatpush1.bf16.xpose.msra.mxu0 %v1781
    %1800 = vmatprep.subr.bf16.mxu0 0
    %1801 = vmatpush1.bf16.xpose.msra.mxu0 %v1784
    %1802 = vmatprep.subr.bf16.mxu0 0
    %1803 = vmatpush1.bf16.xpose.msra.mxu0 0
    %1804 = vmatprep.subr.bf16.mxu0 0
    %1805 = vmatpush1.bf16.xpose.msra.mxu0 0
    %1806 = vmatprep.subr.bf16.mxu0 0
    %1807 = vmatpush1.bf16.xpose.msra.mxu0 0
    %1808 = vmatprep.subr.bf16.mxu0 0
    %1809 = vmatpush1.bf16.xpose.msra.mxu0 0
    %1810 = vmatprep.subr.bf16.mxu0 0
    %1811 = vmatpush1.bf16.xpose.msra.mxu0 0
    %1812 = vmatprep.subr.bf16.mxu0 0
    %1813 = vmatpush1.bf16.xpose.msra.mxu0 0
    %1814 = vmatprep.subr.bf16.mxu0 0
    %1815 = vmatpush1.bf16.xpose.msra.mxu0 0
    %1816 = vmatprep.subr.bf16.mxu0 0
    %1817 = vmatpush1.bf16.xpose.msra.mxu0 0
    %1818 = vmatprep.mubr.bf16.mxu0 0
    %1819 = vmatmul.mubr.bf16.gmra.mrb[0].mxu0 %v1760
    %v1820 = vpop.f32.mrb[0].mxu0
    %v1821 = vadd.f32 0.0, %v1820
    %v1822 = vpop.f32.mrb[0].mxu0
    %v1823 = vpop.f32.mrb[0].mxu0
    %v1824 = vadd.f32 0.0, %v1823
    %v1825 = vpop.f32.mrb[0].mxu0
    %1826 = vdwg.mxu0
    %v1827 = vld [vmem:[%s3] sm:$0xff]
    %v1828 = vld [vmem:[%s3 + $0x8] sm:$0xff]
    %1829 = vset.pattern.permute.xlu0 0
    %1830 = vperm.xlu0 %1829, %v1827
    %v1831 = vpop.permute.xlu0 %1830
    %1832 = vset.pattern.permute.xlu0 0
    %1833 = vperm.xlu0 %1832, %v1828
    %v1834 = vpop.permute.xlu0 %1833
    %vm1835 = vcmp.eq.s32.totalorder %v223, %v1831
    %vm1836 = vcmp.eq.s32.totalorder %v223, %v1834
    %v1837 = vsel %vm1835, 1, 0
    %v1838 = vsel %vm1836, 1, 0
    %v1839 = vcvt.s32.f32 %v1837
    %v1840 = vcvt.s32.f32 %v1838
    %v1841 = vld [vmem:[%s49] sm:$0xff]
    %v1842 = vld [vmem:[%s49 + $0x8] sm:$0xff]
    %v1843 = vld [vmem:[%s9] sm:$0xff]
    %v1844 = vld [vmem:[%s9 + $0x8] sm:$0xff]
    %v1846 = vsel %vm242, %v1839, 0
    %v1849 = vsel %vm242, %v1840, 0
    %1851 = vmatprep.subr.mxu0 0.0
    %1852 = vmatpush1.msra.mxu0 %v1841
    %1853 = vmatprep.subr.mxu0 0.0
    %1854 = vmatpush1.msra.mxu0 %v1842
    %1855 = vmatprep.subr.mxu0 0.0
    %1856 = vmatpush1.msra.mxu0 0.0
    %1857 = vmatprep.subr.mxu0 0.0
    %1858 = vmatpush1.msra.mxu0 0.0
    %1859 = vmatprep.subr.mxu0 0.0
    %1860 = vmatpush1.msra.mxu0 0.0
    %1861 = vmatprep.subr.mxu0 0.0
    %1862 = vmatpush1.msra.mxu0 0.0
    %1863 = vmatprep.subr.mxu0 0.0
    %1864 = vmatpush1.msra.mxu0 0.0
    %1865 = vmatprep.subr.mxu0 0.0
    %1866 = vmatpush1.msra.mxu0 0.0
    %1867 = vmatprep.subr.mxu0 0.0
    %1868 = vmatpush1.msra.mxu0 0.0
    %1869 = vmatprep.subr.mxu0 0.0
    %1870 = vmatpush1.msra.mxu0 0.0
    %1871 = vmatprep.subr.mxu0 0.0
    %1872 = vmatpush1.msra.mxu0 0.0
    %1873 = vmatprep.subr.mxu0 0.0
    %1874 = vmatpush1.msra.mxu0 0.0
    %1875 = vmatprep.subr.mxu0 0.0
    %1876 = vmatpush1.msra.mxu0 0.0
    %1877 = vmatprep.subr.mxu0 0.0
    %1878 = vmatpush1.msra.mxu0 0.0
    %1879 = vmatprep.subr.mxu0 0.0
    %1880 = vmatpush1.msra.mxu0 0.0
    %1881 = vmatprep.subr.mxu0 0.0
    %1882 = vmatpush1.msra.mxu0 0.0
    %1883 = vmatprep.subr.mxu0 0.0
    %1884 = vmatpush1.msra.mxu0 0.0
    %1885 = vmatprep.subr.mxu0 0.0
    %1886 = vmatpush1.msra.mxu0 0.0
    %1887 = vmatprep.subr.mxu0 0.0
    %1888 = vmatpush1.msra.mxu0 0.0
    %1889 = vmatprep.subr.mxu0 0.0
    %1890 = vmatpush1.msra.mxu0 0.0
    %1891 = vmatprep.subr.mxu0 0.0
    %1892 = vmatpush1.msra.mxu0 0.0
    %1893 = vmatprep.subr.mxu0 0.0
    %1894 = vmatpush1.msra.mxu0 0.0
    %1895 = vmatprep.subr.mxu0 0.0
    %1896 = vmatpush1.msra.mxu0 0.0
    %1897 = vmatprep.subr.mxu0 0.0
    %1898 = vmatpush1.msra.mxu0 0.0
    %1899 = vmatprep.subr.mxu0 0.0
    %1900 = vmatpush1.msra.mxu0 0.0
    %1901 = vmatprep.subr.mxu0 0.0
    %1902 = vmatpush1.msra.mxu0 0.0
    %1903 = vmatprep.subr.mxu0 0.0
    %1904 = vmatpush1.msra.mxu0 0.0
    %1905 = vmatprep.subr.mxu0 0.0
    %1906 = vmatpush1.msra.mxu0 0.0
    %1907 = vmatprep.subr.mxu0 0.0
    %1908 = vmatpush1.msra.mxu0 0.0
    %1909 = vmatprep.subr.mxu0 0.0
    %1910 = vmatpush1.msra.mxu0 0.0
    %1911 = vmatprep.subr.mxu0 0.0
    %1912 = vmatpush1.msra.mxu0 0.0
    %1913 = vmatprep.subr.mxu0 0.0
    %1914 = vmatpush1.msra.mxu0 0.0
    %1915 = vmatprep.mubr.f32.mxu0 0.0
    %1916 = vmatmul.mubr.f32.gmra.mrb[0].mxu0 %v1846
    %v1917 = vpop.f32.mrb[0].mxu0
    %v1918 = vadd.f32 %v1843, %v1917
    %v1919 = vpop.f32.mrb[0].mxu0
    %1920 = vmatprep.mubr.f32.mxu0 0.0
    %1921 = vmatmul.mubr.f32.gmra.mrb[0].mxu0 %v1849
    %v1922 = vpop.f32.mrb[0].mxu0
    %v1923 = vadd.f32 %v1844, %v1922
    %v1924 = vpop.f32.mrb[0].mxu0
    %1925 = vdwg.mxu0
    %v1926 = vld [vmem:[%s53] sm:$0xf]
    %v1927 = vld [vmem:[%s53 + $0x4] sm:$0xf]
    %v1928 = vld [vmem:[%s53 + $0x8] sm:$0xf]
    %v1929 = vld [vmem:[%s53 + $0xc] sm:$0xf]
    %v1930 = vld [vmem:[%s53 + $0x10] sm:$0xf]
    %v1931 = vld [vmem:[%s53 + $0x14] sm:$0xf]
    %v1932 = vld [vmem:[%s53 + $0x18] sm:$0xf]
    %v1933 = vld [vmem:[%s53 + $0x1c] sm:$0xf]
    %v1934 = vld [vmem:[%s53 + $0x20] sm:$0xf]
    %v1935 = vld [vmem:[%s53 + $0x24] sm:$0xf]
    %v1936 = vld [vmem:[%s53 + $0x28] sm:$0xf]
    %v1937 = vld [vmem:[%s53 + $0x2c] sm:$0xf]
    %v1938 = vpack.c.bf16 %v1923, %v1918
    %v1951 = vunpack.c.l.b16 %v1926
    %v1952 = vunpack.c.l.b16 %v1927
    %v1953 = vunpack.c.l.b16 %v1928
    %v1954 = vunpack.c.l.b16 %v1929
    %v1955 = vunpack.c.l.b16 %v1930
    %v1956 = vunpack.c.l.b16 %v1931
    %v1957 = vunpack.c.l.b16 %v1932
    %v1958 = vunpack.c.l.b16 %v1933
    %v1959 = vunpack.c.l.b16 %v1934
    %v1960 = vunpack.c.l.b16 %v1935
    %v1961 = vunpack.c.l.b16 %v1936
    %v1962 = vunpack.c.l.b16 %v1937
    %v1963 = vpack.c.b16 %v1952, %v1951
    %v1964 = vpack.c.b16 %v1954, %v1953
    %v1965 = vpack.c.b16 %v1956, %v1955
    %v1966 = vpack.c.b16 %v1958, %v1957
    %v1967 = vpack.c.b16 %v1960, %v1959
    %v1968 = vpack.c.b16 %v1962, %v1961
    %v1970 = vsel %vm367, %v1938, 0
    %v1973 = vsel %vm367, %v1963, 0
    %v1976 = vsel %vm367, %v1964, 0
    %v1979 = vsel %vm367, %v1965, 0
    %v1982 = vsel %vm367, %v1966, 0
    %v1985 = vsel %vm367, %v1967, 0
    %v1988 = vsel %vm367, %v1968, 0
    %1990 = vmatprep.subr.bf16.mxu0 0
    %1991 = vmatpush1.bf16.xpose.msra.mxu0 %v1973
    %1992 = vmatprep.subr.bf16.mxu0 0
    %1993 = vmatpush1.bf16.xpose.msra.mxu0 %v1976
    %1994 = vmatprep.subr.bf16.mxu0 0
    %1995 = vmatpush1.bf16.xpose.msra.mxu0 %v1979
    %1996 = vmatprep.subr.bf16.mxu0 0
    %1997 = vmatpush1.bf16.xpose.msra.mxu0 %v1982
    %1998 = vmatprep.subr.bf16.mxu0 0
    %1999 = vmatpush1.bf16.xpose.msra.mxu0 %v1985
    %2000 = vmatprep.subr.bf16.mxu0 0
    %2001 = vmatpush1.bf16.xpose.msra.mxu0 %v1988
    %2002 = vmatprep.subr.bf16.mxu0 0
    %2003 = vmatpush1.bf16.xpose.msra.mxu0 0
    %2004 = vmatprep.subr.bf16.mxu0 0
    %2005 = vmatpush1.bf16.xpose.msra.mxu0 0
    %2006 = vmatprep.subr.bf16.mxu0 0
    %2007 = vmatpush1.bf16.xpose.msra.mxu0 0
    %2008 = vmatprep.subr.bf16.mxu0 0
    %2009 = vmatpush1.bf16.xpose.msra.mxu0 0
    %2010 = vmatprep.subr.bf16.mxu0 0
    %2011 = vmatpush1.bf16.xpose.msra.mxu0 0
    %2012 = vmatprep.subr.bf16.mxu0 0
    %2013 = vmatpush1.bf16.xpose.msra.mxu0 0
    %2014 = vmatprep.subr.bf16.mxu0 0
    %2015 = vmatpush1.bf16.xpose.msra.mxu0 0
    %2016 = vmatprep.subr.bf16.mxu0 0
    %2017 = vmatpush1.bf16.xpose.msra.mxu0 0
    %2018 = vmatprep.subr.bf16.mxu0 0
    %2019 = vmatpush1.bf16.xpose.msra.mxu0 0
    %2020 = vmatprep.subr.bf16.mxu0 0
    %2021 = vmatpush1.bf16.xpose.msra.mxu0 0
    %2022 = vmatprep.mubr.bf16.mxu0 0
    %2023 = vmatmul.mubr.bf16.gmra.mrb[0].mxu0 %v1970
    %v2024 = vpop.f32.mrb[0].mxu0
    %v2025 = vadd.f32 0.0, %v2024
    %v2026 = vpop.f32.mrb[0].mxu0
    %v2027 = vpop.f32.mrb[0].mxu0
    %v2028 = vadd.f32 0.0, %v2027
    %v2029 = vpop.f32.mrb[0].mxu0
    %2030 = vdwg.mxu0
    %v2031 = vld [vmem:[%s55] sm:$0xf]
    %v2032 = vld [vmem:[%s55 + $0x4] sm:$0xf]
    %v2033 = vld [vmem:[%s55 + $0x8] sm:$0xf]
    %v2034 = vld [vmem:[%s55 + $0xc] sm:$0xf]
    %v2035 = vld [vmem:[%s57] sm:$0x1]
    %2044 = vrot.lane.b32.xlu0 %v192, 32
    %v2045 = vpop.permute.xlu0 %2044
    %2046 = vrot.lane.b32.xlu0 %v193, 32
    %v2047 = vpop.permute.xlu0 %2046
    %2048 = vrot.lane.b32.xlu0 %v194, 32
    %v2049 = vpop.permute.xlu0 %2048
    %2050 = vrot.lane.b32.xlu0 %v195, 32
    %v2051 = vpop.permute.xlu0 %2050
    %2052 = vrot.lane.b32.xlu0 %v196, 32
    %v2053 = vpop.permute.xlu0 %2052
    %2054 = vrot.lane.b32.xlu0 %v197, 32
    %v2055 = vpop.permute.xlu0 %2054
    %2056 = vrot.lane.b32.xlu0 %v198, 32
    %v2057 = vpop.permute.xlu0 %2056
    %2058 = vrot.lane.b32.xlu0 %v199, 32
    %v2059 = vpop.permute.xlu0 %2058
    %v2068 = vmul.f32 %v2025, %v2045
    %v2069 = vmul.f32 %v2028, %v2047
    %v2070 = vmul.f32 %v2025, %v2049
    %v2071 = vmul.f32 %v2028, %v2051
    %v2072 = vmul.f32 %v2025, %v2053
    %v2073 = vmul.f32 %v2028, %v2055
    %v2074 = vmul.f32 %v2025, %v2057
    %v2075 = vmul.f32 %v2028, %v2059
    %2076 = vrot.lane.b32.xlu0 %v192, 64
    %v2077 = vpop.permute.xlu0 %2076
    %2078 = vrot.lane.b32.xlu0 %v193, 64
    %v2079 = vpop.permute.xlu0 %2078
    %2080 = vrot.lane.b32.xlu0 %v194, 64
    %v2081 = vpop.permute.xlu0 %2080
    %2082 = vrot.lane.b32.xlu0 %v195, 64
    %v2083 = vpop.permute.xlu0 %2082
    %2084 = vrot.lane.b32.xlu0 %v196, 64
    %v2085 = vpop.permute.xlu0 %2084
    %2086 = vrot.lane.b32.xlu0 %v197, 64
    %v2087 = vpop.permute.xlu0 %2086
    %2088 = vrot.lane.b32.xlu0 %v198, 64
    %v2089 = vpop.permute.xlu0 %2088
    %2090 = vrot.lane.b32.xlu0 %v199, 64
    %v2091 = vpop.permute.xlu0 %2090
    %v2100 = vmul.f32 %v2025, %v2077
    %v2101 = vmul.f32 %v2028, %v2079
    %v2102 = vmul.f32 %v2025, %v2081
    %v2103 = vmul.f32 %v2028, %v2083
    %v2104 = vmul.f32 %v2025, %v2085
    %v2105 = vmul.f32 %v2028, %v2087
    %v2106 = vmul.f32 %v2025, %v2089
    %v2107 = vmul.f32 %v2028, %v2091
    %v2108 = vpack.c.bf16 %v2028, %v2025
    %v2109 = vpack.c.bf16 %v2069, %v2068
    %v2110 = vpack.c.bf16 %v2071, %v2070
    %v2111 = vpack.c.bf16 %v2073, %v2072
    %v2112 = vpack.c.bf16 %v2075, %v2074
    %2117 = vrot.lane.b32.xlu0 %v2109, 96
    %v2118 = vpop.permute.xlu0 %2117
    %2119 = vrot.lane.b32.xlu0 %v2110, 96
    %v2120 = vpop.permute.xlu0 %2119
    %2121 = vrot.lane.b32.xlu0 %v2111, 96
    %v2122 = vpop.permute.xlu0 %2121
    %2123 = vrot.lane.b32.xlu0 %v2112, 96
    %v2124 = vpop.permute.xlu0 %2123
    %v2126 = vsel %vm367, %v2108, 0
    %v2129 = vsel %vm367, %v2118, 0
    %v2132 = vsel %vm367, %v2120, 0
    %v2135 = vsel %vm367, %v2122, 0
    %v2138 = vsel %vm367, %v2124, 0
    %2140 = vmatprep.subr.bf16.mxu0 0
    %2141 = vmatpush1.bf16.xpose.msra.mxu0 %v2129
    %2142 = vmatprep.subr.bf16.mxu0 0
    %2143 = vmatpush1.bf16.xpose.msra.mxu0 %v2132
    %2144 = vmatprep.subr.bf16.mxu0 0
    %2145 = vmatpush1.bf16.xpose.msra.mxu0 %v2135
    %2146 = vmatprep.subr.bf16.mxu0 0
    %2147 = vmatpush1.bf16.xpose.msra.mxu0 %v2138
    %2148 = vmatprep.subr.bf16.mxu0 0
    %2149 = vmatpush1.bf16.xpose.msra.mxu0 0
    %2150 = vmatprep.subr.bf16.mxu0 0
    %2151 = vmatpush1.bf16.xpose.msra.mxu0 0
    %2152 = vmatprep.subr.bf16.mxu0 0
    %2153 = vmatpush1.bf16.xpose.msra.mxu0 0
    %2154 = vmatprep.subr.bf16.mxu0 0
    %2155 = vmatpush1.bf16.xpose.msra.mxu0 0
    %2156 = vmatprep.subr.bf16.mxu0 0
    %2157 = vmatpush1.bf16.xpose.msra.mxu0 0
    %2158 = vmatprep.subr.bf16.mxu0 0
    %2159 = vmatpush1.bf16.xpose.msra.mxu0 0
    %2160 = vmatprep.subr.bf16.mxu0 0
    %2161 = vmatpush1.bf16.xpose.msra.mxu0 0
    %2162 = vmatprep.subr.bf16.mxu0 0
    %2163 = vmatpush1.bf16.xpose.msra.mxu0 0
    %2164 = vmatprep.subr.bf16.mxu0 0
    %2165 = vmatpush1.bf16.xpose.msra.mxu0 0
    %2166 = vmatprep.subr.bf16.mxu0 0
    %2167 = vmatpush1.bf16.xpose.msra.mxu0 0
    %2168 = vmatprep.subr.bf16.mxu0 0
    %2169 = vmatpush1.bf16.xpose.msra.mxu0 0
    %2170 = vmatprep.subr.bf16.mxu0 0
    %2171 = vmatpush1.bf16.xpose.msra.mxu0 0
    %2172 = vmatprep.mubr.bf16.mxu0 0
    %2173 = vmatmul.mubr.bf16.gmra.mrb[0].mxu0 %v2126
    %v2174 = vpop.f32.mrb[0].mxu0
    %v2175 = vadd.f32 %v218, %v2174
    %v2176 = vpop.f32.mrb[0].mxu0
    %v2177 = vpop.f32.mrb[0].mxu0
    %v2178 = vadd.f32 %v219, %v2177
    %v2179 = vpop.f32.mrb[0].mxu0
    %2180 = vdwg.mxu0
    %v2181 = vsel %vm580, %v2175, -inf
    %2182 = vmax.xlane.f32.xlu0 %v2181
    %v2183 = vpop.xlane.xlu0 %2182
    %v2184 = vsel %vm580, %v2178, -inf
    %2185 = vmax.xlane.f32.xlu0 %v2184
    %v2186 = vpop.xlane.xlu0 %2185
    %v2187 = vsub.f32 %v2175, %v2183
    %v2188 = vsub.f32 %v2178, %v2186
    %v2189 = vmul.f32 %v2187, 1.442695
    %v2190 = vpow.pop %v2189
    %v2191 = vmul.f32 %v2188, 1.442695
    %v2192 = vpow.pop %v2191
    %v2193 = vpack.c.bf16 %v2192, %v2190
    %v2194 = vpack.c.bf16 %v209, %v208
    %v2195 = vpack.c.bf16 %v211, %v210
    %v2196 = vpack.c.bf16 %v213, %v212
    %v2197 = vpack.c.bf16 %v215, %v214
    %v2199 = vsel %vm580, %v2193, 0
    %2201 = vmatprep.subr.bf16.mxu0 0
    %2202 = vmatpush1.bf16.msra.mxu0 %v2194
    %2203 = vmatprep.subr.bf16.mxu0 0
    %2204 = vmatpush1.bf16.msra.mxu0 %v2195
    %2205 = vmatprep.subr.bf16.mxu0 0
    %2206 = vmatpush1.bf16.msra.mxu0 %v2196
    %2207 = vmatprep.subr.bf16.mxu0 0
    %2208 = vmatpush1.bf16.msra.mxu0 %v2197
    %2209 = vmatprep.subr.bf16.mxu0 0
    %2210 = vmatpush1.bf16.msra.mxu0 0
    %2211 = vmatprep.subr.bf16.mxu0 0
    %2212 = vmatpush1.bf16.msra.mxu0 0
    %2213 = vmatprep.subr.bf16.mxu0 0
    %2214 = vmatpush1.bf16.msra.mxu0 0
    %2215 = vmatprep.subr.bf16.mxu0 0
    %2216 = vmatpush1.bf16.msra.mxu0 0
    %2217 = vmatprep.subr.bf16.mxu0 0
    %2218 = vmatpush1.bf16.msra.mxu0 0
    %2219 = vmatprep.subr.bf16.mxu0 0
    %2220 = vmatpush1.bf16.msra.mxu0 0
    %2221 = vmatprep.subr.bf16.mxu0 0
    %2222 = vmatpush1.bf16.msra.mxu0 0
    %2223 = vmatprep.subr.bf16.mxu0 0
    %2224 = vmatpush1.bf16.msra.mxu0 0
    %2225 = vmatprep.subr.bf16.mxu0 0
    %2226 = vmatpush1.bf16.msra.mxu0 0
    %2227 = vmatprep.subr.bf16.mxu0 0
    %2228 = vmatpush1.bf16.msra.mxu0 0
    %2229 = vmatprep.subr.bf16.mxu0 0
    %2230 = vmatpush1.bf16.msra.mxu0 0
    %2231 = vmatprep.subr.bf16.mxu0 0
    %2232 = vmatpush1.bf16.msra.mxu0 0
    %2233 = vmatprep.mubr.bf16.mxu0 0
    %2234 = vmatmul.mubr.bf16.gmra.mrb[0].mxu0 %v2199
    %v2235 = vpop.f32.mrb[0].mxu0
    %v2236 = vadd.f32 0.0, %v2235
    %v2237 = vpop.f32.mrb[0].mxu0
    %v2238 = vpop.f32.mrb[0].mxu0
    %v2239 = vadd.f32 0.0, %v2238
    %v2240 = vpop.f32.mrb[0].mxu0
    %2241 = vdwg.mxu0
    %v2242 = vmax.f32 %v2236, 1e-30
    %v2243 = vmax.f32 %v2239, 1e-30
    %v2244 = vrcp.pop %v2242
    %v2245 = vrcp.pop %v2243
    %v2246 = vmul.f32 %v2190, %v2244
    %v2247 = vmul.f32 %v2192, %v2245
    %v2248 = vpack.c.bf16 %v2247, %v2246
    %v2249 = vpack.c.bf16 %v2101, %v2100
    %v2250 = vpack.c.bf16 %v2103, %v2102
    %v2251 = vpack.c.bf16 %v2105, %v2104
    %v2252 = vpack.c.bf16 %v2107, %v2106
    %2257 = vrot.lane.b32.xlu0 %v2249, 64
    %v2258 = vpop.permute.xlu0 %2257
    %2259 = vrot.lane.b32.xlu0 %v2250, 64
    %v2260 = vpop.permute.xlu0 %2259
    %2261 = vrot.lane.b32.xlu0 %v2251, 64
    %v2262 = vpop.permute.xlu0 %2261
    %2263 = vrot.lane.b32.xlu0 %v2252, 64
    %v2264 = vpop.permute.xlu0 %2263
    %v2270 = vsel %vm580, %v2248, 0
    %2272 = vmatprep.subr.bf16.mxu0 0
    %2273 = vmatpush1.bf16.msra.mxu0 %v2258
    %2274 = vmatprep.subr.bf16.mxu0 0
    %2275 = vmatpush1.bf16.msra.mxu0 %v2260
    %2276 = vmatprep.subr.bf16.mxu0 0
    %2277 = vmatpush1.bf16.msra.mxu0 %v2262
    %2278 = vmatprep.subr.bf16.mxu0 0
    %2279 = vmatpush1.bf16.msra.mxu0 %v2264
    %2280 = vmatprep.subr.bf16.mxu0 0
    %2281 = vmatpush1.bf16.msra.mxu0 0
    %2282 = vmatprep.subr.bf16.mxu0 0
    %2283 = vmatpush1.bf16.msra.mxu0 0
    %2284 = vmatprep.subr.bf16.mxu0 0
    %2285 = vmatpush1.bf16.msra.mxu0 0
    %2286 = vmatprep.subr.bf16.mxu0 0
    %2287 = vmatpush1.bf16.msra.mxu0 0
    %2288 = vmatprep.subr.bf16.mxu0 0
    %2289 = vmatpush1.bf16.msra.mxu0 0
    %2290 = vmatprep.subr.bf16.mxu0 0
    %2291 = vmatpush1.bf16.msra.mxu0 0
    %2292 = vmatprep.subr.bf16.mxu0 0
    %2293 = vmatpush1.bf16.msra.mxu0 0
    %2294 = vmatprep.subr.bf16.mxu0 0
    %2295 = vmatpush1.bf16.msra.mxu0 0
    %2296 = vmatprep.subr.bf16.mxu0 0
    %2297 = vmatpush1.bf16.msra.mxu0 0
    %2298 = vmatprep.subr.bf16.mxu0 0
    %2299 = vmatpush1.bf16.msra.mxu0 0
    %2300 = vmatprep.subr.bf16.mxu0 0
    %2301 = vmatpush1.bf16.msra.mxu0 0
    %2302 = vmatprep.subr.bf16.mxu0 0
    %2303 = vmatpush1.bf16.msra.mxu0 0
    %2304 = vmatprep.mubr.bf16.mxu0 0
    %2305 = vmatmul.mubr.bf16.gmra.mrb[0].mxu0 %v2270
    %v2306 = vpop.f32.mrb[0].mxu0
    %v2307 = vadd.f32 0.0, %v2306
    %v2308 = vpop.f32.mrb[0].mxu0
    %v2309 = vpop.f32.mrb[0].mxu0
    %v2310 = vadd.f32 0.0, %v2309
    %v2311 = vpop.f32.mrb[0].mxu0
    %2312 = vdwg.mxu0
    %v2313 = vpack.c.bf16 %v2310, %v2307
    %v2315 = vlaneseq
    %v2316 = vshrl.u32 %v2315, 7
    %v2317 = vsub.s32 0, %v2316
    %v2318 = vrot.slane %v2035, %v2317
    %v2324 = vunpack.c.l.b16 %v2031
    %v2325 = vunpack.c.l.b16 %v2032
    %v2326 = vunpack.c.l.b16 %v2033
    %v2327 = vunpack.c.l.b16 %v2034
    %v2328 = vpack.c.b16 %v2325, %v2324
    %v2329 = vpack.c.b16 %v2327, %v2326
    %v2331 = vsel %vm367, %v2313, 0
    %v2334 = vsel %vm367, %v2328, 0
    %v2337 = vsel %vm367, %v2329, 0
    %2339 = vmatprep.subr.bf16.mxu0 0
    %2340 = vmatpush1.bf16.xpose.msra.mxu0 %v2334
    %2341 = vmatprep.subr.bf16.mxu0 0
    %2342 = vmatpush1.bf16.xpose.msra.mxu0 %v2337
    %2343 = vmatprep.subr.bf16.mxu0 0
    %2344 = vmatpush1.bf16.xpose.msra.mxu0 0
    %2345 = vmatprep.subr.bf16.mxu0 0
    %2346 = vmatpush1.bf16.xpose.msra.mxu0 0
    %2347 = vmatprep.subr.bf16.mxu0 0
    %2348 = vmatpush1.bf16.xpose.msra.mxu0 0
    %2349 = vmatprep.subr.bf16.mxu0 0
    %2350 = vmatpush1.bf16.xpose.msra.mxu0 0
    %2351 = vmatprep.subr.bf16.mxu0 0
    %2352 = vmatpush1.bf16.xpose.msra.mxu0 0
    %2353 = vmatprep.subr.bf16.mxu0 0
    %2354 = vmatpush1.bf16.xpose.msra.mxu0 0
    %2355 = vmatprep.subr.bf16.mxu0 0
    %2356 = vmatpush1.bf16.xpose.msra.mxu0 0
    %2357 = vmatprep.subr.bf16.mxu0 0
    %2358 = vmatpush1.bf16.xpose.msra.mxu0 0
    %2359 = vmatprep.subr.bf16.mxu0 0
    %2360 = vmatpush1.bf16.xpose.msra.mxu0 0
    %2361 = vmatprep.subr.bf16.mxu0 0
    %2362 = vmatpush1.bf16.xpose.msra.mxu0 0
    %2363 = vmatprep.subr.bf16.mxu0 0
    %2364 = vmatpush1.bf16.xpose.msra.mxu0 0
    %2365 = vmatprep.subr.bf16.mxu0 0
    %2366 = vmatpush1.bf16.xpose.msra.mxu0 0
    %2367 = vmatprep.subr.bf16.mxu0 0
    %2368 = vmatpush1.bf16.xpose.msra.mxu0 0
    %2369 = vmatprep.subr.bf16.mxu0 0
    %2370 = vmatpush1.bf16.xpose.msra.mxu0 0
    %2371 = vmatprep.mubr.bf16.mxu0 0
    %2372 = vmatmul.mubr.bf16.gmra.mrb[0].mxu0 %v2331
    %v2373 = vpop.f32.mrb[0].mxu0
    %v2374 = vadd.f32 %v2318, %v2373
    %v2375 = vpop.f32.mrb[0].mxu0
    %v2376 = vpop.f32.mrb[0].mxu0
    %v2377 = vadd.f32 %v2318, %v2376
    %v2378 = vpop.f32.mrb[0].mxu0
    %2379 = vdwg.mxu0
    %v2380 = vld [vmem:[%s59] sm:$0x1]
    %v2381 = vld [vmem:[%s61] sm:$0x1]
    %v2382 = vadd.f32 %v1918, %v2374
    %v2383 = vadd.f32 %v1923, %v2377
    %v2384 = vsel %vm367, %v2382, 0.0
    %2385 = vadd.xlane.f32.xlu0 %v2384
    %v2386 = vpop.xlane.xlu0 %2385
    %v2387 = vsel %vm367, %v2383, 0.0
    %2388 = vadd.xlane.f32.xlu0 %v2387
    %v2389 = vpop.xlane.xlu0 %2388
    %v2390 = vmul.f32 %v2386, %v790
    %v2391 = vmul.f32 %v2389, %v790
    %v2392 = vsub.f32 %v2382, %v2390
    %v2393 = vsub.f32 %v2383, %v2391
    %v2394 = vmul.f32 %v2392, %v2392
    %v2395 = vmul.f32 %v2393, %v2393
    %v2396 = vsel %vm367, %v2394, 0.0
    %2397 = vadd.xlane.f32.xlu0 %v2396
    %v2398 = vpop.xlane.xlu0 %2397
    %v2399 = vsel %vm367, %v2395, 0.0
    %2400 = vadd.xlane.f32.xlu0 %v2399
    %v2401 = vpop.xlane.xlu0 %2400
    %v2402 = vmul.f32 %v2398, %v790
    %v2403 = vmul.f32 %v2401, %v790
    %v2404 = vadd.f32 %v2402, 1e-05
    %v2405 = vadd.f32 %v2403, 1e-05
    %v2406 = vrsqrt.pop %v2404
    %v2407 = vrsqrt.pop %v2405
    %v2408 = vmul.f32 %v2392, %v2406
    %v2409 = vmul.f32 %v2393, %v2407
    %v2411 = vlaneseq
    %v2412 = vshrl.u32 %v2411, 7
    %v2413 = vsub.s32 0, %v2412
    %v2414 = vrot.slane %v2380, %v2413
    %v2416 = vmul.f32 %v2408, %v2414
    %v2417 = vmul.f32 %v2409, %v2414
    %v2419 = vlaneseq
    %v2420 = vshrl.u32 %v2419, 7
    %v2421 = vsub.s32 0, %v2420
    %v2422 = vrot.slane %v2381, %v2421
    %v2424 = vadd.f32 %v2416, %v2422
    %v2425 = vadd.f32 %v2417, %v2422
    %v2426 = vld [vmem:[%s63] sm:$0xf]
    %v2427 = vld [vmem:[%s63 + $0x4] sm:$0xf]
    %v2428 = vld [vmem:[%s63 + $0x8] sm:$0xf]
    %v2429 = vld [vmem:[%s63 + $0xc] sm:$0xf]
    %v2430 = vpack.c.bf16 %v2425, %v2424
    %v2435 = vunpack.c.l.b16 %v2426
    %v2436 = vunpack.c.l.b16 %v2427
    %v2437 = vunpack.c.l.b16 %v2428
    %v2438 = vunpack.c.l.b16 %v2429
    %v2439 = vpack.c.b16 %v2436, %v2435
    %v2440 = vpack.c.b16 %v2438, %v2437
    %v2442 = vsel %vm367, %v2430, 0
    %v2445 = vsel %vm367, %v2439, 0
    %v2448 = vsel %vm367, %v2440, 0
    %2450 = vmatprep.subr.bf16.mxu0 0
    %2451 = vmatpush1.bf16.xpose.msra.mxu0 %v2445
    %2452 = vmatprep.subr.bf16.mxu0 0
    %2453 = vmatpush1.bf16.xpose.msra.mxu0 %v2448
    %2454 = vmatprep.subr.bf16.mxu0 0
    %2455 = vmatpush1.bf16.xpose.msra.mxu0 0
    %2456 = vmatprep.subr.bf16.mxu0 0
    %2457 = vmatpush1.bf16.xpose.msra.mxu0 0
    %2458 = vmatprep.subr.bf16.mxu0 0
    %2459 = vmatpush1.bf16.xpose.msra.mxu0 0
    %2460 = vmatprep.subr.bf16.mxu0 0
    %2461 = vmatpush1.bf16.xpose.msra.mxu0 0
    %2462 = vmatprep.subr.bf16.mxu0 0
    %2463 = vmatpush1.bf16.xpose.msra.mxu0 0
    %2464 = vmatprep.subr.bf16.mxu0 0
    %2465 = vmatpush1.bf16.xpose.msra.mxu0 0
    %2466 = vmatprep.subr.bf16.mxu0 0
    %2467 = vmatpush1.bf16.xpose.msra.mxu0 0
    %2468 = vmatprep.subr.bf16.mxu0 0
    %2469 = vmatpush1.bf16.xpose.msra.mxu0 0
    %2470 = vmatprep.subr.bf16.mxu0 0
    %2471 = vmatpush1.bf16.xpose.msra.mxu0 0
    %2472 = vmatprep.subr.bf16.mxu0 0
    %2473 = vmatpush1.bf16.xpose.msra.mxu0 0
    %2474 = vmatprep.subr.bf16.mxu0 0
    %2475 = vmatpush1.bf16.xpose.msra.mxu0 0
    %2476 = vmatprep.subr.bf16.mxu0 0
    %2477 = vmatpush1.bf16.xpose.msra.mxu0 0
    %2478 = vmatprep.subr.bf16.mxu0 0
    %2479 = vmatpush1.bf16.xpose.msra.mxu0 0
    %2480 = vmatprep.subr.bf16.mxu0 0
    %2481 = vmatpush1.bf16.xpose.msra.mxu0 0
    %2482 = vmatprep.mubr.bf16.mxu0 0
    %2483 = vmatmul.mubr.bf16.gmra.mrb[0].mxu0 %v2442
    %v2484 = vpop.f32.mrb[0].mxu0
    %v2485 = vadd.f32 0.0, %v2484
    %v2486 = vpop.f32.mrb[0].mxu0
    %v2487 = vpop.f32.mrb[0].mxu0
    %v2488 = vadd.f32 0.0, %v2487
    %v2489 = vpop.f32.mrb[0].mxu0
    %2490 = vdwg.mxu0
    %v2491 = vld [vmem:[%s65] sm:$0xf]
    %v2492 = vld [vmem:[%s65 + $0x4] sm:$0xf]
    %v2493 = vld [vmem:[%s65 + $0x8] sm:$0xf]
    %v2494 = vld [vmem:[%s65 + $0xc] sm:$0xf]
    %v2495 = vld [vmem:[%s67] sm:$0x1]
    %v2496 = vmul.f32 %v1821, %v184
    %v2497 = vmul.f32 %v1824, %v185
    %v2498 = vmul.f32 %v1821, %v186
    %v2499 = vmul.f32 %v1824, %v187
    %v2500 = vmul.f32 %v1821, %v188
    %v2501 = vmul.f32 %v1824, %v189
    %v2502 = vmul.f32 %v1821, %v190
    %v2503 = vmul.f32 %v1824, %v191
    %v2504 = vmul.f32 %v1821, %v444
    %v2505 = vmul.f32 %v1824, %v446
    %v2506 = vmul.f32 %v1821, %v448
    %v2507 = vmul.f32 %v1824, %v450
    %v2508 = vmul.f32 %v1821, %v452
    %v2509 = vmul.f32 %v1824, %v454
    %v2510 = vmul.f32 %v1821, %v456
    %v2511 = vmul.f32 %v1824, %v458
    %v2512 = vpack.c.bf16 %v2488, %v2485
    %v2513 = vpack.c.bf16 %v2497, %v2496
    %v2514 = vpack.c.bf16 %v2499, %v2498
    %v2515 = vpack.c.bf16 %v2501, %v2500
    %v2516 = vpack.c.bf16 %v2503, %v2502
    %v2518 = vsel %vm367, %v2512, 0
    %v2521 = vsel %vm367, %v2513, 0
    %v2524 = vsel %vm367, %v2514, 0
    %v2527 = vsel %vm367, %v2515, 0
    %v2530 = vsel %vm367, %v2516, 0
    %2532 = vmatprep.subr.bf16.mxu0 0
    %2533 = vmatpush1.bf16.xpose.msra.mxu0 %v2521
    %2534 = vmatprep.subr.bf16.mxu0 0
    %2535 = vmatpush1.bf16.xpose.msra.mxu0 %v2524
    %2536 = vmatprep.subr.bf16.mxu0 0
    %2537 = vmatpush1.bf16.xpose.msra.mxu0 %v2527
    %2538 = vmatprep.subr.bf16.mxu0 0
    %2539 = vmatpush1.bf16.xpose.msra.mxu0 %v2530
    %2540 = vmatprep.subr.bf16.mxu0 0
    %2541 = vmatpush1.bf16.xpose.msra.mxu0 0
    %2542 = vmatprep.subr.bf16.mxu0 0
    %2543 = vmatpush1.bf16.xpose.msra.mxu0 0
    %2544 = vmatprep.subr.bf16.mxu0 0
    %2545 = vmatpush1.bf16.xpose.msra.mxu0 0
    %2546 = vmatprep.subr.bf16.mxu0 0
    %2547 = vmatpush1.bf16.xpose.msra.mxu0 0
    %2548 = vmatprep.subr.bf16.mxu0 0
    %2549 = vmatpush1.bf16.xpose.msra.mxu0 0
    %2550 = vmatprep.subr.bf16.mxu0 0
    %2551 = vmatpush1.bf16.xpose.msra.mxu0 0
    %2552 = vmatprep.subr.bf16.mxu0 0
    %2553 = vmatpush1.bf16.xpose.msra.mxu0 0
    %2554 = vmatprep.subr.bf16.mxu0 0
    %2555 = vmatpush1.bf16.xpose.msra.mxu0 0
    %2556 = vmatprep.subr.bf16.mxu0 0
    %2557 = vmatpush1.bf16.xpose.msra.mxu0 0
    %2558 = vmatprep.subr.bf16.mxu0 0
    %2559 = vmatpush1.bf16.xpose.msra.mxu0 0
    %2560 = vmatprep.subr.bf16.mxu0 0
    %2561 = vmatpush1.bf16.xpose.msra.mxu0 0
    %2562 = vmatprep.subr.bf16.mxu0 0
    %2563 = vmatpush1.bf16.xpose.msra.mxu0 0
    %2564 = vmatprep.mubr.bf16.mxu0 0
    %2565 = vmatmul.mubr.bf16.gmra.mrb[0].mxu0 %v2518
    %v2566 = vpop.f32.mrb[0].mxu0
    %v2567 = vadd.f32 %v220, %v2566
    %v2568 = vpop.f32.mrb[0].mxu0
    %v2569 = vpop.f32.mrb[0].mxu0
    %v2570 = vadd.f32 %v221, %v2569
    %v2571 = vpop.f32.mrb[0].mxu0
    %2572 = vdwg.mxu0
    %v2573 = vsel %vm580, %v2567, -inf
    %2574 = vmax.xlane.f32.xlu0 %v2573
    %v2575 = vpop.xlane.xlu0 %2574
    %v2576 = vsel %vm580, %v2570, -inf
    %2577 = vmax.xlane.f32.xlu0 %v2576
    %v2578 = vpop.xlane.xlu0 %2577
    %v2579 = vsub.f32 %v2567, %v2575
    %v2580 = vsub.f32 %v2570, %v2578
    %v2581 = vmul.f32 %v2579, 1.442695
    %v2582 = vpow.pop %v2581
    %v2583 = vmul.f32 %v2580, 1.442695
    %v2584 = vpow.pop %v2583
    %v2585 = vpack.c.bf16 %v2584, %v2582
    %v2587 = vsel %vm580, %v2585, 0
    %2589 = vmatprep.subr.bf16.mxu0 0
    %2590 = vmatpush1.bf16.msra.mxu0 %v594
    %2591 = vmatprep.subr.bf16.mxu0 0
    %2592 = vmatpush1.bf16.msra.mxu0 %v595
    %2593 = vmatprep.subr.bf16.mxu0 0
    %2594 = vmatpush1.bf16.msra.mxu0 %v596
    %2595 = vmatprep.subr.bf16.mxu0 0
    %2596 = vmatpush1.bf16.msra.mxu0 %v597
    %2597 = vmatprep.subr.bf16.mxu0 0
    %2598 = vmatpush1.bf16.msra.mxu0 0
    %2599 = vmatprep.subr.bf16.mxu0 0
    %2600 = vmatpush1.bf16.msra.mxu0 0
    %2601 = vmatprep.subr.bf16.mxu0 0
    %2602 = vmatpush1.bf16.msra.mxu0 0
    %2603 = vmatprep.subr.bf16.mxu0 0
    %2604 = vmatpush1.bf16.msra.mxu0 0
    %2605 = vmatprep.subr.bf16.mxu0 0
    %2606 = vmatpush1.bf16.msra.mxu0 0
    %2607 = vmatprep.subr.bf16.mxu0 0
    %2608 = vmatpush1.bf16.msra.mxu0 0
    %2609 = vmatprep.subr.bf16.mxu0 0
    %2610 = vmatpush1.bf16.msra.mxu0 0
    %2611 = vmatprep.subr.bf16.mxu0 0
    %2612 = vmatpush1.bf16.msra.mxu0 0
    %2613 = vmatprep.subr.bf16.mxu0 0
    %2614 = vmatpush1.bf16.msra.mxu0 0
    %2615 = vmatprep.subr.bf16.mxu0 0
    %2616 = vmatpush1.bf16.msra.mxu0 0
    %2617 = vmatprep.subr.bf16.mxu0 0
    %2618 = vmatpush1.bf16.msra.mxu0 0
    %2619 = vmatprep.subr.bf16.mxu0 0
    %2620 = vmatpush1.bf16.msra.mxu0 0
    %2621 = vmatprep.mubr.bf16.mxu0 0
    %2622 = vmatmul.mubr.bf16.gmra.mrb[0].mxu0 %v2587
    %v2623 = vpop.f32.mrb[0].mxu0
    %v2624 = vadd.f32 0.0, %v2623
    %v2625 = vpop.f32.mrb[0].mxu0
    %v2626 = vpop.f32.mrb[0].mxu0
    %v2627 = vadd.f32 0.0, %v2626
    %v2628 = vpop.f32.mrb[0].mxu0
    %2629 = vdwg.mxu0
    %v2630 = vmax.f32 %v2624, 1e-30
    %v2631 = vmax.f32 %v2627, 1e-30
    %v2632 = vrcp.pop %v2630
    %v2633 = vrcp.pop %v2631
    %v2634 = vmul.f32 %v2582, %v2632
    %v2635 = vmul.f32 %v2584, %v2633
    %v2636 = vpack.c.bf16 %v2635, %v2634
    %v2637 = vpack.c.bf16 %v2505, %v2504
    %v2638 = vpack.c.bf16 %v2507, %v2506
    %v2639 = vpack.c.bf16 %v2509, %v2508
    %v2640 = vpack.c.bf16 %v2511, %v2510
    %2645 = vrot.lane.b32.xlu0 %v2637, 96
    %v2646 = vpop.permute.xlu0 %2645
    %2647 = vrot.lane.b32.xlu0 %v2638, 96
    %v2648 = vpop.permute.xlu0 %2647
    %2649 = vrot.lane.b32.xlu0 %v2639, 96
    %v2650 = vpop.permute.xlu0 %2649
    %2651 = vrot.lane.b32.xlu0 %v2640, 96
    %v2652 = vpop.permute.xlu0 %2651
    %v2658 = vsel %vm580, %v2636, 0
    %2660 = vmatprep.subr.bf16.mxu0 0
    %2661 = vmatpush1.bf16.msra.mxu0 %v2646
    %2662 = vmatprep.subr.bf16.mxu0 0
    %2663 = vmatpush1.bf16.msra.mxu0 %v2648
    %2664 = vmatprep.subr.bf16.mxu0 0
    %2665 = vmatpush1.bf16.msra.mxu0 %v2650
    %2666 = vmatprep.subr.bf16.mxu0 0
    %2667 = vmatpush1.bf16.msra.mxu0 %v2652
    %2668 = vmatprep.subr.bf16.mxu0 0
    %2669 = vmatpush1.bf16.msra.mxu0 0
    %2670 = vmatprep.subr.bf16.mxu0 0
    %2671 = vmatpush1.bf16.msra.mxu0 0
    %2672 = vmatprep.subr.bf16.mxu0 0
    %2673 = vmatpush1.bf16.msra.mxu0 0
    %2674 = vmatprep.subr.bf16.mxu0 0
    %2675 = vmatpush1.bf16.msra.mxu0 0
    %2676 = vmatprep.subr.bf16.mxu0 0
    %2677 = vmatpush1.bf16.msra.mxu0 0
    %2678 = vmatprep.subr.bf16.mxu0 0
    %2679 = vmatpush1.bf16.msra.mxu0 0
    %2680 = vmatprep.subr.bf16.mxu0 0
    %2681 = vmatpush1.bf16.msra.mxu0 0
    %2682 = vmatprep.subr.bf16.mxu0 0
    %2683 = vmatpush1.bf16.msra.mxu0 0
    %2684 = vmatprep.subr.bf16.mxu0 0
    %2685 = vmatpush1.bf16.msra.mxu0 0
    %2686 = vmatprep.subr.bf16.mxu0 0
    %2687 = vmatpush1.bf16.msra.mxu0 0
    %2688 = vmatprep.subr.bf16.mxu0 0
    %2689 = vmatpush1.bf16.msra.mxu0 0
    %2690 = vmatprep.subr.bf16.mxu0 0
    %2691 = vmatpush1.bf16.msra.mxu0 0
    %2692 = vmatprep.mubr.bf16.mxu0 0
    %2693 = vmatmul.mubr.bf16.gmra.mrb[0].mxu0 %v2658
    %v2694 = vpop.f32.mrb[0].mxu0
    %v2695 = vadd.f32 0.0, %v2694
    %v2696 = vpop.f32.mrb[0].mxu0
    %v2697 = vpop.f32.mrb[0].mxu0
    %v2698 = vadd.f32 0.0, %v2697
    %v2699 = vpop.f32.mrb[0].mxu0
    %2700 = vdwg.mxu0
    %v2701 = vpack.c.bf16 %v2698, %v2695
    %v2703 = vlaneseq
    %v2704 = vshrl.u32 %v2703, 7
    %v2705 = vsub.s32 0, %v2704
    %v2706 = vrot.slane %v2495, %v2705
    %v2712 = vunpack.c.l.b16 %v2491
    %v2713 = vunpack.c.l.b16 %v2492
    %v2714 = vunpack.c.l.b16 %v2493
    %v2715 = vunpack.c.l.b16 %v2494
    %v2716 = vpack.c.b16 %v2713, %v2712
    %v2717 = vpack.c.b16 %v2715, %v2714
    %v2719 = vsel %vm367, %v2701, 0
    %v2722 = vsel %vm367, %v2716, 0
    %v2725 = vsel %vm367, %v2717, 0
    %2727 = vmatprep.subr.bf16.mxu0 0
    %2728 = vmatpush1.bf16.xpose.msra.mxu0 %v2722
    %2729 = vmatprep.subr.bf16.mxu0 0
    %2730 = vmatpush1.bf16.xpose.msra.mxu0 %v2725
    %2731 = vmatprep.subr.bf16.mxu0 0
    %2732 = vmatpush1.bf16.xpose.msra.mxu0 0
    %2733 = vmatprep.subr.bf16.mxu0 0
    %2734 = vmatpush1.bf16.xpose.msra.mxu0 0
    %2735 = vmatprep.subr.bf16.mxu0 0
    %2736 = vmatpush1.bf16.xpose.msra.mxu0 0
    %2737 = vmatprep.subr.bf16.mxu0 0
    %2738 = vmatpush1.bf16.xpose.msra.mxu0 0
    %2739 = vmatprep.subr.bf16.mxu0 0
    %2740 = vmatpush1.bf16.xpose.msra.mxu0 0
    %2741 = vmatprep.subr.bf16.mxu0 0
    %2742 = vmatpush1.bf16.xpose.msra.mxu0 0
    %2743 = vmatprep.subr.bf16.mxu0 0
    %2744 = vmatpush1.bf16.xpose.msra.mxu0 0
    %2745 = vmatprep.subr.bf16.mxu0 0
    %2746 = vmatpush1.bf16.xpose.msra.mxu0 0
    %2747 = vmatprep.subr.bf16.mxu0 0
    %2748 = vmatpush1.bf16.xpose.msra.mxu0 0
    %2749 = vmatprep.subr.bf16.mxu0 0
    %2750 = vmatpush1.bf16.xpose.msra.mxu0 0
    %2751 = vmatprep.subr.bf16.mxu0 0
    %2752 = vmatpush1.bf16.xpose.msra.mxu0 0
    %2753 = vmatprep.subr.bf16.mxu0 0
    %2754 = vmatpush1.bf16.xpose.msra.mxu0 0
    %2755 = vmatprep.subr.bf16.mxu0 0
    %2756 = vmatpush1.bf16.xpose.msra.mxu0 0
    %2757 = vmatprep.subr.bf16.mxu0 0
    %2758 = vmatpush1.bf16.xpose.msra.mxu0 0
    %2759 = vmatprep.mubr.bf16.mxu0 0
    %2760 = vmatmul.mubr.bf16.gmra.mrb[0].mxu0 %v2719
    %v2761 = vpop.f32.mrb[0].mxu0
    %v2762 = vadd.f32 %v2706, %v2761
    %v2763 = vpop.f32.mrb[0].mxu0
    %v2764 = vpop.f32.mrb[0].mxu0
    %v2765 = vadd.f32 %v2706, %v2764
    %v2766 = vpop.f32.mrb[0].mxu0
    %2767 = vdwg.mxu0
    %v2768 = vld [vmem:[%s69] sm:$0x1]
    %v2769 = vld [vmem:[%s71] sm:$0x1]
    %v2770 = vadd.f32 %v2424, %v2762
    %v2771 = vadd.f32 %v2425, %v2765
    %v2772 = vsel %vm367, %v2770, 0.0
    %2773 = vadd.xlane.f32.xlu0 %v2772
    %v2774 = vpop.xlane.xlu0 %2773
    %v2775 = vsel %vm367, %v2771, 0.0
    %2776 = vadd.xlane.f32.xlu0 %v2775
    %v2777 = vpop.xlane.xlu0 %2776
    %v2778 = vmul.f32 %v2774, %v790
    %v2779 = vmul.f32 %v2777, %v790
    %v2780 = vsub.f32 %v2770, %v2778
    %v2781 = vsub.f32 %v2771, %v2779
    %v2782 = vmul.f32 %v2780, %v2780
    %v2783 = vmul.f32 %v2781, %v2781
    %v2784 = vsel %vm367, %v2782, 0.0
    %2785 = vadd.xlane.f32.xlu0 %v2784
    %v2786 = vpop.xlane.xlu0 %2785
    %v2787 = vsel %vm367, %v2783, 0.0
    %2788 = vadd.xlane.f32.xlu0 %v2787
    %v2789 = vpop.xlane.xlu0 %2788
    %v2790 = vmul.f32 %v2786, %v790
    %v2791 = vmul.f32 %v2789, %v790
    %v2792 = vadd.f32 %v2790, 1e-05
    %v2793 = vadd.f32 %v2791, 1e-05
    %v2794 = vrsqrt.pop %v2792
    %v2795 = vrsqrt.pop %v2793
    %v2796 = vmul.f32 %v2780, %v2794
    %v2797 = vmul.f32 %v2781, %v2795
    %v2799 = vlaneseq
    %v2800 = vshrl.u32 %v2799, 7
    %v2801 = vsub.s32 0, %v2800
    %v2802 = vrot.slane %v2768, %v2801
    %v2804 = vmul.f32 %v2796, %v2802
    %v2805 = vmul.f32 %v2797, %v2802
    %v2807 = vlaneseq
    %v2808 = vshrl.u32 %v2807, 7
    %v2809 = vsub.s32 0, %v2808
    %v2810 = vrot.slane %v2769, %v2809
    %v2812 = vadd.f32 %v2804, %v2810
    %v2813 = vadd.f32 %v2805, %v2810
    %v2814 = vld [vmem:[%s73] sm:$0xf]
    %v2815 = vld [vmem:[%s73 + $0x4] sm:$0xf]
    %v2816 = vld [vmem:[%s73 + $0x8] sm:$0xf]
    %v2817 = vld [vmem:[%s73 + $0xc] sm:$0xf]
    %v2818 = vld [vmem:[%s73 + $0x10] sm:$0xf]
    %v2819 = vld [vmem:[%s73 + $0x14] sm:$0xf]
    %v2820 = vld [vmem:[%s73 + $0x18] sm:$0xf]
    %v2821 = vld [vmem:[%s73 + $0x1c] sm:$0xf]
    %v2822 = vpack.c.bf16 %v2813, %v2812
    %v2823 = vld [vmem:[%s75] sm:$0x1]
    %v2825 = vlaneseq
    %v2826 = vshrl.u32 %v2825, 7
    %v2827 = vsub.s32 0, %v2826
    %v2828 = vrot.slane %v2823, %v2827
    %v2838 = vunpack.c.l.b16 %v2814
    %v2839 = vunpack.c.l.b16 %v2815
    %v2840 = vunpack.c.l.b16 %v2816
    %v2841 = vunpack.c.l.b16 %v2817
    %v2842 = vunpack.c.l.b16 %v2818
    %v2843 = vunpack.c.l.b16 %v2819
    %v2844 = vunpack.c.l.b16 %v2820
    %v2845 = vunpack.c.l.b16 %v2821
    %v2846 = vpack.c.b16 %v2839, %v2838
    %v2847 = vpack.c.b16 %v2841, %v2840
    %v2848 = vpack.c.b16 %v2843, %v2842
    %v2849 = vpack.c.b16 %v2845, %v2844
    %v2851 = vsel %vm367, %v2822, 0
    %v2854 = vsel %vm367, %v2846, 0
    %v2857 = vsel %vm367, %v2847, 0
    %v2860 = vsel %vm367, %v2848, 0
    %v2863 = vsel %vm367, %v2849, 0
    %2865 = vmatprep.subr.bf16.mxu0 0
    %2866 = vmatpush1.bf16.xpose.msra.mxu0 %v2854
    %2867 = vmatprep.subr.bf16.mxu0 0
    %2868 = vmatpush1.bf16.xpose.msra.mxu0 %v2857
    %2869 = vmatprep.subr.bf16.mxu0 0
    %2870 = vmatpush1.bf16.xpose.msra.mxu0 %v2860
    %2871 = vmatprep.subr.bf16.mxu0 0
    %2872 = vmatpush1.bf16.xpose.msra.mxu0 %v2863
    %2873 = vmatprep.subr.bf16.mxu0 0
    %2874 = vmatpush1.bf16.xpose.msra.mxu0 0
    %2875 = vmatprep.subr.bf16.mxu0 0
    %2876 = vmatpush1.bf16.xpose.msra.mxu0 0
    %2877 = vmatprep.subr.bf16.mxu0 0
    %2878 = vmatpush1.bf16.xpose.msra.mxu0 0
    %2879 = vmatprep.subr.bf16.mxu0 0
    %2880 = vmatpush1.bf16.xpose.msra.mxu0 0
    %2881 = vmatprep.subr.bf16.mxu0 0
    %2882 = vmatpush1.bf16.xpose.msra.mxu0 0
    %2883 = vmatprep.subr.bf16.mxu0 0
    %2884 = vmatpush1.bf16.xpose.msra.mxu0 0
    %2885 = vmatprep.subr.bf16.mxu0 0
    %2886 = vmatpush1.bf16.xpose.msra.mxu0 0
    %2887 = vmatprep.subr.bf16.mxu0 0
    %2888 = vmatpush1.bf16.xpose.msra.mxu0 0
    %2889 = vmatprep.subr.bf16.mxu0 0
    %2890 = vmatpush1.bf16.xpose.msra.mxu0 0
    %2891 = vmatprep.subr.bf16.mxu0 0
    %2892 = vmatpush1.bf16.xpose.msra.mxu0 0
    %2893 = vmatprep.subr.bf16.mxu0 0
    %2894 = vmatpush1.bf16.xpose.msra.mxu0 0
    %2895 = vmatprep.subr.bf16.mxu0 0
    %2896 = vmatpush1.bf16.xpose.msra.mxu0 0
    %2897 = vmatprep.mubr.bf16.mxu0 0
    %2898 = vmatmul.mubr.bf16.gmra.mrb[0].mxu0 %v2851
    %v2899 = vpop.f32.mrb[0].mxu0
    %v2900 = vadd.f32 %v2828, %v2899
    %v2901 = vpop.f32.mrb[0].mxu0
    %v2902 = vpop.f32.mrb[0].mxu0
    %v2903 = vadd.f32 %v2828, %v2902
    %v2904 = vpop.f32.mrb[0].mxu0
    %2905 = vdwg.mxu0
    %v2906 = vmax.f32 %v2900, 0.0
    %v2907 = vmax.f32 %v2903, 0.0
    %v2908 = vld [vmem:[%s77] sm:$0xf]
    %v2909 = vld [vmem:[%s77 + $0x4] sm:$0xf]
    %v2910 = vld [vmem:[%s77 + $0x8] sm:$0xf]
    %v2911 = vld [vmem:[%s77 + $0xc] sm:$0xf]
    %v2912 = vpack.c.bf16 %v2907, %v2906
    %v2913 = vld [vmem:[%s79] sm:$0x1]
    %v2915 = vlaneseq
    %v2916 = vshrl.u32 %v2915, 7
    %v2917 = vsub.s32 0, %v2916
    %v2918 = vrot.slane %v2913, %v2917
    %v2924 = vunpack.c.l.b16 %v2908
    %v2925 = vunpack.c.l.b16 %v2909
    %v2926 = vunpack.c.l.b16 %v2910
    %v2927 = vunpack.c.l.b16 %v2911
    %v2928 = vpack.c.b16 %v2925, %v2924
    %v2929 = vpack.c.b16 %v2927, %v2926
    %v2931 = vsel %vm580, %v2912, 0
    %v2934 = vsel %vm580, %v2928, 0
    %v2937 = vsel %vm580, %v2929, 0
    %2939 = vmatprep.subr.bf16.mxu0 0
    %2940 = vmatpush1.bf16.xpose.msra.mxu0 %v2934
    %2941 = vmatprep.subr.bf16.mxu0 0
    %2942 = vmatpush1.bf16.xpose.msra.mxu0 %v2937
    %2943 = vmatprep.subr.bf16.mxu0 0
    %2944 = vmatpush1.bf16.xpose.msra.mxu0 0
    %2945 = vmatprep.subr.bf16.mxu0 0
    %2946 = vmatpush1.bf16.xpose.msra.mxu0 0
    %2947 = vmatprep.subr.bf16.mxu0 0
    %2948 = vmatpush1.bf16.xpose.msra.mxu0 0
    %2949 = vmatprep.subr.bf16.mxu0 0
    %2950 = vmatpush1.bf16.xpose.msra.mxu0 0
    %2951 = vmatprep.subr.bf16.mxu0 0
    %2952 = vmatpush1.bf16.xpose.msra.mxu0 0
    %2953 = vmatprep.subr.bf16.mxu0 0
    %2954 = vmatpush1.bf16.xpose.msra.mxu0 0
    %2955 = vmatprep.subr.bf16.mxu0 0
    %2956 = vmatpush1.bf16.xpose.msra.mxu0 0
    %2957 = vmatprep.subr.bf16.mxu0 0
    %2958 = vmatpush1.bf16.xpose.msra.mxu0 0
    %2959 = vmatprep.subr.bf16.mxu0 0
    %2960 = vmatpush1.bf16.xpose.msra.mxu0 0
    %2961 = vmatprep.subr.bf16.mxu0 0
    %2962 = vmatpush1.bf16.xpose.msra.mxu0 0
    %2963 = vmatprep.subr.bf16.mxu0 0
    %2964 = vmatpush1.bf16.xpose.msra.mxu0 0
    %2965 = vmatprep.subr.bf16.mxu0 0
    %2966 = vmatpush1.bf16.xpose.msra.mxu0 0
    %2967 = vmatprep.subr.bf16.mxu0 0
    %2968 = vmatpush1.bf16.xpose.msra.mxu0 0
    %2969 = vmatprep.subr.bf16.mxu0 0
    %2970 = vmatpush1.bf16.xpose.msra.mxu0 0
    %2971 = vmatprep.mubr.bf16.mxu0 0
    %2972 = vmatmul.mubr.bf16.gmra.mrb[0].mxu0 %v2931
    %v2973 = vpop.f32.mrb[0].mxu0
    %v2974 = vadd.f32 %v2918, %v2973
    %v2975 = vpop.f32.mrb[0].mxu0
    %v2976 = vpop.f32.mrb[0].mxu0
    %v2977 = vadd.f32 %v2918, %v2976
    %v2978 = vpop.f32.mrb[0].mxu0
    %2979 = vdwg.mxu0
    %v2980 = vld [vmem:[%s81] sm:$0x1]
    %v2981 = vld [vmem:[%s83] sm:$0x1]
    %v2982 = vadd.f32 %v2812, %v2974
    %v2983 = vadd.f32 %v2813, %v2977
    %v2984 = vsel %vm367, %v2982, 0.0
    %2985 = vadd.xlane.f32.xlu0 %v2984
    %v2986 = vpop.xlane.xlu0 %2985
    %v2987 = vsel %vm367, %v2983, 0.0
    %2988 = vadd.xlane.f32.xlu0 %v2987
    %v2989 = vpop.xlane.xlu0 %2988
    %v2990 = vmul.f32 %v2986, %v790
    %v2991 = vmul.f32 %v2989, %v790
    %v2992 = vsub.f32 %v2982, %v2990
    %v2993 = vsub.f32 %v2983, %v2991
    %v2994 = vmul.f32 %v2992, %v2992
    %v2995 = vmul.f32 %v2993, %v2993
    %v2996 = vsel %vm367, %v2994, 0.0
    %2997 = vadd.xlane.f32.xlu0 %v2996
    %v2998 = vpop.xlane.xlu0 %2997
    %v2999 = vsel %vm367, %v2995, 0.0
    %3000 = vadd.xlane.f32.xlu0 %v2999
    %v3001 = vpop.xlane.xlu0 %3000
    %v3002 = vmul.f32 %v2998, %v790
    %v3003 = vmul.f32 %v3001, %v790
    %v3004 = vadd.f32 %v3002, 1e-05
    %v3005 = vadd.f32 %v3003, 1e-05
    %v3006 = vrsqrt.pop %v3004
    %v3007 = vrsqrt.pop %v3005
    %v3008 = vmul.f32 %v2992, %v3006
    %v3009 = vmul.f32 %v2993, %v3007
    %v3011 = vlaneseq
    %v3012 = vshrl.u32 %v3011, 7
    %v3013 = vsub.s32 0, %v3012
    %v3014 = vrot.slane %v2980, %v3013
    %v3016 = vmul.f32 %v3008, %v3014
    %v3017 = vmul.f32 %v3009, %v3014
    %v3019 = vlaneseq
    %v3020 = vshrl.u32 %v3019, 7
    %v3021 = vsub.s32 0, %v3020
    %v3022 = vrot.slane %v2981, %v3021
    %v3024 = vadd.f32 %v3016, %v3022
    %v3025 = vadd.f32 %v3017, %v3022
    %s3026 = scalar_lea.vmem %s53, 48
    %v3027 = vld [vmem:[%s3026] sm:$0xf]
    %v3028 = vld [vmem:[%s3026 + $0x4] sm:$0xf]
    %v3029 = vld [vmem:[%s3026 + $0x8] sm:$0xf]
    %v3030 = vld [vmem:[%s3026 + $0xc] sm:$0xf]
    %v3031 = vld [vmem:[%s3026 + $0x10] sm:$0xf]
    %v3032 = vld [vmem:[%s3026 + $0x14] sm:$0xf]
    %v3033 = vld [vmem:[%s3026 + $0x18] sm:$0xf]
    %v3034 = vld [vmem:[%s3026 + $0x1c] sm:$0xf]
    %v3035 = vld [vmem:[%s3026 + $0x20] sm:$0xf]
    %v3036 = vld [vmem:[%s3026 + $0x24] sm:$0xf]
    %v3037 = vld [vmem:[%s3026 + $0x28] sm:$0xf]
    %v3038 = vld [vmem:[%s3026 + $0x2c] sm:$0xf]
    %v3039 = vpack.c.bf16 %v3025, %v3024
    %v3052 = vunpack.c.l.b16 %v3027
    %v3053 = vunpack.c.l.b16 %v3028
    %v3054 = vunpack.c.l.b16 %v3029
    %v3055 = vunpack.c.l.b16 %v3030
    %v3056 = vunpack.c.l.b16 %v3031
    %v3057 = vunpack.c.l.b16 %v3032
    %v3058 = vunpack.c.l.b16 %v3033
    %v3059 = vunpack.c.l.b16 %v3034
    %v3060 = vunpack.c.l.b16 %v3035
    %v3061 = vunpack.c.l.b16 %v3036
    %v3062 = vunpack.c.l.b16 %v3037
    %v3063 = vunpack.c.l.b16 %v3038
    %v3064 = vpack.c.b16 %v3053, %v3052
    %v3065 = vpack.c.b16 %v3055, %v3054
    %v3066 = vpack.c.b16 %v3057, %v3056
    %v3067 = vpack.c.b16 %v3059, %v3058
    %v3068 = vpack.c.b16 %v3061, %v3060
    %v3069 = vpack.c.b16 %v3063, %v3062
    %v3071 = vsel %vm367, %v3039, 0
    %v3074 = vsel %vm367, %v3064, 0
    %v3077 = vsel %vm367, %v3065, 0
    %v3080 = vsel %vm367, %v3066, 0
    %v3083 = vsel %vm367, %v3067, 0
    %v3086 = vsel %vm367, %v3068, 0
    %v3089 = vsel %vm367, %v3069, 0
    %3091 = vmatprep.subr.bf16.mxu0 0
    %3092 = vmatpush1.bf16.xpose.msra.mxu0 %v3074
    %3093 = vmatprep.subr.bf16.mxu0 0
    %3094 = vmatpush1.bf16.xpose.msra.mxu0 %v3077
    %3095 = vmatprep.subr.bf16.mxu0 0
    %3096 = vmatpush1.bf16.xpose.msra.mxu0 %v3080
    %3097 = vmatprep.subr.bf16.mxu0 0
    %3098 = vmatpush1.bf16.xpose.msra.mxu0 %v3083
    %3099 = vmatprep.subr.bf16.mxu0 0
    %3100 = vmatpush1.bf16.xpose.msra.mxu0 %v3086
    %3101 = vmatprep.subr.bf16.mxu0 0
    %3102 = vmatpush1.bf16.xpose.msra.mxu0 %v3089
    %3103 = vmatprep.subr.bf16.mxu0 0
    %3104 = vmatpush1.bf16.xpose.msra.mxu0 0
    %3105 = vmatprep.subr.bf16.mxu0 0
    %3106 = vmatpush1.bf16.xpose.msra.mxu0 0
    %3107 = vmatprep.subr.bf16.mxu0 0
    %3108 = vmatpush1.bf16.xpose.msra.mxu0 0
    %3109 = vmatprep.subr.bf16.mxu0 0
    %3110 = vmatpush1.bf16.xpose.msra.mxu0 0
    %3111 = vmatprep.subr.bf16.mxu0 0
    %3112 = vmatpush1.bf16.xpose.msra.mxu0 0
    %3113 = vmatprep.subr.bf16.mxu0 0
    %3114 = vmatpush1.bf16.xpose.msra.mxu0 0
    %3115 = vmatprep.subr.bf16.mxu0 0
    %3116 = vmatpush1.bf16.xpose.msra.mxu0 0
    %3117 = vmatprep.subr.bf16.mxu0 0
    %3118 = vmatpush1.bf16.xpose.msra.mxu0 0
    %3119 = vmatprep.subr.bf16.mxu0 0
    %3120 = vmatpush1.bf16.xpose.msra.mxu0 0
    %3121 = vmatprep.subr.bf16.mxu0 0
    %3122 = vmatpush1.bf16.xpose.msra.mxu0 0
    %3123 = vmatprep.mubr.bf16.mxu0 0
    %3124 = vmatmul.mubr.bf16.gmra.mrb[0].mxu0 %v3071
    %v3125 = vpop.f32.mrb[0].mxu0
    %v3126 = vadd.f32 0.0, %v3125
    %v3127 = vpop.f32.mrb[0].mxu0
    %v3128 = vpop.f32.mrb[0].mxu0
    %v3129 = vadd.f32 0.0, %v3128
    %v3130 = vpop.f32.mrb[0].mxu0
    %3131 = vdwg.mxu0
    %s3132 = scalar_lea.vmem %s55, 16
    %v3133 = vld [vmem:[%s3132] sm:$0xf]
    %v3134 = vld [vmem:[%s3132 + $0x4] sm:$0xf]
    %v3135 = vld [vmem:[%s3132 + $0x8] sm:$0xf]
    %v3136 = vld [vmem:[%s3132 + $0xc] sm:$0xf]
    %s3137 = scalar_lea.vmem %s57, 1
    %v3138 = vld [vmem:[%s3137] sm:$0x1]
    %v3139 = vmul.f32 %v3126, %v2045
    %v3140 = vmul.f32 %v3129, %v2047
    %v3141 = vmul.f32 %v3126, %v2049
    %v3142 = vmul.f32 %v3129, %v2051
    %v3143 = vmul.f32 %v3126, %v2053
    %v3144 = vmul.f32 %v3129, %v2055
    %v3145 = vmul.f32 %v3126, %v2057
    %v3146 = vmul.f32 %v3129, %v2059
    %v3147 = vmul.f32 %v3126, %v2077
    %v3148 = vmul.f32 %v3129, %v2079
    %v3149 = vmul.f32 %v3126, %v2081
    %v3150 = vmul.f32 %v3129, %v2083
    %v3151 = vmul.f32 %v3126, %v2085
    %v3152 = vmul.f32 %v3129, %v2087
    %v3153 = vmul.f32 %v3126, %v2089
    %v3154 = vmul.f32 %v3129, %v2091
    %v3155 = vpack.c.bf16 %v3129, %v3126
    %v3156 = vpack.c.bf16 %v3140, %v3139
    %v3157 = vpack.c.bf16 %v3142, %v3141
    %v3158 = vpack.c.bf16 %v3144, %v3143
    %v3159 = vpack.c.bf16 %v3146, %v3145
    %3164 = vrot.lane.b32.xlu0 %v3156, 96
    %v3165 = vpop.permute.xlu0 %3164
    %3166 = vrot.lane.b32.xlu0 %v3157, 96
    %v3167 = vpop.permute.xlu0 %3166
    %3168 = vrot.lane.b32.xlu0 %v3158, 96
    %v3169 = vpop.permute.xlu0 %3168
    %3170 = vrot.lane.b32.xlu0 %v3159, 96
    %v3171 = vpop.permute.xlu0 %3170
    %v3173 = vsel %vm367, %v3155, 0
    %v3176 = vsel %vm367, %v3165, 0
    %v3179 = vsel %vm367, %v3167, 0
    %v3182 = vsel %vm367, %v3169, 0
    %v3185 = vsel %vm367, %v3171, 0
    %3187 = vmatprep.subr.bf16.mxu0 0
    %3188 = vmatpush1.bf16.xpose.msra.mxu0 %v3176
    %3189 = vmatprep.subr.bf16.mxu0 0
    %3190 = vmatpush1.bf16.xpose.msra.mxu0 %v3179
    %3191 = vmatprep.subr.bf16.mxu0 0
    %3192 = vmatpush1.bf16.xpose.msra.mxu0 %v3182
    %3193 = vmatprep.subr.bf16.mxu0 0
    %3194 = vmatpush1.bf16.xpose.msra.mxu0 %v3185
    %3195 = vmatprep.subr.bf16.mxu0 0
    %3196 = vmatpush1.bf16.xpose.msra.mxu0 0
    %3197 = vmatprep.subr.bf16.mxu0 0
    %3198 = vmatpush1.bf16.xpose.msra.mxu0 0
    %3199 = vmatprep.subr.bf16.mxu0 0
    %3200 = vmatpush1.bf16.xpose.msra.mxu0 0
    %3201 = vmatprep.subr.bf16.mxu0 0
    %3202 = vmatpush1.bf16.xpose.msra.mxu0 0
    %3203 = vmatprep.subr.bf16.mxu0 0
    %3204 = vmatpush1.bf16.xpose.msra.mxu0 0
    %3205 = vmatprep.subr.bf16.mxu0 0
    %3206 = vmatpush1.bf16.xpose.msra.mxu0 0
    %3207 = vmatprep.subr.bf16.mxu0 0
    %3208 = vmatpush1.bf16.xpose.msra.mxu0 0
    %3209 = vmatprep.subr.bf16.mxu0 0
    %3210 = vmatpush1.bf16.xpose.msra.mxu0 0
    %3211 = vmatprep.subr.bf16.mxu0 0
    %3212 = vmatpush1.bf16.xpose.msra.mxu0 0
    %3213 = vmatprep.subr.bf16.mxu0 0
    %3214 = vmatpush1.bf16.xpose.msra.mxu0 0
    %3215 = vmatprep.subr.bf16.mxu0 0
    %3216 = vmatpush1.bf16.xpose.msra.mxu0 0
    %3217 = vmatprep.subr.bf16.mxu0 0
    %3218 = vmatpush1.bf16.xpose.msra.mxu0 0
    %3219 = vmatprep.mubr.bf16.mxu0 0
    %3220 = vmatmul.mubr.bf16.gmra.mrb[0].mxu0 %v3173
    %v3221 = vpop.f32.mrb[0].mxu0
    %v3222 = vadd.f32 %v218, %v3221
    %v3223 = vpop.f32.mrb[0].mxu0
    %v3224 = vpop.f32.mrb[0].mxu0
    %v3225 = vadd.f32 %v219, %v3224
    %v3226 = vpop.f32.mrb[0].mxu0
    %3227 = vdwg.mxu0
    %v3228 = vsel %vm580, %v3222, -inf
    %3229 = vmax.xlane.f32.xlu0 %v3228
    %v3230 = vpop.xlane.xlu0 %3229
    %v3231 = vsel %vm580, %v3225, -inf
    %3232 = vmax.xlane.f32.xlu0 %v3231
    %v3233 = vpop.xlane.xlu0 %3232
    %v3234 = vsub.f32 %v3222, %v3230
    %v3235 = vsub.f32 %v3225, %v3233
    %v3236 = vmul.f32 %v3234, 1.442695
    %v3237 = vpow.pop %v3236
    %v3238 = vmul.f32 %v3235, 1.442695
    %v3239 = vpow.pop %v3238
    %v3240 = vpack.c.bf16 %v3239, %v3237
    %v3242 = vsel %vm580, %v3240, 0
    %3244 = vmatprep.subr.bf16.mxu0 0
    %3245 = vmatpush1.bf16.msra.mxu0 %v2194
    %3246 = vmatprep.subr.bf16.mxu0 0
    %3247 = vmatpush1.bf16.msra.mxu0 %v2195
    %3248 = vmatprep.subr.bf16.mxu0 0
    %3249 = vmatpush1.bf16.msra.mxu0 %v2196
    %3250 = vmatprep.subr.bf16.mxu0 0
    %3251 = vmatpush1.bf16.msra.mxu0 %v2197
    %3252 = vmatprep.subr.bf16.mxu0 0
    %3253 = vmatpush1.bf16.msra.mxu0 0
    %3254 = vmatprep.subr.bf16.mxu0 0
    %3255 = vmatpush1.bf16.msra.mxu0 0
    %3256 = vmatprep.subr.bf16.mxu0 0
    %3257 = vmatpush1.bf16.msra.mxu0 0
    %3258 = vmatprep.subr.bf16.mxu0 0
    %3259 = vmatpush1.bf16.msra.mxu0 0
    %3260 = vmatprep.subr.bf16.mxu0 0
    %3261 = vmatpush1.bf16.msra.mxu0 0
    %3262 = vmatprep.subr.bf16.mxu0 0
    %3263 = vmatpush1.bf16.msra.mxu0 0
    %3264 = vmatprep.subr.bf16.mxu0 0
    %3265 = vmatpush1.bf16.msra.mxu0 0
    %3266 = vmatprep.subr.bf16.mxu0 0
    %3267 = vmatpush1.bf16.msra.mxu0 0
    %3268 = vmatprep.subr.bf16.mxu0 0
    %3269 = vmatpush1.bf16.msra.mxu0 0
    %3270 = vmatprep.subr.bf16.mxu0 0
    %3271 = vmatpush1.bf16.msra.mxu0 0
    %3272 = vmatprep.subr.bf16.mxu0 0
    %3273 = vmatpush1.bf16.msra.mxu0 0
    %3274 = vmatprep.subr.bf16.mxu0 0
    %3275 = vmatpush1.bf16.msra.mxu0 0
    %3276 = vmatprep.mubr.bf16.mxu0 0
    %3277 = vmatmul.mubr.bf16.gmra.mrb[0].mxu0 %v3242
    %v3278 = vpop.f32.mrb[0].mxu0
    %v3279 = vadd.f32 0.0, %v3278
    %v3280 = vpop.f32.mrb[0].mxu0
    %v3281 = vpop.f32.mrb[0].mxu0
    %v3282 = vadd.f32 0.0, %v3281
    %v3283 = vpop.f32.mrb[0].mxu0
    %3284 = vdwg.mxu0
    %v3285 = vmax.f32 %v3279, 1e-30
    %v3286 = vmax.f32 %v3282, 1e-30
    %v3287 = vrcp.pop %v3285
    %v3288 = vrcp.pop %v3286
    %v3289 = vmul.f32 %v3237, %v3287
    %v3290 = vmul.f32 %v3239, %v3288
    %v3291 = vpack.c.bf16 %v3290, %v3289
    %v3292 = vpack.c.bf16 %v3148, %v3147
    %v3293 = vpack.c.bf16 %v3150, %v3149
    %v3294 = vpack.c.bf16 %v3152, %v3151
    %v3295 = vpack.c.bf16 %v3154, %v3153
    %3300 = vrot.lane.b32.xlu0 %v3292, 64
    %v3301 = vpop.permute.xlu0 %3300
    %3302 = vrot.lane.b32.xlu0 %v3293, 64
    %v3303 = vpop.permute.xlu0 %3302
    %3304 = vrot.lane.b32.xlu0 %v3294, 64
    %v3305 = vpop.permute.xlu0 %3304
    %3306 = vrot.lane.b32.xlu0 %v3295, 64
    %v3307 = vpop.permute.xlu0 %3306
    %v3313 = vsel %vm580, %v3291, 0
    %3315 = vmatprep.subr.bf16.mxu0 0
    %3316 = vmatpush1.bf16.msra.mxu0 %v3301
    %3317 = vmatprep.subr.bf16.mxu0 0
    %3318 = vmatpush1.bf16.msra.mxu0 %v3303
    %3319 = vmatprep.subr.bf16.mxu0 0
    %3320 = vmatpush1.bf16.msra.mxu0 %v3305
    %3321 = vmatprep.subr.bf16.mxu0 0
    %3322 = vmatpush1.bf16.msra.mxu0 %v3307
    %3323 = vmatprep.subr.bf16.mxu0 0
    %3324 = vmatpush1.bf16.msra.mxu0 0
    %3325 = vmatprep.subr.bf16.mxu0 0
    %3326 = vmatpush1.bf16.msra.mxu0 0
    %3327 = vmatprep.subr.bf16.mxu0 0
    %3328 = vmatpush1.bf16.msra.mxu0 0
    %3329 = vmatprep.subr.bf16.mxu0 0
    %3330 = vmatpush1.bf16.msra.mxu0 0
    %3331 = vmatprep.subr.bf16.mxu0 0
    %3332 = vmatpush1.bf16.msra.mxu0 0
    %3333 = vmatprep.subr.bf16.mxu0 0
    %3334 = vmatpush1.bf16.msra.mxu0 0
    %3335 = vmatprep.subr.bf16.mxu0 0
    %3336 = vmatpush1.bf16.msra.mxu0 0
    %3337 = vmatprep.subr.bf16.mxu0 0
    %3338 = vmatpush1.bf16.msra.mxu0 0
    %3339 = vmatprep.subr.bf16.mxu0 0
    %3340 = vmatpush1.bf16.msra.mxu0 0
    %3341 = vmatprep.subr.bf16.mxu0 0
    %3342 = vmatpush1.bf16.msra.mxu0 0
    %3343 = vmatprep.subr.bf16.mxu0 0
    %3344 = vmatpush1.bf16.msra.mxu0 0
    %3345 = vmatprep.subr.bf16.mxu0 0
    %3346 = vmatpush1.bf16.msra.mxu0 0
    %3347 = vmatprep.mubr.bf16.mxu0 0
    %3348 = vmatmul.mubr.bf16.gmra.mrb[0].mxu0 %v3313
    %v3349 = vpop.f32.mrb[0].mxu0
    %v3350 = vadd.f32 0.0, %v3349
    %v3351 = vpop.f32.mrb[0].mxu0
    %v3352 = vpop.f32.mrb[0].mxu0
    %v3353 = vadd.f32 0.0, %v3352
    %v3354 = vpop.f32.mrb[0].mxu0
    %3355 = vdwg.mxu0
    %v3356 = vpack.c.bf16 %v3353, %v3350
    %v3358 = vlaneseq
    %v3359 = vshrl.u32 %v3358, 7
    %v3360 = vsub.s32 0, %v3359
    %v3361 = vrot.slane %v3138, %v3360
    %v3367 = vunpack.c.l.b16 %v3133
    %v3368 = vunpack.c.l.b16 %v3134
    %v3369 = vunpack.c.l.b16 %v3135
    %v3370 = vunpack.c.l.b16 %v3136
    %v3371 = vpack.c.b16 %v3368, %v3367
    %v3372 = vpack.c.b16 %v3370, %v3369
    %v3374 = vsel %vm367, %v3356, 0
    %v3377 = vsel %vm367, %v3371, 0
    %v3380 = vsel %vm367, %v3372, 0
    %3382 = vmatprep.subr.bf16.mxu0 0
    %3383 = vmatpush1.bf16.xpose.msra.mxu0 %v3377
    %3384 = vmatprep.subr.bf16.mxu0 0
    %3385 = vmatpush1.bf16.xpose.msra.mxu0 %v3380
    %3386 = vmatprep.subr.bf16.mxu0 0
    %3387 = vmatpush1.bf16.xpose.msra.mxu0 0
    %3388 = vmatprep.subr.bf16.mxu0 0
    %3389 = vmatpush1.bf16.xpose.msra.mxu0 0
    %3390 = vmatprep.subr.bf16.mxu0 0
    %3391 = vmatpush1.bf16.xpose.msra.mxu0 0
    %3392 = vmatprep.subr.bf16.mxu0 0
    %3393 = vmatpush1.bf16.xpose.msra.mxu0 0
    %3394 = vmatprep.subr.bf16.mxu0 0
    %3395 = vmatpush1.bf16.xpose.msra.mxu0 0
    %3396 = vmatprep.subr.bf16.mxu0 0
    %3397 = vmatpush1.bf16.xpose.msra.mxu0 0
    %3398 = vmatprep.subr.bf16.mxu0 0
    %3399 = vmatpush1.bf16.xpose.msra.mxu0 0
    %3400 = vmatprep.subr.bf16.mxu0 0
    %3401 = vmatpush1.bf16.xpose.msra.mxu0 0
    %3402 = vmatprep.subr.bf16.mxu0 0
    %3403 = vmatpush1.bf16.xpose.msra.mxu0 0
    %3404 = vmatprep.subr.bf16.mxu0 0
    %3405 = vmatpush1.bf16.xpose.msra.mxu0 0
    %3406 = vmatprep.subr.bf16.mxu0 0
    %3407 = vmatpush1.bf16.xpose.msra.mxu0 0
    %3408 = vmatprep.subr.bf16.mxu0 0
    %3409 = vmatpush1.bf16.xpose.msra.mxu0 0
    %3410 = vmatprep.subr.bf16.mxu0 0
    %3411 = vmatpush1.bf16.xpose.msra.mxu0 0
    %3412 = vmatprep.subr.bf16.mxu0 0
    %3413 = vmatpush1.bf16.xpose.msra.mxu0 0
    %3414 = vmatprep.mubr.bf16.mxu0 0
    %3415 = vmatmul.mubr.bf16.gmra.mrb[0].mxu0 %v3374
    %v3416 = vpop.f32.mrb[0].mxu0
    %v3417 = vadd.f32 %v3361, %v3416
    %v3418 = vpop.f32.mrb[0].mxu0
    %v3419 = vpop.f32.mrb[0].mxu0
    %v3420 = vadd.f32 %v3361, %v3419
    %v3421 = vpop.f32.mrb[0].mxu0
    %3422 = vdwg.mxu0
    %s3423 = scalar_lea.vmem %s59, 1
    %v3424 = vld [vmem:[%s3423] sm:$0x1]
    %s3425 = scalar_lea.vmem %s61, 1
    %v3426 = vld [vmem:[%s3425] sm:$0x1]
    %v3427 = vadd.f32 %v3024, %v3417
    %v3428 = vadd.f32 %v3025, %v3420
    %v3429 = vsel %vm367, %v3427, 0.0
    %3430 = vadd.xlane.f32.xlu0 %v3429
    %v3431 = vpop.xlane.xlu0 %3430
    %v3432 = vsel %vm367, %v3428, 0.0
    %3433 = vadd.xlane.f32.xlu0 %v3432
    %v3434 = vpop.xlane.xlu0 %3433
    %v3435 = vmul.f32 %v3431, %v790
    %v3436 = vmul.f32 %v3434, %v790
    %v3437 = vsub.f32 %v3427, %v3435
    %v3438 = vsub.f32 %v3428, %v3436
    %v3439 = vmul.f32 %v3437, %v3437
    %v3440 = vmul.f32 %v3438, %v3438
    %v3441 = vsel %vm367, %v3439, 0.0
    %3442 = vadd.xlane.f32.xlu0 %v3441
    %v3443 = vpop.xlane.xlu0 %3442
    %v3444 = vsel %vm367, %v3440, 0.0
    %3445 = vadd.xlane.f32.xlu0 %v3444
    %v3446 = vpop.xlane.xlu0 %3445
    %v3447 = vmul.f32 %v3443, %v790
    %v3448 = vmul.f32 %v3446, %v790
    %v3449 = vadd.f32 %v3447, 1e-05
    %v3450 = vadd.f32 %v3448, 1e-05
    %v3451 = vrsqrt.pop %v3449
    %v3452 = vrsqrt.pop %v3450
    %v3453 = vmul.f32 %v3437, %v3451
    %v3454 = vmul.f32 %v3438, %v3452
    %v3456 = vlaneseq
    %v3457 = vshrl.u32 %v3456, 7
    %v3458 = vsub.s32 0, %v3457
    %v3459 = vrot.slane %v3424, %v3458
    %v3461 = vmul.f32 %v3453, %v3459
    %v3462 = vmul.f32 %v3454, %v3459
    %v3464 = vlaneseq
    %v3465 = vshrl.u32 %v3464, 7
    %v3466 = vsub.s32 0, %v3465
    %v3467 = vrot.slane %v3426, %v3466
    %v3469 = vadd.f32 %v3461, %v3467
    %v3470 = vadd.f32 %v3462, %v3467
    %s3471 = scalar_lea.vmem %s63, 16
    %v3472 = vld [vmem:[%s3471] sm:$0xf]
    %v3473 = vld [vmem:[%s3471 + $0x4] sm:$0xf]
    %v3474 = vld [vmem:[%s3471 + $0x8] sm:$0xf]
    %v3475 = vld [vmem:[%s3471 + $0xc] sm:$0xf]
    %v3476 = vpack.c.bf16 %v3470, %v3469
    %v3481 = vunpack.c.l.b16 %v3472
    %v3482 = vunpack.c.l.b16 %v3473
    %v3483 = vunpack.c.l.b16 %v3474
    %v3484 = vunpack.c.l.b16 %v3475
    %v3485 = vpack.c.b16 %v3482, %v3481
    %v3486 = vpack.c.b16 %v3484, %v3483
    %v3488 = vsel %vm367, %v3476, 0
    %v3491 = vsel %vm367, %v3485, 0
    %v3494 = vsel %vm367, %v3486, 0
    %3496 = vmatprep.subr.bf16.mxu0 0
    %3497 = vmatpush1.bf16.xpose.msra.mxu0 %v3491
    %3498 = vmatprep.subr.bf16.mxu0 0
    %3499 = vmatpush1.bf16.xpose.msra.mxu0 %v3494
    %3500 = vmatprep.subr.bf16.mxu0 0
    %3501 = vmatpush1.bf16.xpose.msra.mxu0 0
    %3502 = vmatprep.subr.bf16.mxu0 0
    %3503 = vmatpush1.bf16.xpose.msra.mxu0 0
    %3504 = vmatprep.subr.bf16.mxu0 0
    %3505 = vmatpush1.bf16.xpose.msra.mxu0 0
    %3506 = vmatprep.subr.bf16.mxu0 0
    %3507 = vmatpush1.bf16.xpose.msra.mxu0 0
    %3508 = vmatprep.subr.bf16.mxu0 0
    %3509 = vmatpush1.bf16.xpose.msra.mxu0 0
    %3510 = vmatprep.subr.bf16.mxu0 0
    %3511 = vmatpush1.bf16.xpose.msra.mxu0 0
    %3512 = vmatprep.subr.bf16.mxu0 0
    %3513 = vmatpush1.bf16.xpose.msra.mxu0 0
    %3514 = vmatprep.subr.bf16.mxu0 0
    %3515 = vmatpush1.bf16.xpose.msra.mxu0 0
    %3516 = vmatprep.subr.bf16.mxu0 0
    %3517 = vmatpush1.bf16.xpose.msra.mxu0 0
    %3518 = vmatprep.subr.bf16.mxu0 0
    %3519 = vmatpush1.bf16.xpose.msra.mxu0 0
    %3520 = vmatprep.subr.bf16.mxu0 0
    %3521 = vmatpush1.bf16.xpose.msra.mxu0 0
    %3522 = vmatprep.subr.bf16.mxu0 0
    %3523 = vmatpush1.bf16.xpose.msra.mxu0 0
    %3524 = vmatprep.subr.bf16.mxu0 0
    %3525 = vmatpush1.bf16.xpose.msra.mxu0 0
    %3526 = vmatprep.subr.bf16.mxu0 0
    %3527 = vmatpush1.bf16.xpose.msra.mxu0 0
    %3528 = vmatprep.mubr.bf16.mxu0 0
    %3529 = vmatmul.mubr.bf16.gmra.mrb[0].mxu0 %v3488
    %v3530 = vpop.f32.mrb[0].mxu0
    %v3531 = vadd.f32 0.0, %v3530
    %v3532 = vpop.f32.mrb[0].mxu0
    %v3533 = vpop.f32.mrb[0].mxu0
    %v3534 = vadd.f32 0.0, %v3533
    %v3535 = vpop.f32.mrb[0].mxu0
    %3536 = vdwg.mxu0
    %s3537 = scalar_lea.vmem %s65, 16
    %v3538 = vld [vmem:[%s3537] sm:$0xf]
    %v3539 = vld [vmem:[%s3537 + $0x4] sm:$0xf]
    %v3540 = vld [vmem:[%s3537 + $0x8] sm:$0xf]
    %v3541 = vld [vmem:[%s3537 + $0xc] sm:$0xf]
    %s3542 = scalar_lea.vmem %s67, 1
    %v3543 = vld [vmem:[%s3542] sm:$0x1]
    %v3544 = vmul.f32 %v1821, %v476
    %v3545 = vmul.f32 %v1824, %v478
    %v3546 = vmul.f32 %v1821, %v480
    %v3547 = vmul.f32 %v1824, %v482
    %v3548 = vmul.f32 %v1821, %v484
    %v3549 = vmul.f32 %v1824, %v486
    %v3550 = vmul.f32 %v1821, %v488
    %v3551 = vmul.f32 %v1824, %v490
    %3552 = vrot.lane.b32.xlu0 %v184, 96
    %v3553 = vpop.permute.xlu0 %3552
    %3554 = vrot.lane.b32.xlu0 %v185, 96
    %v3555 = vpop.permute.xlu0 %3554
    %3556 = vrot.lane.b32.xlu0 %v186, 96
    %v3557 = vpop.permute.xlu0 %3556
    %3558 = vrot.lane.b32.xlu0 %v187, 96
    %v3559 = vpop.permute.xlu0 %3558
    %3560 = vrot.lane.b32.xlu0 %v188, 96
    %v3561 = vpop.permute.xlu0 %3560
    %3562 = vrot.lane.b32.xlu0 %v189, 96
    %v3563 = vpop.permute.xlu0 %3562
    %3564 = vrot.lane.b32.xlu0 %v190, 96
    %v3565 = vpop.permute.xlu0 %3564
    %3566 = vrot.lane.b32.xlu0 %v191, 96
    %v3567 = vpop.permute.xlu0 %3566
    %v3576 = vmul.f32 %v1821, %v3553
    %v3577 = vmul.f32 %v1824, %v3555
    %v3578 = vmul.f32 %v1821, %v3557
    %v3579 = vmul.f32 %v1824, %v3559
    %v3580 = vmul.f32 %v1821, %v3561
    %v3581 = vmul.f32 %v1824, %v3563
    %v3582 = vmul.f32 %v1821, %v3565
    %v3583 = vmul.f32 %v1824, %v3567
    %v3584 = vpack.c.bf16 %v3534, %v3531
    %v3585 = vpack.c.bf16 %v3545, %v3544
    %v3586 = vpack.c.bf16 %v3547, %v3546
    %v3587 = vpack.c.bf16 %v3549, %v3548
    %v3588 = vpack.c.bf16 %v3551, %v3550
    %3593 = vrot.lane.b32.xlu0 %v3585, 64
    %v3594 = vpop.permute.xlu0 %3593
    %3595 = vrot.lane.b32.xlu0 %v3586, 64
    %v3596 = vpop.permute.xlu0 %3595
    %3597 = vrot.lane.b32.xlu0 %v3587, 64
    %v3598 = vpop.permute.xlu0 %3597
    %3599 = vrot.lane.b32.xlu0 %v3588, 64
    %v3600 = vpop.permute.xlu0 %3599
    %v3602 = vsel %vm367, %v3584, 0
    %v3605 = vsel %vm367, %v3594, 0
    %v3608 = vsel %vm367, %v3596, 0
    %v3611 = vsel %vm367, %v3598, 0
    %v3614 = vsel %vm367, %v3600, 0
    %3616 = vmatprep.subr.bf16.mxu0 0
    %3617 = vmatpush1.bf16.xpose.msra.mxu0 %v3605
    %3618 = vmatprep.subr.bf16.mxu0 0
    %3619 = vmatpush1.bf16.xpose.msra.mxu0 %v3608
    %3620 = vmatprep.subr.bf16.mxu0 0
    %3621 = vmatpush1.bf16.xpose.msra.mxu0 %v3611
    %3622 = vmatprep.subr.bf16.mxu0 0
    %3623 = vmatpush1.bf16.xpose.msra.mxu0 %v3614
    %3624 = vmatprep.subr.bf16.mxu0 0
    %3625 = vmatpush1.bf16.xpose.msra.mxu0 0
    %3626 = vmatprep.subr.bf16.mxu0 0
    %3627 = vmatpush1.bf16.xpose.msra.mxu0 0
    %3628 = vmatprep.subr.bf16.mxu0 0
    %3629 = vmatpush1.bf16.xpose.msra.mxu0 0
    %3630 = vmatprep.subr.bf16.mxu0 0
    %3631 = vmatpush1.bf16.xpose.msra.mxu0 0
    %3632 = vmatprep.subr.bf16.mxu0 0
    %3633 = vmatpush1.bf16.xpose.msra.mxu0 0
    %3634 = vmatprep.subr.bf16.mxu0 0
    %3635 = vmatpush1.bf16.xpose.msra.mxu0 0
    %3636 = vmatprep.subr.bf16.mxu0 0
    %3637 = vmatpush1.bf16.xpose.msra.mxu0 0
    %3638 = vmatprep.subr.bf16.mxu0 0
    %3639 = vmatpush1.bf16.xpose.msra.mxu0 0
    %3640 = vmatprep.subr.bf16.mxu0 0
    %3641 = vmatpush1.bf16.xpose.msra.mxu0 0
    %3642 = vmatprep.subr.bf16.mxu0 0
    %3643 = vmatpush1.bf16.xpose.msra.mxu0 0
    %3644 = vmatprep.subr.bf16.mxu0 0
    %3645 = vmatpush1.bf16.xpose.msra.mxu0 0
    %3646 = vmatprep.subr.bf16.mxu0 0
    %3647 = vmatpush1.bf16.xpose.msra.mxu0 0
    %3648 = vmatprep.mubr.bf16.mxu0 0
    %3649 = vmatmul.mubr.bf16.gmra.mrb[0].mxu0 %v3602
    %v3650 = vpop.f32.mrb[0].mxu0
    %v3651 = vadd.f32 %v220, %v3650
    %v3652 = vpop.f32.mrb[0].mxu0
    %v3653 = vpop.f32.mrb[0].mxu0
    %v3654 = vadd.f32 %v221, %v3653
    %v3655 = vpop.f32.mrb[0].mxu0
    %3656 = vdwg.mxu0
    %v3657 = vsel %vm580, %v3651, -inf
    %3658 = vmax.xlane.f32.xlu0 %v3657
    %v3659 = vpop.xlane.xlu0 %3658
    %v3660 = vsel %vm580, %v3654, -inf
    %3661 = vmax.xlane.f32.xlu0 %v3660
    %v3662 = vpop.xlane.xlu0 %3661
    %v3663 = vsub.f32 %v3651, %v3659
    %v3664 = vsub.f32 %v3654, %v3662
    %v3665 = vmul.f32 %v3663, 1.442695
    %v3666 = vpow.pop %v3665
    %v3667 = vmul.f32 %v3664, 1.442695
    %v3668 = vpow.pop %v3667
    %v3669 = vpack.c.bf16 %v3668, %v3666
    %v3671 = vsel %vm580, %v3669, 0
    %3673 = vmatprep.subr.bf16.mxu0 0
    %3674 = vmatpush1.bf16.msra.mxu0 %v594
    %3675 = vmatprep.subr.bf16.mxu0 0
    %3676 = vmatpush1.bf16.msra.mxu0 %v595
    %3677 = vmatprep.subr.bf16.mxu0 0
    %3678 = vmatpush1.bf16.msra.mxu0 %v596
    %3679 = vmatprep.subr.bf16.mxu0 0
    %3680 = vmatpush1.bf16.msra.mxu0 %v597
    %3681 = vmatprep.subr.bf16.mxu0 0
    %3682 = vmatpush1.bf16.msra.mxu0 0
    %3683 = vmatprep.subr.bf16.mxu0 0
    %3684 = vmatpush1.bf16.msra.mxu0 0
    %3685 = vmatprep.subr.bf16.mxu0 0
    %3686 = vmatpush1.bf16.msra.mxu0 0
    %3687 = vmatprep.subr.bf16.mxu0 0
    %3688 = vmatpush1.bf16.msra.mxu0 0
    %3689 = vmatprep.subr.bf16.mxu0 0
    %3690 = vmatpush1.bf16.msra.mxu0 0
    %3691 = vmatprep.subr.bf16.mxu0 0
    %3692 = vmatpush1.bf16.msra.mxu0 0
    %3693 = vmatprep.subr.bf16.mxu0 0
    %3694 = vmatpush1.bf16.msra.mxu0 0
    %3695 = vmatprep.subr.bf16.mxu0 0
    %3696 = vmatpush1.bf16.msra.mxu0 0
    %3697 = vmatprep.subr.bf16.mxu0 0
    %3698 = vmatpush1.bf16.msra.mxu0 0
    %3699 = vmatprep.subr.bf16.mxu0 0
    %3700 = vmatpush1.bf16.msra.mxu0 0
    %3701 = vmatprep.subr.bf16.mxu0 0
    %3702 = vmatpush1.bf16.msra.mxu0 0
    %3703 = vmatprep.subr.bf16.mxu0 0
    %3704 = vmatpush1.bf16.msra.mxu0 0
    %3705 = vmatprep.mubr.bf16.mxu0 0
    %3706 = vmatmul.mubr.bf16.gmra.mrb[0].mxu0 %v3671
    %v3707 = vpop.f32.mrb[0].mxu0
    %v3708 = vadd.f32 0.0, %v3707
    %v3709 = vpop.f32.mrb[0].mxu0
    %v3710 = vpop.f32.mrb[0].mxu0
    %v3711 = vadd.f32 0.0, %v3710
    %v3712 = vpop.f32.mrb[0].mxu0
    %3713 = vdwg.mxu0
    %v3714 = vmax.f32 %v3708, 1e-30
    %v3715 = vmax.f32 %v3711, 1e-30
    %v3716 = vrcp.pop %v3714
    %v3717 = vrcp.pop %v3715
    %v3718 = vmul.f32 %v3666, %v3716
    %v3719 = vmul.f32 %v3668, %v3717
    %v3720 = vpack.c.bf16 %v3719, %v3718
    %v3721 = vpack.c.bf16 %v3577, %v3576
    %v3722 = vpack.c.bf16 %v3579, %v3578
    %v3723 = vpack.c.bf16 %v3581, %v3580
    %v3724 = vpack.c.bf16 %v3583, %v3582
    %3729 = vrot.lane.b32.xlu0 %v3721, 32
    %v3730 = vpop.permute.xlu0 %3729
    %3731 = vrot.lane.b32.xlu0 %v3722, 32
    %v3732 = vpop.permute.xlu0 %3731
    %3733 = vrot.lane.b32.xlu0 %v3723, 32
    %v3734 = vpop.permute.xlu0 %3733
    %3735 = vrot.lane.b32.xlu0 %v3724, 32
    %v3736 = vpop.permute.xlu0 %3735
    %v3742 = vsel %vm580, %v3720, 0
    %3744 = vmatprep.subr.bf16.mxu0 0
    %3745 = vmatpush1.bf16.msra.mxu0 %v3730
    %3746 = vmatprep.subr.bf16.mxu0 0
    %3747 = vmatpush1.bf16.msra.mxu0 %v3732
    %3748 = vmatprep.subr.bf16.mxu0 0
    %3749 = vmatpush1.bf16.msra.mxu0 %v3734
    %3750 = vmatprep.subr.bf16.mxu0 0
    %3751 = vmatpush1.bf16.msra.mxu0 %v3736
    %3752 = vmatprep.subr.bf16.mxu0 0
    %3753 = vmatpush1.bf16.msra.mxu0 0
    %3754 = vmatprep.subr.bf16.mxu0 0
    %3755 = vmatpush1.bf16.msra.mxu0 0
    %3756 = vmatprep.subr.bf16.mxu0 0
    %3757 = vmatpush1.bf16.msra.mxu0 0
    %3758 = vmatprep.subr.bf16.mxu0 0
    %3759 = vmatpush1.bf16.msra.mxu0 0
    %3760 = vmatprep.subr.bf16.mxu0 0
    %3761 = vmatpush1.bf16.msra.mxu0 0
    %3762 = vmatprep.subr.bf16.mxu0 0
    %3763 = vmatpush1.bf16.msra.mxu0 0
    %3764 = vmatprep.subr.bf16.mxu0 0
    %3765 = vmatpush1.bf16.msra.mxu0 0
    %3766 = vmatprep.subr.bf16.mxu0 0
    %3767 = vmatpush1.bf16.msra.mxu0 0
    %3768 = vmatprep.subr.bf16.mxu0 0
    %3769 = vmatpush1.bf16.msra.mxu0 0
    %3770 = vmatprep.subr.bf16.mxu0 0
    %3771 = vmatpush1.bf16.msra.mxu0 0
    %3772 = vmatprep.subr.bf16.mxu0 0
    %3773 = vmatpush1.bf16.msra.mxu0 0
    %3774 = vmatprep.subr.bf16.mxu0 0
    %3775 = vmatpush1.bf16.msra.mxu0 0
    %3776 = vmatprep.mubr.bf16.mxu0 0
    %3777 = vmatmul.mubr.bf16.gmra.mrb[0].mxu0 %v3742
    %v3778 = vpop.f32.mrb[0].mxu0
    %v3779 = vadd.f32 0.0, %v3778
    %v3780 = vpop.f32.mrb[0].mxu0
    %v3781 = vpop.f32.mrb[0].mxu0
    %v3782 = vadd.f32 0.0, %v3781
    %v3783 = vpop.f32.mrb[0].mxu0
    %3784 = vdwg.mxu0
    %v3785 = vpack.c.bf16 %v3782, %v3779
    %v3787 = vlaneseq
    %v3788 = vshrl.u32 %v3787, 7
    %v3789 = vsub.s32 0, %v3788
    %v3790 = vrot.slane %v3543, %v3789
    %v3796 = vunpack.c.l.b16 %v3538
    %v3797 = vunpack.c.l.b16 %v3539
    %v3798 = vunpack.c.l.b16 %v3540
    %v3799 = vunpack.c.l.b16 %v3541
    %v3800 = vpack.c.b16 %v3797, %v3796
    %v3801 = vpack.c.b16 %v3799, %v3798
    %v3803 = vsel %vm367, %v3785, 0
    %v3806 = vsel %vm367, %v3800, 0
    %v3809 = vsel %vm367, %v3801, 0
    %3811 = vmatprep.subr.bf16.mxu0 0
    %3812 = vmatpush1.bf16.xpose.msra.mxu0 %v3806
    %3813 = vmatprep.subr.bf16.mxu0 0
    %3814 = vmatpush1.bf16.xpose.msra.mxu0 %v3809
    %3815 = vmatprep.subr.bf16.mxu0 0
    %3816 = vmatpush1.bf16.xpose.msra.mxu0 0
    %3817 = vmatprep.subr.bf16.mxu0 0
    %3818 = vmatpush1.bf16.xpose.msra.mxu0 0
    %3819 = vmatprep.subr.bf16.mxu0 0
    %3820 = vmatpush1.bf16.xpose.msra.mxu0 0
    %3821 = vmatprep.subr.bf16.mxu0 0
    %3822 = vmatpush1.bf16.xpose.msra.mxu0 0
    %3823 = vmatprep.subr.bf16.mxu0 0
    %3824 = vmatpush1.bf16.xpose.msra.mxu0 0
    %3825 = vmatprep.subr.bf16.mxu0 0
    %3826 = vmatpush1.bf16.xpose.msra.mxu0 0
    %3827 = vmatprep.subr.bf16.mxu0 0
    %3828 = vmatpush1.bf16.xpose.msra.mxu0 0
    %3829 = vmatprep.subr.bf16.mxu0 0
    %3830 = vmatpush1.bf16.xpose.msra.mxu0 0
    %3831 = vmatprep.subr.bf16.mxu0 0
    %3832 = vmatpush1.bf16.xpose.msra.mxu0 0
    %3833 = vmatprep.subr.bf16.mxu0 0
    %3834 = vmatpush1.bf16.xpose.msra.mxu0 0
    %3835 = vmatprep.subr.bf16.mxu0 0
    %3836 = vmatpush1.bf16.xpose.msra.mxu0 0
    %3837 = vmatprep.subr.bf16.mxu0 0
    %3838 = vmatpush1.bf16.xpose.msra.mxu0 0
    %3839 = vmatprep.subr.bf16.mxu0 0
    %3840 = vmatpush1.bf16.xpose.msra.mxu0 0
    %3841 = vmatprep.subr.bf16.mxu0 0
    %3842 = vmatpush1.bf16.xpose.msra.mxu0 0
    %3843 = vmatprep.mubr.bf16.mxu0 0
    %3844 = vmatmul.mubr.bf16.gmra.mrb[0].mxu0 %v3803
    %v3845 = vpop.f32.mrb[0].mxu0
    %v3846 = vadd.f32 %v3790, %v3845
    %v3847 = vpop.f32.mrb[0].mxu0
    %v3848 = vpop.f32.mrb[0].mxu0
    %v3849 = vadd.f32 %v3790, %v3848
    %v3850 = vpop.f32.mrb[0].mxu0
    %3851 = vdwg.mxu0
    %s3852 = scalar_lea.vmem %s69, 1
    %v3853 = vld [vmem:[%s3852] sm:$0x1]
    %s3854 = scalar_lea.vmem %s71, 1
    %v3855 = vld [vmem:[%s3854] sm:$0x1]
    %v3856 = vadd.f32 %v3469, %v3846
    %v3857 = vadd.f32 %v3470, %v3849
    %v3858 = vsel %vm367, %v3856, 0.0
    %3859 = vadd.xlane.f32.xlu0 %v3858
    %v3860 = vpop.xlane.xlu0 %3859
    %v3861 = vsel %vm367, %v3857, 0.0
    %3862 = vadd.xlane.f32.xlu0 %v3861
    %v3863 = vpop.xlane.xlu0 %3862
    %v3864 = vmul.f32 %v3860, %v790
    %v3865 = vmul.f32 %v3863, %v790
    %v3866 = vsub.f32 %v3856, %v3864
    %v3867 = vsub.f32 %v3857, %v3865
    %v3868 = vmul.f32 %v3866, %v3866
    %v3869 = vmul.f32 %v3867, %v3867
    %v3870 = vsel %vm367, %v3868, 0.0
    %3871 = vadd.xlane.f32.xlu0 %v3870
    %v3872 = vpop.xlane.xlu0 %3871
    %v3873 = vsel %vm367, %v3869, 0.0
    %3874 = vadd.xlane.f32.xlu0 %v3873
    %v3875 = vpop.xlane.xlu0 %3874
    %v3876 = vmul.f32 %v3872, %v790
    %v3877 = vmul.f32 %v3875, %v790
    %v3878 = vadd.f32 %v3876, 1e-05
    %v3879 = vadd.f32 %v3877, 1e-05
    %v3880 = vrsqrt.pop %v3878
    %v3881 = vrsqrt.pop %v3879
    %v3882 = vmul.f32 %v3866, %v3880
    %v3883 = vmul.f32 %v3867, %v3881
    %v3885 = vlaneseq
    %v3886 = vshrl.u32 %v3885, 7
    %v3887 = vsub.s32 0, %v3886
    %v3888 = vrot.slane %v3853, %v3887
    %v3890 = vmul.f32 %v3882, %v3888
    %v3891 = vmul.f32 %v3883, %v3888
    %v3893 = vlaneseq
    %v3894 = vshrl.u32 %v3893, 7
    %v3895 = vsub.s32 0, %v3894
    %v3896 = vrot.slane %v3855, %v3895
    %v3898 = vadd.f32 %v3890, %v3896
    %v3899 = vadd.f32 %v3891, %v3896
    %s3900 = scalar_lea.vmem %s73, 32
    %v3901 = vld [vmem:[%s3900] sm:$0xf]
    %v3902 = vld [vmem:[%s3900 + $0x4] sm:$0xf]
    %v3903 = vld [vmem:[%s3900 + $0x8] sm:$0xf]
    %v3904 = vld [vmem:[%s3900 + $0xc] sm:$0xf]
    %v3905 = vld [vmem:[%s3900 + $0x10] sm:$0xf]
    %v3906 = vld [vmem:[%s3900 + $0x14] sm:$0xf]
    %v3907 = vld [vmem:[%s3900 + $0x18] sm:$0xf]
    %v3908 = vld [vmem:[%s3900 + $0x1c] sm:$0xf]
    %v3909 = vpack.c.bf16 %v3899, %v3898
    %s3910 = scalar_lea.vmem %s75, 1
    %v3911 = vld [vmem:[%s3910] sm:$0x1]
    %v3913 = vlaneseq
    %v3914 = vshrl.u32 %v3913, 7
    %v3915 = vsub.s32 0, %v3914
    %v3916 = vrot.slane %v3911, %v3915
    %v3926 = vunpack.c.l.b16 %v3901
    %v3927 = vunpack.c.l.b16 %v3902
    %v3928 = vunpack.c.l.b16 %v3903
    %v3929 = vunpack.c.l.b16 %v3904
    %v3930 = vunpack.c.l.b16 %v3905
    %v3931 = vunpack.c.l.b16 %v3906
    %v3932 = vunpack.c.l.b16 %v3907
    %v3933 = vunpack.c.l.b16 %v3908
    %v3934 = vpack.c.b16 %v3927, %v3926
    %v3935 = vpack.c.b16 %v3929, %v3928
    %v3936 = vpack.c.b16 %v3931, %v3930
    %v3937 = vpack.c.b16 %v3933, %v3932
    %v3939 = vsel %vm367, %v3909, 0
    %v3942 = vsel %vm367, %v3934, 0
    %v3945 = vsel %vm367, %v3935, 0
    %v3948 = vsel %vm367, %v3936, 0
    %v3951 = vsel %vm367, %v3937, 0
    %3953 = vmatprep.subr.bf16.mxu0 0
    %3954 = vmatpush1.bf16.xpose.msra.mxu0 %v3942
    %3955 = vmatprep.subr.bf16.mxu0 0
    %3956 = vmatpush1.bf16.xpose.msra.mxu0 %v3945
    %3957 = vmatprep.subr.bf16.mxu0 0
    %3958 = vmatpush1.bf16.xpose.msra.mxu0 %v3948
    %3959 = vmatprep.subr.bf16.mxu0 0
    %3960 = vmatpush1.bf16.xpose.msra.mxu0 %v3951
    %3961 = vmatprep.subr.bf16.mxu0 0
    %3962 = vmatpush1.bf16.xpose.msra.mxu0 0
    %3963 = vmatprep.subr.bf16.mxu0 0
    %3964 = vmatpush1.bf16.xpose.msra.mxu0 0
    %3965 = vmatprep.subr.bf16.mxu0 0
    %3966 = vmatpush1.bf16.xpose.msra.mxu0 0
    %3967 = vmatprep.subr.bf16.mxu0 0
    %3968 = vmatpush1.bf16.xpose.msra.mxu0 0
    %3969 = vmatprep.subr.bf16.mxu0 0
    %3970 = vmatpush1.bf16.xpose.msra.mxu0 0
    %3971 = vmatprep.subr.bf16.mxu0 0
    %3972 = vmatpush1.bf16.xpose.msra.mxu0 0
    %3973 = vmatprep.subr.bf16.mxu0 0
    %3974 = vmatpush1.bf16.xpose.msra.mxu0 0
    %3975 = vmatprep.subr.bf16.mxu0 0
    %3976 = vmatpush1.bf16.xpose.msra.mxu0 0
    %3977 = vmatprep.subr.bf16.mxu0 0
    %3978 = vmatpush1.bf16.xpose.msra.mxu0 0
    %3979 = vmatprep.subr.bf16.mxu0 0
    %3980 = vmatpush1.bf16.xpose.msra.mxu0 0
    %3981 = vmatprep.subr.bf16.mxu0 0
    %3982 = vmatpush1.bf16.xpose.msra.mxu0 0
    %3983 = vmatprep.subr.bf16.mxu0 0
    %3984 = vmatpush1.bf16.xpose.msra.mxu0 0
    %3985 = vmatprep.mubr.bf16.mxu0 0
    %3986 = vmatmul.mubr.bf16.gmra.mrb[0].mxu0 %v3939
    %v3987 = vpop.f32.mrb[0].mxu0
    %v3988 = vadd.f32 %v3916, %v3987
    %v3989 = vpop.f32.mrb[0].mxu0
    %v3990 = vpop.f32.mrb[0].mxu0
    %v3991 = vadd.f32 %v3916, %v3990
    %v3992 = vpop.f32.mrb[0].mxu0
    %3993 = vdwg.mxu0
    %v3994 = vmax.f32 %v3988, 0.0
    %v3995 = vmax.f32 %v3991, 0.0
    %s3996 = scalar_lea.vmem %s77, 16
    %v3997 = vld [vmem:[%s3996] sm:$0xf]
    %v3998 = vld [vmem:[%s3996 + $0x4] sm:$0xf]
    %v3999 = vld [vmem:[%s3996 + $0x8] sm:$0xf]
    %v4000 = vld [vmem:[%s3996 + $0xc] sm:$0xf]
    %v4001 = vpack.c.bf16 %v3995, %v3994
    %s4002 = scalar_lea.vmem %s79, 1
    %v4003 = vld [vmem:[%s4002] sm:$0x1]
    %v4005 = vlaneseq
    %v4006 = vshrl.u32 %v4005, 7
    %v4007 = vsub.s32 0, %v4006
    %v4008 = vrot.slane %v4003, %v4007
    %v4014 = vunpack.c.l.b16 %v3997
    %v4015 = vunpack.c.l.b16 %v3998
    %v4016 = vunpack.c.l.b16 %v3999
    %v4017 = vunpack.c.l.b16 %v4000
    %v4018 = vpack.c.b16 %v4015, %v4014
    %v4019 = vpack.c.b16 %v4017, %v4016
    %v4021 = vsel %vm580, %v4001, 0
    %v4024 = vsel %vm580, %v4018, 0
    %v4027 = vsel %vm580, %v4019, 0
    %4029 = vmatprep.subr.bf16.mxu0 0
    %4030 = vmatpush1.bf16.xpose.msra.mxu0 %v4024
    %4031 = vmatprep.subr.bf16.mxu0 0
    %4032 = vmatpush1.bf16.xpose.msra.mxu0 %v4027
    %4033 = vmatprep.subr.bf16.mxu0 0
    %4034 = vmatpush1.bf16.xpose.msra.mxu0 0
    %4035 = vmatprep.subr.bf16.mxu0 0
    %4036 = vmatpush1.bf16.xpose.msra.mxu0 0
    %4037 = vmatprep.subr.bf16.mxu0 0
    %4038 = vmatpush1.bf16.xpose.msra.mxu0 0
    %4039 = vmatprep.subr.bf16.mxu0 0
    %4040 = vmatpush1.bf16.xpose.msra.mxu0 0
    %4041 = vmatprep.subr.bf16.mxu0 0
    %4042 = vmatpush1.bf16.xpose.msra.mxu0 0
    %4043 = vmatprep.subr.bf16.mxu0 0
    %4044 = vmatpush1.bf16.xpose.msra.mxu0 0
    %4045 = vmatprep.subr.bf16.mxu0 0
    %4046 = vmatpush1.bf16.xpose.msra.mxu0 0
    %4047 = vmatprep.subr.bf16.mxu0 0
    %4048 = vmatpush1.bf16.xpose.msra.mxu0 0
    %4049 = vmatprep.subr.bf16.mxu0 0
    %4050 = vmatpush1.bf16.xpose.msra.mxu0 0
    %4051 = vmatprep.subr.bf16.mxu0 0
    %4052 = vmatpush1.bf16.xpose.msra.mxu0 0
    %4053 = vmatprep.subr.bf16.mxu0 0
    %4054 = vmatpush1.bf16.xpose.msra.mxu0 0
    %4055 = vmatprep.subr.bf16.mxu0 0
    %4056 = vmatpush1.bf16.xpose.msra.mxu0 0
    %4057 = vmatprep.subr.bf16.mxu0 0
    %4058 = vmatpush1.bf16.xpose.msra.mxu0 0
    %4059 = vmatprep.subr.bf16.mxu0 0
    %4060 = vmatpush1.bf16.xpose.msra.mxu0 0
    %4061 = vmatprep.mubr.bf16.mxu0 0
    %4062 = vmatmul.mubr.bf16.gmra.mrb[0].mxu0 %v4021
    %v4063 = vpop.f32.mrb[0].mxu0
    %v4064 = vadd.f32 %v4008, %v4063
    %v4065 = vpop.f32.mrb[0].mxu0
    %v4066 = vpop.f32.mrb[0].mxu0
    %v4067 = vadd.f32 %v4008, %v4066
    %v4068 = vpop.f32.mrb[0].mxu0
    %4069 = vdwg.mxu0
    %s4070 = scalar_lea.vmem %s81, 1
    %v4071 = vld [vmem:[%s4070] sm:$0x1]
    %s4072 = scalar_lea.vmem %s83, 1
    %v4073 = vld [vmem:[%s4072] sm:$0x1]
    %v4074 = vadd.f32 %v3898, %v4064
    %v4075 = vadd.f32 %v3899, %v4067
    %v4076 = vsel %vm367, %v4074, 0.0
    %4077 = vadd.xlane.f32.xlu0 %v4076
    %v4078 = vpop.xlane.xlu0 %4077
    %v4079 = vsel %vm367, %v4075, 0.0
    %4080 = vadd.xlane.f32.xlu0 %v4079
    %v4081 = vpop.xlane.xlu0 %4080
    %v4082 = vmul.f32 %v4078, %v790
    %v4083 = vmul.f32 %v4081, %v790
    %v4084 = vsub.f32 %v4074, %v4082
    %v4085 = vsub.f32 %v4075, %v4083
    %v4086 = vmul.f32 %v4084, %v4084
    %v4087 = vmul.f32 %v4085, %v4085
    %v4088 = vsel %vm367, %v4086, 0.0
    %4089 = vadd.xlane.f32.xlu0 %v4088
    %v4090 = vpop.xlane.xlu0 %4089
    %v4091 = vsel %vm367, %v4087, 0.0
    %4092 = vadd.xlane.f32.xlu0 %v4091
    %v4093 = vpop.xlane.xlu0 %4092
    %v4094 = vmul.f32 %v4090, %v790
    %v4095 = vmul.f32 %v4093, %v790
    %v4096 = vadd.f32 %v4094, 1e-05
    %v4097 = vadd.f32 %v4095, 1e-05
    %v4098 = vrsqrt.pop %v4096
    %v4099 = vrsqrt.pop %v4097
    %v4100 = vmul.f32 %v4084, %v4098
    %v4101 = vmul.f32 %v4085, %v4099
    %v4103 = vlaneseq
    %v4104 = vshrl.u32 %v4103, 7
    %v4105 = vsub.s32 0, %v4104
    %v4106 = vrot.slane %v4071, %v4105
    %v4108 = vmul.f32 %v4100, %v4106
    %v4109 = vmul.f32 %v4101, %v4106
    %v4111 = vlaneseq
    %v4112 = vshrl.u32 %v4111, 7
    %v4113 = vsub.s32 0, %v4112
    %v4114 = vrot.slane %v4073, %v4113
    %v4116 = vadd.f32 %v4108, %v4114
    %v4117 = vadd.f32 %v4109, %v4114
    %v4118 = vld [vmem:[%s85] sm:$0xf]
    %v4119 = vld [vmem:[%s85 + $0x4] sm:$0xf]
    %v4120 = vpack.c.bf16 %v4117, %v4116
    %v4121 = vld [vmem:[%s87] sm:$0x1]
    %v4123 = vlaneseq
    %v4124 = vshrl.u32 %v4123, 7
    %v4125 = vsub.s32 0, %v4124
    %v4126 = vrot.slane %v4121, %v4125
    %v4130 = vunpack.c.l.b16 %v4118
    %v4131 = vunpack.c.l.b16 %v4119
    %v4132 = vpack.c.b16 %v4131, %v4130
    %v4134 = vsel %vm367, %v4120, 0
    %v4137 = vsel %vm367, %v4132, 0
    %4139 = vmatprep.subr.bf16.mxu0 0
    %4140 = vmatpush1.bf16.xpose.msra.mxu0 %v4137
    %4141 = vmatprep.subr.bf16.mxu0 0
    %4142 = vmatpush1.bf16.xpose.msra.mxu0 0
    %4143 = vmatprep.subr.bf16.mxu0 0
    %4144 = vmatpush1.bf16.xpose.msra.mxu0 0
    %4145 = vmatprep.subr.bf16.mxu0 0
    %4146 = vmatpush1.bf16.xpose.msra.mxu0 0
    %4147 = vmatprep.subr.bf16.mxu0 0
    %4148 = vmatpush1.bf16.xpose.msra.mxu0 0
    %4149 = vmatprep.subr.bf16.mxu0 0
    %4150 = vmatpush1.bf16.xpose.msra.mxu0 0
    %4151 = vmatprep.subr.bf16.mxu0 0
    %4152 = vmatpush1.bf16.xpose.msra.mxu0 0
    %4153 = vmatprep.subr.bf16.mxu0 0
    %4154 = vmatpush1.bf16.xpose.msra.mxu0 0
    %4155 = vmatprep.subr.bf16.mxu0 0
    %4156 = vmatpush1.bf16.xpose.msra.mxu0 0
    %4157 = vmatprep.subr.bf16.mxu0 0
    %4158 = vmatpush1.bf16.xpose.msra.mxu0 0
    %4159 = vmatprep.subr.bf16.mxu0 0
    %4160 = vmatpush1.bf16.xpose.msra.mxu0 0
    %4161 = vmatprep.subr.bf16.mxu0 0
    %4162 = vmatpush1.bf16.xpose.msra.mxu0 0
    %4163 = vmatprep.subr.bf16.mxu0 0
    %4164 = vmatpush1.bf16.xpose.msra.mxu0 0
    %4165 = vmatprep.subr.bf16.mxu0 0
    %4166 = vmatpush1.bf16.xpose.msra.mxu0 0
    %4167 = vmatprep.subr.bf16.mxu0 0
    %4168 = vmatpush1.bf16.xpose.msra.mxu0 0
    %4169 = vmatprep.subr.bf16.mxu0 0
    %4170 = vmatpush1.bf16.xpose.msra.mxu0 0
    %4171 = vmatprep.mubr.bf16.mxu0 0
    %4172 = vmatmul.mubr.bf16.gmra.mrb[0].mxu0 %v4134
    %v4173 = vpop.f32.mrb[0].mxu0
    %v4174 = vadd.f32 %v4126, %v4173
    %v4175 = vpop.f32.mrb[0].mxu0
    %v4176 = vpop.f32.mrb[0].mxu0
    %v4177 = vadd.f32 %v4126, %v4176
    %v4178 = vpop.f32.mrb[0].mxu0
    %4179 = vdwg.mxu0
    %v4180 = vsel %vm242, %v4174, -inf
    %4181 = vmax.xlane.f32.xlu0 %v4180
    %v4182 = vpop.xlane.xlu0 %4181
    %v4183 = vsel %vm242, %v4177, -inf
    %4184 = vmax.xlane.f32.xlu0 %v4183
    %v4185 = vpop.xlane.xlu0 %4184
    %v4186 = vsub.f32 %v4174, %v4182
    %v4187 = vsub.f32 %v4177, %v4185
    %v4188 = vmul.f32 %v4186, 1.442695
    %v4189 = vpow.pop %v4188
    %v4190 = vmul.f32 %v4187, 1.442695
    %v4191 = vpow.pop %v4190
    %v4192 = vsel %vm242, %v4189, 0.0
    %4193 = vadd.xlane.f32.xlu0 %v4192
    %v4194 = vpop.xlane.xlu0 %4193
    %v4195 = vsel %vm242, %v4191, 0.0
    %4196 = vadd.xlane.f32.xlu0 %v4195
    %v4197 = vpop.xlane.xlu0 %4196
    %v4198 = vlog2.pop %v4194
    %v4199 = vmul.f32 %v4198, 0.6931472
    %v4200 = vlog2.pop %v4197
    %v4201 = vmul.f32 %v4200, 0.6931472
    %v4202 = vadd.f32 %v4199, %v4182
    %v4203 = vadd.f32 %v4201, %v4185
    %v4204 = vld [vmem:[%s5] sm:$0xff]
    %v4205 = vld [vmem:[%s5 + $0x8] sm:$0xff]
    %4206 = vset.pattern.permute.xlu0 0
    %4207 = vperm.xlu0 %4206, %v4204
    %v4208 = vpop.permute.xlu0 %4207
    %4209 = vset.pattern.permute.xlu0 0
    %4210 = vperm.xlu0 %4209, %v4205
    %v4211 = vpop.permute.xlu0 %4210
    %vm4212 = vcmp.eq.s32.totalorder %v223, %v4208
    %vm4213 = vcmp.eq.s32.totalorder %v223, %v4211
    %v4214 = vsel %vm4212, %v4174, 0.0
    %v4215 = vsel %vm4213, %v4177, 0.0
    %v4216 = vsel %vm242, %v4214, 0.0
    %4217 = vadd.xlane.f32.xlu0 %v4216
    %v4218 = vpop.xlane.xlu0 %4217
    %v4219 = vsel %vm242, %v4215, 0.0
    %4220 = vadd.xlane.f32.xlu0 %v4219
    %v4221 = vpop.xlane.xlu0 %4220
    %vm4222 = vcmp.ne.s32.totalorder %v4204, 0
    %vm4223 = vcmp.ne.s32.totalorder %v4205, 0
    %v4224 = vsel %vm4222, 1, 0
    %v4225 = vsel %vm4223, 1, 0
    %v4226 = vcvt.s32.f32 %v4224
    %v4227 = vcvt.s32.f32 %v4225
    %v4228 = vsub.f32 %v4202, %v4218
    %v4229 = vsub.f32 %v4203, %v4221
    %v4230 = vmul.f32 %v4228, %v4226
    %v4231 = vmul.f32 %v4229, %v4227
    %vm4232 = vcmask 7168
    %v4233 = vsel %vm4232, %v4230, 0.0
    %v4234 = vsel %vm4232, %v4231, 0.0
    %v4235 = vadd.f32 %v4233, %v4234
    %v4236 = vrot.slane %v4235, 4
    %v4237 = vadd.f32 %v4235, %v4236
    %v4238 = vrot.slane %v4237, 2
    %v4239 = vadd.f32 %v4237, %v4238
    %v4240 = vrot.slane %v4239, 1
    %v4241 = vadd.f32 %v4239, %v4240
    %v4242 = vsel %vm4232, %v4226, 0.0
    %v4243 = vsel %vm4232, %v4227, 0.0
    %v4244 = vadd.f32 %v4242, %v4243
    %v4245 = vrot.slane %v4244, 4
    %v4246 = vadd.f32 %v4244, %v4245
    %v4247 = vrot.slane %v4246, 2
    %v4248 = vadd.f32 %v4246, %v4247
    %v4249 = vrot.slane %v4248, 1
    %v4250 = vadd.f32 %v4248, %v4249
    %v4251 = vmax.f32 %v4250, 1.0
    %v4252 = vrcp.pop %v4251
    %v4253 = vmul.f32 %v4241, %v4252
    %vm4254 = vcmask 0
    %4255 = vst.msk [vmem:[#allocation2] sm:$0x1] %vm4254, %v4253
    // Predicated region
    $region178: #{nmt_loss.1} parent=1 // pred_check
      _
    $region179: #{nmt_loss.1} parent=1 // pred_check_branch
      %4257 = sbr.rel (0) target = $region181
    $region180: #{nmt_loss.1} parent=1 // pred_region
      %s4259 = ssub.s32 16, 16
      %4260 = vsyncadd [#allocation3], %s4259
      %s4262 = sshll.u32 [#allocation2], 4
      %s4263 = int_to_ptr.vmem [resolvable:$true] %s4262
      %4265 = dma.vmem_to_hbm [thread:$0]  %s4263, 16, %s89, [#allocation3]
    $region181: #{nmt_loss.1} parent=1 // pred_fallthru
      _
    // Predicated region
    $region182: #{nmt_loss.1} parent=1 // pred_check
      _
    $region183: #{nmt_loss.1} parent=1 // pred_check_branch
      %4267 = sbr.rel (0) target = $region185
    $region184: #{nmt_loss.1} parent=1 // pred_region
      %4268 = dma.done [#allocation3], 16
    $region185: #{nmt_loss.1} parent=1 // pred_fallthru
      _
    %4269 = vsyncpa [#allocation3], 1

</llo_original>
